<compile_context>
chip_gen: v5e
topology: v5e:2x2
jax: 0.10.0
libtpu: 0.0.40
codegen_flags: <defaults>
</compile_context>

<pallas_src>
import functools

import jax
import jax.numpy as jnp
import numpy as np
from jax.experimental import pallas as pl
from jax.experimental.pallas import tpu as pltpu


def _round_up(x, m):
    return (x + m - 1) // m * m


def _pick_row_tile(H, W, cmax, budget_bytes=2 * 1024 * 1024):
    """Largest multiple-of-8 divisor of H whose f32 tile fits the budget and
    still leaves >= 2 row tiles (so the auto-pipeline can double-buffer)."""
    cands = [t for t in range(8, H + 1, 8) if H % t == 0]
    good = [t for t in cands if t * W * cmax * 4 <= budget_bytes and H // t >= 2]
    if good:
        return max(good)
    if cands:
        return min(cands)
    # TODO(synk): mask partial row tiles instead of falling back to one tile.
    return H


# ----------------------------------------------------------------------------
# Kernel 1: fused conv3x3(pad=1)+ReLU -> conv3x3(pad=1)+ReLU, one row tile
# ----------------------------------------------------------------------------
def _double_conv_kernel(x_ref, w1_ref, b1_ref, w2_ref, b2_ref, o_ref, z1_ref,
                        *, TH, H, W, Wc, cdt):
    # x_ref : (1, H+4, Wc+2, Cin)  zero-padded NHWC input (resident per image)
    # w1_ref: (9, Cin, Cout)   w2_ref: (9, Cout, Cout)   b*_ref: (1, Cout) f32
    # o_ref : (1, TH, W, Cout) feature-map row tile
    # z1_ref: (TH+2, Wc+2, Cout) f32 VMEM scratch (conv1 act + zero border)
    r0 = pl.program_id(1) * TH
    cin = x_ref.shape[-1]
    cout = o_ref.shape[-1]

    # --- conv1 + bias + ReLU on rows [r0-1, r0+TH]  (one-row halo for conv2) -
    p1 = (TH + 2) * Wc
    acc1 = None
    for ky in range(3):
        for kx in range(3):
            xs = x_ref[0, pl.ds(r0 + ky, TH + 2), pl.ds(kx, Wc), :]
            xs = xs.reshape(p1, cin)
            t = jnp.dot(xs, w1_ref[3 * ky + kx],
                        preferred_element_type=jnp.float32)
            acc1 = t if acc1 is None else acc1 + t
    a1 = jnp.maximum(acc1 + b1_ref[...], 0.0).reshape(TH + 2, Wc, cout)

    # Rows/cols outside the image must be exactly zero: they act as conv2's
    # zero padding (conv1 evaluated on padded rows is NOT zero).
    gr = r0 - 1 + jax.lax.broadcasted_iota(jnp.int32, (TH + 2, Wc, cout), 0)
    gc = jax.lax.broadcasted_iota(jnp.int32, (TH + 2, Wc, cout), 1)
    a1 = jnp.where((gr >= 0) & (gr < H) & (gc < W), a1, 0.0)

    # Stage in VMEM with a zero column border (conv2's left/right padding).
    z1_ref[...] = jnp.zeros_like(z1_ref)
    z1_ref[:, 1:Wc + 1, :] = a1

    # --- conv2 + bias + ReLU on rows [r0, r0+TH) ------------------------------
    p2 = TH * Wc
    acc2 = None
    for ky in range(3):
        for kx in range(3):
            xs = z1_ref[ky:ky + TH, kx:kx + Wc, :].reshape(p2, cout).astype(cdt)
            t = jnp.dot(xs, w2_ref[3 * ky + kx],
                        preferred_element_type=jnp.float32)
            acc2 = t if acc2 is None else acc2 + t
    y = jnp.maximum(acc2 + b2_ref[...], 0.0).astype(o_ref.dtype)
    o_ref[0] = y.reshape(TH, Wc, cout)[:, :W, :]


def double_conv3x3_relu_nhwc(x, w1, b1, w2, b2, compute_dtype=None):
    """Fused conv3x3(pad=1)+ReLU -> conv3x3(pad=1)+ReLU.  NHWC in / NHWC out."""
    N, H, W, Cin = x.shape
    Cout = w1.shape[-1]
    out_dtype = x.dtype
    cdt = np.dtype(compute_dtype) if compute_dtype is not None else np.dtype(x.dtype)
    Wc = _round_up(W, 8)                      # sublane-friendly conv width
    TH = _pick_row_tile(H, Wc, max(Cin, Cout))

    # Zero padding: +-2 rows (conv1 halo feeding conv2's one-row halo),
    # 1 col left, 1 + (Wc - W) cols right.
    xp = jnp.pad(x, ((0, 0), (2, 2), (1, 1 + Wc - W), (0, 0))).astype(cdt)
    w1r = w1.reshape(9, Cin, Cout).astype(cdt)
    w2r = w2.reshape(9, Cout, Cout).astype(cdt)
    b1r = b1.reshape(1, Cout).astype(jnp.float32)
    b2r = b2.reshape(1, Cout).astype(jnp.float32)

    csize = np.dtype(cdt).itemsize
    cost = pl.CostEstimate(
        flops=2 * N * H * W * 9 * (Cin * Cout + Cout * Cout),
        transcendentals=0,
        bytes_accessed=(xp.size * csize + (w1r.size + w2r.size) * csize
                        + (b1r.size + b2r.size) * 4
                        + N * H * W * Cout * np.dtype(out_dtype).itemsize))

    kernel = functools.partial(_double_conv_kernel,
                               TH=TH, H=H, W=W, Wc=Wc, cdt=cdt)
    return pl.pallas_call(
        kernel,
        out_shape=jax.ShapeDtypeStruct((N, H, W, Cout), out_dtype),
        grid=(N, H // TH),
        in_specs=[
            # Whole padded image stays VMEM-resident across the row tiles of
            # one batch element (index map ignores r -> fetched once per n and
            # auto-pipelined across n).
            # TODO(synk): for very large images switch this to a manual halo
            # DMA (memory_space=pl.ANY + make_async_copy) to bound VMEM.
            pl.BlockSpec((1, H + 4, Wc + 2, Cin), lambda n, r: (n, 0, 0, 0)),
            pl.BlockSpec((9, Cin, Cout), lambda n, r: (0, 0, 0)),
            pl.BlockSpec((1, Cout), lambda n, r: (0, 0)),
            pl.BlockSpec((9, Cout, Cout), lambda n, r: (0, 0, 0)),
            pl.BlockSpec((1, Cout), lambda n, r: (0, 0)),
        ],
        out_specs=pl.BlockSpec((1, TH, W, Cout), lambda n, r: (n, r, 0, 0)),
        scratch_shapes=[pltpu.VMEM((TH + 2, Wc + 2, Cout), jnp.float32)],
        compiler_params=pltpu.CompilerParams(
            dimension_semantics=("parallel", "parallel"),
            vmem_limit_bytes=48 * 1024 * 1024),
        cost_estimate=cost,
    )(xp, w1r, b1r, w2r, b2r)


# ----------------------------------------------------------------------------
# Kernel 2: 2x2 / stride-2 max-pool (4-corner selection done in-kernel)
# ----------------------------------------------------------------------------
def _pool2x2_kernel(x_ref, o_ref, *, C):
    # x_ref: (1, THo, 2, Wo, 2*C) reinterpreted feature map; o_ref: (1, THo, Wo, C)
    m = jnp.maximum(x_ref[0, :, 0, :, :], x_ref[0, :, 1, :, :])  # row pairs
    o_ref[0] = jnp.maximum(m[..., :C], m[..., C:])               # column pairs


def max_pool2x2_nhwc(x):
    """F.max_pool2d(kernel=2, stride=2, padding=1 if H or W odd else 0)."""
    N, H, W, C = x.shape
    if H % 2 == 1 or W % 2 == 1:
        # padding=1 with floor mode: the top/left -inf pad is always consumed;
        # the bottom/right pad only matters when that dim is even.
        pb = 1 if H % 2 == 0 else 0
        pr = 1 if W % 2 == 0 else 0
        x = jnp.pad(x, ((0, 0), (1, pb), (1, pr), (0, 0)),
                    constant_values=-jnp.inf)
        N, H, W, C = x.shape
    Ho, Wo = H // 2, W // 2
    view = x.reshape(N, Ho, 2, Wo, 2 * C)     # free contiguous reinterpretation
    THo = _pick_row_tile(Ho, Wo, 2 * C)
    return pl.pallas_call(
        functools.partial(_pool2x2_kernel, C=C),
        out_shape=jax.ShapeDtypeStruct((N, Ho, Wo, C), x.dtype),
        grid=(N, Ho // THo),
        in_specs=[pl.BlockSpec((1, THo, 2, Wo, 2 * C),
                               lambda n, t: (n, t, 0, 0, 0))],
        out_specs=pl.BlockSpec((1, THo, Wo, C), lambda n, t: (n, t, 0, 0)),
        compiler_params=pltpu.CompilerParams(
            dimension_semantics=("parallel", "parallel"),
            vmem_limit_bytes=48 * 1024 * 1024),
    )(view)


# ----------------------------------------------------------------------------
# DownConv forward
# ----------------------------------------------------------------------------
def down_conv_forward_nhwc(x_nhwc, params, pooling=True, compute_dtype=None):
    w1, b1, w2, b2 = params
    feat = double_conv3x3_relu_nhwc(x_nhwc, w1, b1, w2, b2, compute_dtype)
    out = max_pool2x2_nhwc(feat) if pooling else feat
    return out, feat


def down_conv_forward(x_nchw, params, pooling=True, compute_dtype=None):
    # NCHW public interface to match the PyTorch module.  In an NHWC
    # end-to-end model call down_conv_forward_nhwc directly and drop these
    # transposes (each is a full HBM pass around memory-bound kernels).
    x = jnp.transpose(x_nchw, (0, 2, 3, 1))
    out, feat = down_conv_forward_nhwc(x, params, pooling, compute_dtype)
    return jnp.transpose(out, (0, 3, 1, 2)), jnp.transpose(feat, (0, 3, 1, 2))


def init_params(key, cin, cout):
    """Deterministic, PyTorch-default-style uniform init. Weights are HWIO."""
    k1, k2, k3, k4 = jax.random.split(key, 4)
    bound1 = 1.0 / np.sqrt(cin * 9)
    w1 = jax.random.uniform(k1, (3, 3, cin, cout), jnp.float32, -bound1, bound1)
    b1 = jax.random.uniform(k2, (cout,), jnp.float32, -bound1, bound1)
    bound2 = 1.0 / np.sqrt(cout * 9)
    w2 = jax.random.uniform(k3, (3, 3, cout, cout), jnp.float32, -bound2, bound2)
    b2 = jax.random.uniform(k4, (cout,), jnp.float32, -bound2, bound2)
    return w1, b1, w2, b2


# ----------------------------------------------------------------------------
# Pure-JAX reference for correctness checking
# ----------------------------------------------------------------------------
def _ref_forward(x_nchw, params, pooling=True):
    w1, b1, w2, b2 = params
    x = jnp.transpose(x_nchw, (0, 2, 3, 1))
    dn = ('NHWC', 'HWIO', 'NHWC')
    x = jax.nn.relu(jax.lax.conv_general_dilated(x, w1, (1, 1), 'SAME',
                                                 dimension_numbers=dn) + b1)
    x = jax.nn.relu(jax.lax.conv_general_dilated(x, w2, (1, 1), 'SAME',
                                                 dimension_numbers=dn) + b2)
    fm = x
    if pooling:
        _, H, W, _ = x.shape
        pad = 1 if (H % 2 == 1 or W % 2 == 1) else 0
        x = jax.lax.reduce_window(x, -jnp.inf, jax.lax.max,
                                  (1, 2, 2, 1), (1, 2, 2, 1),
                                  [(0, 0), (pad, pad), (pad, pad), (0, 0)])
    return jnp.transpose(x, (0, 3, 1, 2)), jnp.transpose(fm, (0, 3, 1, 2))


if __name__ == "__main__":
    key = jax.random.PRNGKey(0)
    kx, kp = jax.random.split(key)

    N, Cin, Cout, H, W = 2, 4, 8, 16, 16
    x = jax.random.normal(kx, (N, Cin, H, W), jnp.float32)
    params = init_params(kp, Cin, Cout)

    fwd = jax.jit(functools.partial(down_conv_forward, pooling=True))
    pooled, feat = fwd(x, params)
    jax.block_until_ready((pooled, feat))

    assert pooled.shape == (N, Cout, H // 2, W // 2), pooled.shape
    assert feat.shape == (N, Cout, H, W), feat.shape

    ref_pooled, ref_feat = _ref_forward(x, params, pooling=True)
    np.testing.assert_allclose(np.asarray(feat), np.asarray(ref_feat),
                               rtol=1e-4, atol=1e-4)
    np.testing.assert_allclose(np.asarray(pooled), np.asarray(ref_pooled),
                               rtol=1e-4, atol=1e-4)

    # bf16 MXU path (f32 accumulation, f32 bias/ReLU epilogue): loose check.
    fwd_bf16 = jax.jit(functools.partial(down_conv_forward, pooling=True,
                                         compute_dtype=jnp.bfloat16))
    pooled_bf, feat_bf = fwd_bf16(x, params)
    jax.block_until_ready((pooled_bf, feat_bf))
    np.testing.assert_allclose(np.asarray(feat_bf), np.asarray(ref_feat),
                               rtol=5e-2, atol=5e-2)
    np.testing.assert_allclose(np.asarray(pooled_bf), np.asarray(ref_pooled),
                               rtol=5e-2, atol=5e-2)

    print("KERNEL_OK")
</pallas_src>

<mosaic_0001>
module attributes {stable_mosaic.version = 11 : i64} {
  func.func @_double_conv_kernel(%arg0: i32, %arg1: i32, %arg2: memref<1x20x18x4xf32, #tpu.memory_space<vmem>>, %arg3: memref<9x4x8xf32, #tpu.memory_space<vmem>>, %arg4: memref<1x8xf32, #tpu.memory_space<vmem>>, %arg5: memref<9x8x8xf32, #tpu.memory_space<vmem>>, %arg6: memref<1x8xf32, #tpu.memory_space<vmem>>, %arg7: memref<1x8x16x8xf32, #tpu.memory_space<vmem>>, %arg8: memref<10x18x8xf32, #tpu.memory_space<vmem>>) attributes {dimension_semantics = [#tpu.dimension_semantics<parallel>, #tpu.dimension_semantics<parallel>], iteration_bounds = array<i64: 2, 2>, scalar_prefetch = 0 : i64, scratch_operands = 1 : i64, tpu.core_type = #tpu.core_type<tc>, window_params = [{transform_indices = @transform_0, window_bounds = array<i64: 1, 20, 18, 4>}, {pipeline_mode = #tpu.pipeline_mode<synchronous>, transform_indices = @transform_1, window_bounds = array<i64: 9, 4, 8>}, {pipeline_mode = #tpu.pipeline_mode<synchronous>, transform_indices = @transform_2, window_bounds = array<i64: 1, 8>}, {pipeline_mode = #tpu.pipeline_mode<synchronous>, transform_indices = @transform_3, window_bounds = array<i64: 9, 8, 8>}, {pipeline_mode = #tpu.pipeline_mode<synchronous>, transform_indices = @transform_4, window_bounds = array<i64: 1, 8>}, {transform_indices = @transform_5, window_bounds = array<i64: 1, 8, 16, 8>}]} {
    %c8_i32 = arith.constant 8 : i32
    %0 = arith.muli %arg1, %c8_i32 : i32
    %c0_i32 = arith.constant 0 : i32
    %1 = arith.addi %0, %c0_i32 : i32
    %c0 = arith.constant 0 : index
    %2 = arith.index_cast %1 : i32 to index
    %c0_0 = arith.constant 0 : index
    %c0_1 = arith.constant 0 : index
    %3 = vector.load %arg2[%c0, %2, %c0_0, %c0_1] : memref<1x20x18x4xf32, #tpu.memory_space<vmem>>, vector<1x10x16x4xf32>
    %4 = vector.shape_cast %3 : vector<1x10x16x4xf32> to vector<10x16x4xf32>
    %5 = vector.shape_cast %4 : vector<10x16x4xf32> to vector<160x4xf32>
    %c0_2 = arith.constant 0 : index
    %c0_3 = arith.constant 0 : index
    %c0_4 = arith.constant 0 : index
    %6 = vector.load %arg3[%c0_2, %c0_3, %c0_4] : memref<9x4x8xf32, #tpu.memory_space<vmem>>, vector<1x4x8xf32>
    %7 = vector.shape_cast %6 : vector<1x4x8xf32> to vector<4x8xf32>
    %cst = arith.constant dense<0.000000e+00> : vector<160x8xf32>
    %8 = tpu.matmul %5, %7, %cst {dimension_numbers = #tpu.dot_dimension_numbers<[1], [0], [0], [1], [0, 0, 1, 1], [], []>} : vector<160x4xf32>, vector<4x8xf32>, vector<160x8xf32> -> vector<160x8xf32>
    %c0_i32_5 = arith.constant 0 : i32
    %9 = arith.addi %0, %c0_i32_5 : i32
    %c0_6 = arith.constant 0 : index
    %10 = arith.index_cast %9 : i32 to index
    %c1 = arith.constant 1 : index
    %c0_7 = arith.constant 0 : index
    %11 = vector.load %arg2[%c0_6, %10, %c1, %c0_7] : memref<1x20x18x4xf32, #tpu.memory_space<vmem>>, vector<1x10x16x4xf32>
    %12 = vector.shape_cast %11 : vector<1x10x16x4xf32> to vector<10x16x4xf32>
    %13 = vector.shape_cast %12 : vector<10x16x4xf32> to vector<160x4xf32>
    %c1_8 = arith.constant 1 : index
    %c0_9 = arith.constant 0 : index
    %c0_10 = arith.constant 0 : index
    %14 = vector.load %arg3[%c1_8, %c0_9, %c0_10] : memref<9x4x8xf32, #tpu.memory_space<vmem>>, vector<1x4x8xf32>
    %15 = vector.shape_cast %14 : vector<1x4x8xf32> to vector<4x8xf32>
    %cst_11 = arith.constant dense<0.000000e+00> : vector<160x8xf32>
    %16 = tpu.matmul %13, %15, %cst_11 {dimension_numbers = #tpu.dot_dimension_numbers<[1], [0], [0], [1], [0, 0, 1, 1], [], []>} : vector<160x4xf32>, vector<4x8xf32>, vector<160x8xf32> -> vector<160x8xf32>
    %17 = arith.addf %8, %16 : vector<160x8xf32>
    %c0_i32_12 = arith.constant 0 : i32
    %18 = arith.addi %0, %c0_i32_12 : i32
    %c0_13 = arith.constant 0 : index
    %19 = arith.index_cast %18 : i32 to index
    %c2 = arith.constant 2 : index
    %c0_14 = arith.constant 0 : index
    %20 = vector.load %arg2[%c0_13, %19, %c2, %c0_14] : memref<1x20x18x4xf32, #tpu.memory_space<vmem>>, vector<1x10x16x4xf32>
    %21 = vector.shape_cast %20 : vector<1x10x16x4xf32> to vector<10x16x4xf32>
    %22 = vector.shape_cast %21 : vector<10x16x4xf32> to vector<160x4xf32>
    %c2_15 = arith.constant 2 : index
    %c0_16 = arith.constant 0 : index
    %c0_17 = arith.constant 0 : index
    %23 = vector.load %arg3[%c2_15, %c0_16, %c0_17] : memref<9x4x8xf32, #tpu.memory_space<vmem>>, vector<1x4x8xf32>
    %24 = vector.shape_cast %23 : vector<1x4x8xf32> to vector<4x8xf32>
    %cst_18 = arith.constant dense<0.000000e+00> : vector<160x8xf32>
    %25 = tpu.matmul %22, %24, %cst_18 {dimension_numbers = #tpu.dot_dimension_numbers<[1], [0], [0], [1], [0, 0, 1, 1], [], []>} : vector<160x4xf32>, vector<4x8xf32>, vector<160x8xf32> -> vector<160x8xf32>
    %26 = arith.addf %17, %25 : vector<160x8xf32>
    %c1_i32 = arith.constant 1 : i32
    %27 = arith.addi %0, %c1_i32 : i32
    %c0_19 = arith.constant 0 : index
    %28 = arith.index_cast %27 : i32 to index
    %c0_20 = arith.constant 0 : index
    %c0_21 = arith.constant 0 : index
    %29 = vector.load %arg2[%c0_19, %28, %c0_20, %c0_21] : memref<1x20x18x4xf32, #tpu.memory_space<vmem>>, vector<1x10x16x4xf32>
    %30 = vector.shape_cast %29 : vector<1x10x16x4xf32> to vector<10x16x4xf32>
    %31 = vector.shape_cast %30 : vector<10x16x4xf32> to vector<160x4xf32>
    %c3 = arith.constant 3 : index
    %c0_22 = arith.constant 0 : index
    %c0_23 = arith.constant 0 : index
    %32 = vector.load %arg3[%c3, %c0_22, %c0_23] : memref<9x4x8xf32, #tpu.memory_space<vmem>>, vector<1x4x8xf32>
    %33 = vector.shape_cast %32 : vector<1x4x8xf32> to vector<4x8xf32>
    %cst_24 = arith.constant dense<0.000000e+00> : vector<160x8xf32>
    %34 = tpu.matmul %31, %33, %cst_24 {dimension_numbers = #tpu.dot_dimension_numbers<[1], [0], [0], [1], [0, 0, 1, 1], [], []>} : vector<160x4xf32>, vector<4x8xf32>, vector<160x8xf32> -> vector<160x8xf32>
    %35 = arith.addf %26, %34 : vector<160x8xf32>
    %c1_i32_25 = arith.constant 1 : i32
    %36 = arith.addi %0, %c1_i32_25 : i32
    %c0_26 = arith.constant 0 : index
    %37 = arith.index_cast %36 : i32 to index
    %c1_27 = arith.constant 1 : index
    %c0_28 = arith.constant 0 : index
    %38 = vector.load %arg2[%c0_26, %37, %c1_27, %c0_28] : memref<1x20x18x4xf32, #tpu.memory_space<vmem>>, vector<1x10x16x4xf32>
    %39 = vector.shape_cast %38 : vector<1x10x16x4xf32> to vector<10x16x4xf32>
    %40 = vector.shape_cast %39 : vector<10x16x4xf32> to vector<160x4xf32>
    %c4 = arith.constant 4 : index
    %c0_29 = arith.constant 0 : index
    %c0_30 = arith.constant 0 : index
    %41 = vector.load %arg3[%c4, %c0_29, %c0_30] : memref<9x4x8xf32, #tpu.memory_space<vmem>>, vector<1x4x8xf32>
    %42 = vector.shape_cast %41 : vector<1x4x8xf32> to vector<4x8xf32>
    %cst_31 = arith.constant dense<0.000000e+00> : vector<160x8xf32>
    %43 = tpu.matmul %40, %42, %cst_31 {dimension_numbers = #tpu.dot_dimension_numbers<[1], [0], [0], [1], [0, 0, 1, 1], [], []>} : vector<160x4xf32>, vector<4x8xf32>, vector<160x8xf32> -> vector<160x8xf32>
    %44 = arith.addf %35, %43 : vector<160x8xf32>
    %c1_i32_32 = arith.constant 1 : i32
    %45 = arith.addi %0, %c1_i32_32 : i32
    %c0_33 = arith.constant 0 : index
    %46 = arith.index_cast %45 : i32 to index
    %c2_34 = arith.constant 2 : index
    %c0_35 = arith.constant 0 : index
    %47 = vector.load %arg2[%c0_33, %46, %c2_34, %c0_35] : memref<1x20x18x4xf32, #tpu.memory_space<vmem>>, vector<1x10x16x4xf32>
    %48 = vector.shape_cast %47 : vector<1x10x16x4xf32> to vector<10x16x4xf32>
    %49 = vector.shape_cast %48 : vector<10x16x4xf32> to vector<160x4xf32>
    %c5 = arith.constant 5 : index
    %c0_36 = arith.constant 0 : index
    %c0_37 = arith.constant 0 : index
    %50 = vector.load %arg3[%c5, %c0_36, %c0_37] : memref<9x4x8xf32, #tpu.memory_space<vmem>>, vector<1x4x8xf32>
    %51 = vector.shape_cast %50 : vector<1x4x8xf32> to vector<4x8xf32>
    %cst_38 = arith.constant dense<0.000000e+00> : vector<160x8xf32>
    %52 = tpu.matmul %49, %51, %cst_38 {dimension_numbers = #tpu.dot_dimension_numbers<[1], [0], [0], [1], [0, 0, 1, 1], [], []>} : vector<160x4xf32>, vector<4x8xf32>, vector<160x8xf32> -> vector<160x8xf32>
    %53 = arith.addf %44, %52 : vector<160x8xf32>
    %c2_i32 = arith.constant 2 : i32
    %54 = arith.addi %0, %c2_i32 : i32
    %c0_39 = arith.constant 0 : index
    %55 = arith.index_cast %54 : i32 to index
    %c0_40 = arith.constant 0 : index
    %c0_41 = arith.constant 0 : index
    %56 = vector.load %arg2[%c0_39, %55, %c0_40, %c0_41] : memref<1x20x18x4xf32, #tpu.memory_space<vmem>>, vector<1x10x16x4xf32>
    %57 = vector.shape_cast %56 : vector<1x10x16x4xf32> to vector<10x16x4xf32>
    %58 = vector.shape_cast %57 : vector<10x16x4xf32> to vector<160x4xf32>
    %c6 = arith.constant 6 : index
    %c0_42 = arith.constant 0 : index
    %c0_43 = arith.constant 0 : index
    %59 = vector.load %arg3[%c6, %c0_42, %c0_43] : memref<9x4x8xf32, #tpu.memory_space<vmem>>, vector<1x4x8xf32>
    %60 = vector.shape_cast %59 : vector<1x4x8xf32> to vector<4x8xf32>
    %cst_44 = arith.constant dense<0.000000e+00> : vector<160x8xf32>
    %61 = tpu.matmul %58, %60, %cst_44 {dimension_numbers = #tpu.dot_dimension_numbers<[1], [0], [0], [1], [0, 0, 1, 1], [], []>} : vector<160x4xf32>, vector<4x8xf32>, vector<160x8xf32> -> vector<160x8xf32>
    %62 = arith.addf %53, %61 : vector<160x8xf32>
    %c2_i32_45 = arith.constant 2 : i32
    %63 = arith.addi %0, %c2_i32_45 : i32
    %c0_46 = arith.constant 0 : index
    %64 = arith.index_cast %63 : i32 to index
    %c1_47 = arith.constant 1 : index
    %c0_48 = arith.constant 0 : index
    %65 = vector.load %arg2[%c0_46, %64, %c1_47, %c0_48] : memref<1x20x18x4xf32, #tpu.memory_space<vmem>>, vector<1x10x16x4xf32>
    %66 = vector.shape_cast %65 : vector<1x10x16x4xf32> to vector<10x16x4xf32>
    %67 = vector.shape_cast %66 : vector<10x16x4xf32> to vector<160x4xf32>
    %c7 = arith.constant 7 : index
    %c0_49 = arith.constant 0 : index
    %c0_50 = arith.constant 0 : index
    %68 = vector.load %arg3[%c7, %c0_49, %c0_50] : memref<9x4x8xf32, #tpu.memory_space<vmem>>, vector<1x4x8xf32>
    %69 = vector.shape_cast %68 : vector<1x4x8xf32> to vector<4x8xf32>
    %cst_51 = arith.constant dense<0.000000e+00> : vector<160x8xf32>
    %70 = tpu.matmul %67, %69, %cst_51 {dimension_numbers = #tpu.dot_dimension_numbers<[1], [0], [0], [1], [0, 0, 1, 1], [], []>} : vector<160x4xf32>, vector<4x8xf32>, vector<160x8xf32> -> vector<160x8xf32>
    %71 = arith.addf %62, %70 : vector<160x8xf32>
    %c2_i32_52 = arith.constant 2 : i32
    %72 = arith.addi %0, %c2_i32_52 : i32
    %c0_53 = arith.constant 0 : index
    %73 = arith.index_cast %72 : i32 to index
    %c2_54 = arith.constant 2 : index
    %c0_55 = arith.constant 0 : index
    %74 = vector.load %arg2[%c0_53, %73, %c2_54, %c0_55] : memref<1x20x18x4xf32, #tpu.memory_space<vmem>>, vector<1x10x16x4xf32>
    %75 = vector.shape_cast %74 : vector<1x10x16x4xf32> to vector<10x16x4xf32>
    %76 = vector.shape_cast %75 : vector<10x16x4xf32> to vector<160x4xf32>
    %c8 = arith.constant 8 : index
    %c0_56 = arith.constant 0 : index
    %c0_57 = arith.constant 0 : index
    %77 = vector.load %arg3[%c8, %c0_56, %c0_57] : memref<9x4x8xf32, #tpu.memory_space<vmem>>, vector<1x4x8xf32>
    %78 = vector.shape_cast %77 : vector<1x4x8xf32> to vector<4x8xf32>
    %cst_58 = arith.constant dense<0.000000e+00> : vector<160x8xf32>
    %79 = tpu.matmul %76, %78, %cst_58 {dimension_numbers = #tpu.dot_dimension_numbers<[1], [0], [0], [1], [0, 0, 1, 1], [], []>} : vector<160x4xf32>, vector<4x8xf32>, vector<160x8xf32> -> vector<160x8xf32>
    %80 = arith.addf %71, %79 : vector<160x8xf32>
    %c0_59 = arith.constant 0 : index
    %c0_60 = arith.constant 0 : index
    %81 = vector.load %arg4[%c0_59, %c0_60] : memref<1x8xf32, #tpu.memory_space<vmem>>, vector<1x8xf32>
    %82 = vector.broadcast %81 : vector<1x8xf32> to vector<160x8xf32>
    %83 = arith.addf %80, %82 : vector<160x8xf32>
    %cst_61 = arith.constant 0.000000e+00 : f32
    %84 = vector.broadcast %cst_61 : f32 to vector<160x8xf32>
    %85 = arith.maximumf %83, %84 : vector<160x8xf32>
    %86 = vector.shape_cast %85 : vector<160x8xf32> to vector<10x16x8xf32>
    %c1_i32_62 = arith.constant 1 : i32
    %87 = arith.subi %0, %c1_i32_62 : i32
    %88 = tpu.iota {dimensions = array<i32: 0>} : vector<10x16x8xi32>
    %89 = vector.broadcast %87 : i32 to vector<10x16x8xi32>
    %90 = arith.addi %89, %88 : vector<10x16x8xi32>
    %91 = tpu.iota {dimensions = array<i32: 1>} : vector<10x16x8xi32>
    %c0_i32_63 = arith.constant 0 : i32
    %92 = vector.broadcast %c0_i32_63 : i32 to vector<10x16x8xi32>
    %93 = arith.cmpi sge, %90, %92 : vector<10x16x8xi32>
    %c16_i32 = arith.constant 16 : i32
    %94 = vector.broadcast %c16_i32 : i32 to vector<10x16x8xi32>
    %95 = arith.cmpi slt, %90, %94 : vector<10x16x8xi32>
    %96 = arith.andi %93, %95 : vector<10x16x8xi1>
    %c16_i32_64 = arith.constant 16 : i32
    %97 = vector.broadcast %c16_i32_64 : i32 to vector<10x16x8xi32>
    %98 = arith.cmpi slt, %91, %97 : vector<10x16x8xi32>
    %99 = arith.andi %96, %98 : vector<10x16x8xi1>
    %cst_65 = arith.constant 0.000000e+00 : f32
    %100 = vector.broadcast %cst_65 : f32 to vector<10x16x8xf32>
    %101 = arith.select %99, %86, %100 : vector<10x16x8xi1>, vector<10x16x8xf32>
    %cst_66 = arith.constant 0.000000e+00 : f32
    %102 = vector.broadcast %cst_66 : f32 to vector<10x18x8xf32>
    %c0_67 = arith.constant 0 : index
    %c0_68 = arith.constant 0 : index
    %c0_69 = arith.constant 0 : index
    %103 = vector.load %arg8[%c0_67, %c0_68, %c0_69] : memref<10x18x8xf32, #tpu.memory_space<vmem>>, vector<10x18x8xf32>
    tpu.vector_store %arg8[%c0_67, %c0_68, %c0_69], %102 {strides = array<i32>} : memref<10x18x8xf32, #tpu.memory_space<vmem>>, vector<10x18x8xf32>,
    %c0_70 = arith.constant 0 : index
    %c1_71 = arith.constant 1 : index
    %c0_72 = arith.constant 0 : index
    %104 = vector.load %arg8[%c0_70, %c1_71, %c0_72] : memref<10x18x8xf32, #tpu.memory_space<vmem>>, vector<10x16x8xf32>
    tpu.vector_store %arg8[%c0_70, %c1_71, %c0_72], %101 {strides = array<i32>} : memref<10x18x8xf32, #tpu.memory_space<vmem>>, vector<10x16x8xf32>,
    %c0_73 = arith.constant 0 : index
    %c0_74 = arith.constant 0 : index
    %c0_75 = arith.constant 0 : index
    %105 = vector.load %arg8[%c0_73, %c0_74, %c0_75] : memref<10x18x8xf32, #tpu.memory_space<vmem>>, vector<8x16x8xf32>
    %106 = vector.shape_cast %105 : vector<8x16x8xf32> to vector<128x8xf32>
    %c0_76 = arith.constant 0 : index
    %c0_77 = arith.constant 0 : index
    %c0_78 = arith.constant 0 : index
    %107 = vector.load %arg5[%c0_76, %c0_77, %c0_78] : memref<9x8x8xf32, #tpu.memory_space<vmem>>, vector<1x8x8xf32>
    %108 = vector.shape_cast %107 : vector<1x8x8xf32> to vector<8x8xf32>
    %cst_79 = arith.constant dense<0.000000e+00> : vector<128x8xf32>
    %109 = tpu.matmul %106, %108, %cst_79 {dimension_numbers = #tpu.dot_dimension_numbers<[1], [0], [0], [1], [0, 0, 1, 1], [], []>} : vector<128x8xf32>, vector<8x8xf32>, vector<128x8xf32> -> vector<128x8xf32>
    %c0_80 = arith.constant 0 : index
    %c1_81 = arith.constant 1 : index
    %c0_82 = arith.constant 0 : index
    %110 = vector.load %arg8[%c0_80, %c1_81, %c0_82] : memref<10x18x8xf32, #tpu.memory_space<vmem>>, vector<8x16x8xf32>
    %111 = vector.shape_cast %110 : vector<8x16x8xf32> to vector<128x8xf32>
    %c1_83 = arith.constant 1 : index
    %c0_84 = arith.constant 0 : index
    %c0_85 = arith.constant 0 : index
    %112 = vector.load %arg5[%c1_83, %c0_84, %c0_85] : memref<9x8x8xf32, #tpu.memory_space<vmem>>, vector<1x8x8xf32>
    %113 = vector.shape_cast %112 : vector<1x8x8xf32> to vector<8x8xf32>
    %cst_86 = arith.constant dense<0.000000e+00> : vector<128x8xf32>
    %114 = tpu.matmul %111, %113, %cst_86 {dimension_numbers = #tpu.dot_dimension_numbers<[1], [0], [0], [1], [0, 0, 1, 1], [], []>} : vector<128x8xf32>, vector<8x8xf32>, vector<128x8xf32> -> vector<128x8xf32>
    %115 = arith.addf %109, %114 : vector<128x8xf32>
    %c0_87 = arith.constant 0 : index
    %c2_88 = arith.constant 2 : index
    %c0_89 = arith.constant 0 : index
    %116 = vector.load %arg8[%c0_87, %c2_88, %c0_89] : memref<10x18x8xf32, #tpu.memory_space<vmem>>, vector<8x16x8xf32>
    %117 = vector.shape_cast %116 : vector<8x16x8xf32> to vector<128x8xf32>
    %c2_90 = arith.constant 2 : index
    %c0_91 = arith.constant 0 : index
    %c0_92 = arith.constant 0 : index
    %118 = vector.load %arg5[%c2_90, %c0_91, %c0_92] : memref<9x8x8xf32, #tpu.memory_space<vmem>>, vector<1x8x8xf32>
    %119 = vector.shape_cast %118 : vector<1x8x8xf32> to vector<8x8xf32>
    %cst_93 = arith.constant dense<0.000000e+00> : vector<128x8xf32>
    %120 = tpu.matmul %117, %119, %cst_93 {dimension_numbers = #tpu.dot_dimension_numbers<[1], [0], [0], [1], [0, 0, 1, 1], [], []>} : vector<128x8xf32>, vector<8x8xf32>, vector<128x8xf32> -> vector<128x8xf32>
    %121 = arith.addf %115, %120 : vector<128x8xf32>
    %c1_94 = arith.constant 1 : index
    %c0_95 = arith.constant 0 : index
    %c0_96 = arith.constant 0 : index
    %122 = vector.load %arg8[%c1_94, %c0_95, %c0_96] : memref<10x18x8xf32, #tpu.memory_space<vmem>>, vector<8x16x8xf32>
    %123 = vector.shape_cast %122 : vector<8x16x8xf32> to vector<128x8xf32>
    %c3_97 = arith.constant 3 : index
    %c0_98 = arith.constant 0 : index
    %c0_99 = arith.constant 0 : index
    %124 = vector.load %arg5[%c3_97, %c0_98, %c0_99] : memref<9x8x8xf32, #tpu.memory_space<vmem>>, vector<1x8x8xf32>
    %125 = vector.shape_cast %124 : vector<1x8x8xf32> to vector<8x8xf32>
    %cst_100 = arith.constant dense<0.000000e+00> : vector<128x8xf32>
    %126 = tpu.matmul %123, %125, %cst_100 {dimension_numbers = #tpu.dot_dimension_numbers<[1], [0], [0], [1], [0, 0, 1, 1], [], []>} : vector<128x8xf32>, vector<8x8xf32>, vector<128x8xf32> -> vector<128x8xf32>
    %127 = arith.addf %121, %126 : vector<128x8xf32>
    %c1_101 = arith.constant 1 : index
    %c1_102 = arith.constant 1 : index
    %c0_103 = arith.constant 0 : index
    %128 = vector.load %arg8[%c1_101, %c1_102, %c0_103] : memref<10x18x8xf32, #tpu.memory_space<vmem>>, vector<8x16x8xf32>
    %129 = vector.shape_cast %128 : vector<8x16x8xf32> to vector<128x8xf32>
    %c4_104 = arith.constant 4 : index
    %c0_105 = arith.constant 0 : index
    %c0_106 = arith.constant 0 : index
    %130 = vector.load %arg5[%c4_104, %c0_105, %c0_106] : memref<9x8x8xf32, #tpu.memory_space<vmem>>, vector<1x8x8xf32>
    %131 = vector.shape_cast %130 : vector<1x8x8xf32> to vector<8x8xf32>
    %cst_107 = arith.constant dense<0.000000e+00> : vector<128x8xf32>
    %132 = tpu.matmul %129, %131, %cst_107 {dimension_numbers = #tpu.dot_dimension_numbers<[1], [0], [0], [1], [0, 0, 1, 1], [], []>} : vector<128x8xf32>, vector<8x8xf32>, vector<128x8xf32> -> vector<128x8xf32>
    %133 = arith.addf %127, %132 : vector<128x8xf32>
    %c1_108 = arith.constant 1 : index
    %c2_109 = arith.constant 2 : index
    %c0_110 = arith.constant 0 : index
    %134 = vector.load %arg8[%c1_108, %c2_109, %c0_110] : memref<10x18x8xf32, #tpu.memory_space<vmem>>, vector<8x16x8xf32>
    %135 = vector.shape_cast %134 : vector<8x16x8xf32> to vector<128x8xf32>
    %c5_111 = arith.constant 5 : index
    %c0_112 = arith.constant 0 : index
    %c0_113 = arith.constant 0 : index
    %136 = vector.load %arg5[%c5_111, %c0_112, %c0_113] : memref<9x8x8xf32, #tpu.memory_space<vmem>>, vector<1x8x8xf32>
    %137 = vector.shape_cast %136 : vector<1x8x8xf32> to vector<8x8xf32>
    %cst_114 = arith.constant dense<0.000000e+00> : vector<128x8xf32>
    %138 = tpu.matmul %135, %137, %cst_114 {dimension_numbers = #tpu.dot_dimension_numbers<[1], [0], [0], [1], [0, 0, 1, 1], [], []>} : vector<128x8xf32>, vector<8x8xf32>, vector<128x8xf32> -> vector<128x8xf32>
    %139 = arith.addf %133, %138 : vector<128x8xf32>
    %c2_115 = arith.constant 2 : index
    %c0_116 = arith.constant 0 : index
    %c0_117 = arith.constant 0 : index
    %140 = vector.load %arg8[%c2_115, %c0_116, %c0_117] : memref<10x18x8xf32, #tpu.memory_space<vmem>>, vector<8x16x8xf32>
    %141 = vector.shape_cast %140 : vector<8x16x8xf32> to vector<128x8xf32>
    %c6_118 = arith.constant 6 : index
    %c0_119 = arith.constant 0 : index
    %c0_120 = arith.constant 0 : index
    %142 = vector.load %arg5[%c6_118, %c0_119, %c0_120] : memref<9x8x8xf32, #tpu.memory_space<vmem>>, vector<1x8x8xf32>
    %143 = vector.shape_cast %142 : vector<1x8x8xf32> to vector<8x8xf32>
    %cst_121 = arith.constant dense<0.000000e+00> : vector<128x8xf32>
    %144 = tpu.matmul %141, %143, %cst_121 {dimension_numbers = #tpu.dot_dimension_numbers<[1], [0], [0], [1], [0, 0, 1, 1], [], []>} : vector<128x8xf32>, vector<8x8xf32>, vector<128x8xf32> -> vector<128x8xf32>
    %145 = arith.addf %139, %144 : vector<128x8xf32>
    %c2_122 = arith.constant 2 : index
    %c1_123 = arith.constant 1 : index
    %c0_124 = arith.constant 0 : index
    %146 = vector.load %arg8[%c2_122, %c1_123, %c0_124] : memref<10x18x8xf32, #tpu.memory_space<vmem>>, vector<8x16x8xf32>
    %147 = vector.shape_cast %146 : vector<8x16x8xf32> to vector<128x8xf32>
    %c7_125 = arith.constant 7 : index
    %c0_126 = arith.constant 0 : index
    %c0_127 = arith.constant 0 : index
    %148 = vector.load %arg5[%c7_125, %c0_126, %c0_127] : memref<9x8x8xf32, #tpu.memory_space<vmem>>, vector<1x8x8xf32>
    %149 = vector.shape_cast %148 : vector<1x8x8xf32> to vector<8x8xf32>
    %cst_128 = arith.constant dense<0.000000e+00> : vector<128x8xf32>
    %150 = tpu.matmul %147, %149, %cst_128 {dimension_numbers = #tpu.dot_dimension_numbers<[1], [0], [0], [1], [0, 0, 1, 1], [], []>} : vector<128x8xf32>, vector<8x8xf32>, vector<128x8xf32> -> vector<128x8xf32>
    %151 = arith.addf %145, %150 : vector<128x8xf32>
    %c2_129 = arith.constant 2 : index
    %c2_130 = arith.constant 2 : index
    %c0_131 = arith.constant 0 : index
    %152 = vector.load %arg8[%c2_129, %c2_130, %c0_131] : memref<10x18x8xf32, #tpu.memory_space<vmem>>, vector<8x16x8xf32>
    %153 = vector.shape_cast %152 : vector<8x16x8xf32> to vector<128x8xf32>
    %c8_132 = arith.constant 8 : index
    %c0_133 = arith.constant 0 : index
    %c0_134 = arith.constant 0 : index
    %154 = vector.load %arg5[%c8_132, %c0_133, %c0_134] : memref<9x8x8xf32, #tpu.memory_space<vmem>>, vector<1x8x8xf32>
    %155 = vector.shape_cast %154 : vector<1x8x8xf32> to vector<8x8xf32>
    %cst_135 = arith.constant dense<0.000000e+00> : vector<128x8xf32>
    %156 = tpu.matmul %153, %155, %cst_135 {dimension_numbers = #tpu.dot_dimension_numbers<[1], [0], [0], [1], [0, 0, 1, 1], [], []>} : vector<128x8xf32>, vector<8x8xf32>, vector<128x8xf32> -> vector<128x8xf32>
    %157 = arith.addf %151, %156 : vector<128x8xf32>
    %c0_136 = arith.constant 0 : index
    %c0_137 = arith.constant 0 : index
    %158 = vector.load %arg6[%c0_136, %c0_137] : memref<1x8xf32, #tpu.memory_space<vmem>>, vector<1x8xf32>
    %159 = vector.broadcast %158 : vector<1x8xf32> to vector<128x8xf32>
    %160 = arith.addf %157, %159 : vector<128x8xf32>
    %cst_138 = arith.constant 0.000000e+00 : f32
    %161 = vector.broadcast %cst_138 : f32 to vector<128x8xf32>
    %162 = arith.maximumf %160, %161 : vector<128x8xf32>
    %163 = vector.shape_cast %162 : vector<128x8xf32> to vector<8x16x8xf32>
    %c0_139 = arith.constant 0 : index
    %c0_140 = arith.constant 0 : index
    %c0_141 = arith.constant 0 : index
    %c0_142 = arith.constant 0 : index
    %164 = vector.load %arg7[%c0_139, %c0_140, %c0_141, %c0_142] : memref<1x8x16x8xf32, #tpu.memory_space<vmem>>, vector<1x8x16x8xf32>
    %165 = vector.shape_cast %164 : vector<1x8x16x8xf32> to vector<8x16x8xf32>
    %166 = vector.shape_cast %163 : vector<8x16x8xf32> to vector<1x8x16x8xf32>
    tpu.vector_store %arg7[%c0_139, %c0_140, %c0_141, %c0_142], %166 {strides = array<i32>} : memref<1x8x16x8xf32, #tpu.memory_space<vmem>>, vector<1x8x16x8xf32>,
    return
  }
  func.func @transform_0(%arg0: i32, %arg1: i32) -> (i32, i32, i32, i32) {
    %c0_i32 = arith.constant 0 : i32
    %c0_i32_0 = arith.constant 0 : i32
    %c0_i32_1 = arith.constant 0 : i32
    %c0_i32_2 = arith.constant 0 : i32
    return %arg0, %c0_i32, %c0_i32_0, %c0_i32_1 : i32, i32, i32, i32
  }
  func.func @transform_1(%arg0: i32, %arg1: i32) -> (i32, i32, i32) {
    %c0_i32 = arith.constant 0 : i32
    %c0_i32_0 = arith.constant 0 : i32
    %c0_i32_1 = arith.constant 0 : i32
    %c0_i32_2 = arith.constant 0 : i32
    return %c0_i32, %c0_i32_0, %c0_i32_1 : i32, i32, i32
  }
  func.func @transform_2(%arg0: i32, %arg1: i32) -> (i32, i32) {
    %c0_i32 = arith.constant 0 : i32
    %c0_i32_0 = arith.constant 0 : i32
    %c0_i32_1 = arith.constant 0 : i32
    return %c0_i32, %c0_i32_0 : i32, i32
  }
  func.func @transform_3(%arg0: i32, %arg1: i32) -> (i32, i32, i32) {
    %c0_i32 = arith.constant 0 : i32
    %c0_i32_0 = arith.constant 0 : i32
    %c0_i32_1 = arith.constant 0 : i32
    %c0_i32_2 = arith.constant 0 : i32
    return %c0_i32, %c0_i32_0, %c0_i32_1 : i32, i32, i32
  }
  func.func @transform_4(%arg0: i32, %arg1: i32) -> (i32, i32) {
    %c0_i32 = arith.constant 0 : i32
    %c0_i32_0 = arith.constant 0 : i32
    %c0_i32_1 = arith.constant 0 : i32
    return %c0_i32, %c0_i32_0 : i32, i32
  }
  func.func @transform_5(%arg0: i32, %arg1: i32) -> (i32, i32, i32, i32) {
    %c0_i32 = arith.constant 0 : i32
    %c0_i32_0 = arith.constant 0 : i32
    %c0_i32_1 = arith.constant 0 : i32
    return %arg0, %arg1, %c0_i32, %c0_i32_0 : i32, i32, i32, i32
  }
}

module attributes {stable_mosaic.version = 11 : i64} {
  func.func @_pool2x2_kernel(%arg0: i32, %arg1: i32, %arg2: memref<1x8x2x8x16xf32, #tpu.memory_space<vmem>>, %arg3: memref<1x8x8x8xf32, #tpu.memory_space<vmem>>) attributes {dimension_semantics = [#tpu.dimension_semantics<parallel>, #tpu.dimension_semantics<parallel>], iteration_bounds = array<i64: 2, 1>, scalar_prefetch = 0 : i64, scratch_operands = 0 : i64, tpu.core_type = #tpu.core_type<tc>, window_params = [{transform_indices = @transform_0, window_bounds = array<i64: 1, 8, 2, 8, 16>}, {transform_indices = @transform_1, window_bounds = array<i64: 1, 8, 8, 8>}]} {
    %c0 = arith.constant 0 : index
    %c0_0 = arith.constant 0 : index
    %c0_1 = arith.constant 0 : index
    %c0_2 = arith.constant 0 : index
    %c0_3 = arith.constant 0 : index
    %0 = vector.load %arg2[%c0, %c0_0, %c0_1, %c0_2, %c0_3] : memref<1x8x2x8x16xf32, #tpu.memory_space<vmem>>, vector<1x8x1x8x16xf32>
    %1 = vector.shape_cast %0 : vector<1x8x1x8x16xf32> to vector<8x8x16xf32>
    %c0_4 = arith.constant 0 : index
    %c0_5 = arith.constant 0 : index
    %c1 = arith.constant 1 : index
    %c0_6 = arith.constant 0 : index
    %c0_7 = arith.constant 0 : index
    %2 = vector.load %arg2[%c0_4, %c0_5, %c1, %c0_6, %c0_7] : memref<1x8x2x8x16xf32, #tpu.memory_space<vmem>>, vector<1x8x1x8x16xf32>
    %3 = vector.shape_cast %2 : vector<1x8x1x8x16xf32> to vector<8x8x16xf32>
    %4 = arith.maximumf %1, %3 : vector<8x8x16xf32>
    %5 = vector.extract_strided_slice %4 {offsets = [0, 0, 0], sizes = [8, 8, 8], strides = [1, 1, 1]} : vector<8x8x16xf32> to vector<8x8x8xf32>
    %6 = vector.extract_strided_slice %4 {offsets = [0, 0, 8], sizes = [8, 8, 8], strides = [1, 1, 1]} : vector<8x8x16xf32> to vector<8x8x8xf32>
    %7 = arith.maximumf %5, %6 : vector<8x8x8xf32>
    %c0_8 = arith.constant 0 : index
    %c0_9 = arith.constant 0 : index
    %c0_10 = arith.constant 0 : index
    %c0_11 = arith.constant 0 : index
    %8 = vector.load %arg3[%c0_8, %c0_9, %c0_10, %c0_11] : memref<1x8x8x8xf32, #tpu.memory_space<vmem>>, vector<1x8x8x8xf32>
    %9 = vector.shape_cast %8 : vector<1x8x8x8xf32> to vector<8x8x8xf32>
    %10 = vector.shape_cast %7 : vector<8x8x8xf32> to vector<1x8x8x8xf32>
    tpu.vector_store %arg3[%c0_8, %c0_9, %c0_10, %c0_11], %10 {strides = array<i32>} : memref<1x8x8x8xf32, #tpu.memory_space<vmem>>, vector<1x8x8x8xf32>,
    return
  }
  func.func @transform_0(%arg0: i32, %arg1: i32) -> (i32, i32, i32, i32, i32) {
    %c0_i32 = arith.constant 0 : i32
    %c0_i32_0 = arith.constant 0 : i32
    %c0_i32_1 = arith.constant 0 : i32
    %c0_i32_2 = arith.constant 0 : i32
    return %arg0, %arg1, %c0_i32, %c0_i32_0, %c0_i32_1 : i32, i32, i32, i32, i32
  }
  func.func @transform_1(%arg0: i32, %arg1: i32) -> (i32, i32, i32, i32) {
    %c0_i32 = arith.constant 0 : i32
    %c0_i32_0 = arith.constant 0 : i32
    %c0_i32_1 = arith.constant 0 : i32
    return %arg0, %arg1, %c0_i32, %c0_i32_0 : i32, i32, i32, i32
  }
}

</mosaic_0001>

<llo_original>
// kernel: down_conv_forward.3
$region0: #{down_conv_forward.3}
  #allocation0 [shape = 'u32[]', space=smem, size = 0x4, offset = 0x4, fixed_abs, tag = 'smem constant byte address 0x4 - core index']
  #allocation1 [shape = 'u32[72,128]{1,0:T(1,128)}', space=vmem, size = 0x9000, scoped, tag = 'internal scratch']
  %s0 = inlined_call_operand.vmem [shape: f32[2,8,2,8,16], index: 0, kind: input, shape index: {}]
  %s1 = inlined_call_operand.vmem [shape: f32[2,8,8,8], index: 1, kind: output, shape index: {}]
  %s2 = sld [smem:[#allocation0]]
  $region37: #{down_conv_forward.3} parent=0
    _
  %s4 = ssub.s32 1, %s2
  %s5 = scalar_select 0, %s4, %s2
  loop: start=0, step=1, limit=4
  $region2: #{down_conv_forward.3} parent=0 // loop_pre_header
    _
  $region3: #{down_conv_forward.3} parent=0 // loop_header
    %s7 = sphi 0, %s11
    %p8 = scmp.ge.s32.totalorder %s7, 4
    %s14 = sphi 0, %s26
    %s15 = sphi 0, %s22
    %s16 = sphi 0, %s14
    %s17 = sphi 0, %s15
    %s18 = sphi 0, %s16
    %s19 = sphi 0, %s17
    %s31 = sphi 0, %s33
    %s34 = sphi 0, %s31
    %s35 = sphi 0, %s34
    %s51 = sphi 0, %s35
    %s59 = sphi 0, %s61
    %s62 = sphi 0, %s59
    %s63 = sphi 0, %s62
    %s79 = sphi 0, %s63
  $region4: #{down_conv_forward.3} parent=0 // loop_header_branch
    %10 = sbr.rel (%p8) target = $region8
  $region5: #{down_conv_forward.3} parent=0 // loop_body
    %s12 = ssub.s32 %s7, 1
    %s13 = ssub.s32 %s7, 2
    %s20 = sadd.s32 1, %s15
    %p21 = scmp.ge.s32.totalorder %s20, 1
    %s22 = scalar_select %p21, 0, %s20
    %s23 = sadd.s32 1, %s14
    %s24 = scalar_select %p21, %s23, %s14
    %p25 = scmp.ge.s32.totalorder %s24, 2
    %s26 = scalar_select %p25, 0, %s24
    %s27 = ssub.s32 %s14, %s26
    %s28 = ssub.s32 %s15, %s22
    %s29 = sor.u32 %s27, %s28
    %p30 = scmp.eq.s32.totalorder %s29, 0
    %s32 = sadd.s32 %s31, 1
    %s33 = scalar_select %p30, %s31, %s32
    %p36 = pneg %p30
    %p37 = scmp.eq.s32.totalorder %s7, 1
    %p38 = por %p36, %p37
    %p39 = scmp.ne.s32.totalorder %s31, %s34
    %p40 = scmp.eq.s32.totalorder %s7, 0
    %p41 = por %p39, %p40
    %p42 = scmp.ne.s32.totalorder %s31, %s34
    %p43 = scmp.eq.s32.totalorder %s12, 1
    %p44 = por %p42, %p43
    %p45 = scmp.ne.s32.totalorder %s34, %s35
    %p46 = scmp.eq.s32.totalorder %s12, 0
    %p47 = por %p45, %p46
    %p48 = scmp.ne.s32.totalorder %s34, %s35
    %p49 = scmp.eq.s32.totalorder %s13, 1
    %p50 = por %p48, %p49
    %p52 = scmp.ne.s32.totalorder %s35, %s51
    %p53 = scmp.eq.s32.totalorder %s13, 0
    %p54 = por %p52, %p53
    %s55 = ssub.s32 %s14, %s26
    %s56 = ssub.s32 %s15, %s22
    %s57 = sor.u32 %s55, %s56
    %p58 = scmp.eq.s32.totalorder %s57, 0
    %s60 = sadd.s32 %s59, 1
    %s61 = scalar_select %p58, %s59, %s60
    %p64 = pneg %p58
    %p65 = scmp.eq.s32.totalorder %s7, 1
    %p66 = por %p64, %p65
    %p67 = scmp.ne.s32.totalorder %s59, %s62
    %p68 = scmp.eq.s32.totalorder %s7, 0
    %p69 = por %p67, %p68
    %p70 = scmp.ne.s32.totalorder %s59, %s62
    %p71 = scmp.eq.s32.totalorder %s12, 1
    %p72 = por %p70, %p71
    %p73 = scmp.ne.s32.totalorder %s62, %s63
    %p74 = scmp.eq.s32.totalorder %s12, 0
    %p75 = por %p73, %p74
    %p76 = scmp.ne.s32.totalorder %s62, %s63
    %p77 = scmp.eq.s32.totalorder %s13, 1
    %p78 = por %p76, %p77
    %p80 = scmp.ne.s32.totalorder %s63, %s79
    %p81 = scmp.eq.s32.totalorder %s13, 0
    %p82 = por %p80, %p81
    %p83 = scmp.le.s32.totalorder 1, %s7
    %p84 = scmp.lt.s32.totalorder %s7, 3
    %p85 = pnand %p83, %p84
    %p86 = pneg %p85
    // Predicated region
    $region9: #{down_conv_forward.3} parent=5 // pred_check
      _
    $region10: #{down_conv_forward.3} parent=5 // pred_check_branch
      %88 = sbr.rel (%p85) target = $region12
    $region11: #{down_conv_forward.3} parent=5 // pred_region
      %s89 = ssub.s32 %s7, 1
    $region12: #{down_conv_forward.3} parent=5 // pred_fallthru
      _
    %p90 = scmp.lt.s32.totalorder %s7, 2
    // Predicated region
    $region13: #{down_conv_forward.3} parent=5 // pred_check
      %p91 = pneg %p90
    $region14: #{down_conv_forward.3} parent=5 // pred_check_branch
      %93 = sbr.rel (%p91) target = $region16
    $region15: #{down_conv_forward.3} parent=5 // pred_region
      // Predicated region
      $region17: #{down_conv_forward.3} parent=15 // pred_check
        %p94 = pneg %p41
      $region18: #{down_conv_forward.3} parent=15 // pred_check_branch
        %96 = sbr.rel (%p94) target = $region20
      $region19: #{down_conv_forward.3} parent=15 // pred_region
        %s97 = smul.u32 8, %s15
        %p98 = scmp.lt.s32.totalorder %s14, 1
        %s99 = scalar_select %p98, %s14, 1
        %p100 = scmp.lt.s32.totalorder %s97, 7
        %s101 = scalar_select %p100, %s97, 7
        %s102 = smul.addr %s101, 2
        %s103 = smul.addr %s99, 16
        %s104 = sadd.s32 %s102, %s103
        %s105 = smul.addr %s104, 8
        %s106 = scalar_lea.vmem %s0, %s105
        %s107 = smul.u32 8, %s15
      $region20: #{down_conv_forward.3} parent=15 // pred_fallthru
        _
    $region16: #{down_conv_forward.3} parent=5 // pred_fallthru
      _
    %p108 = scmp.le.s32.totalorder 1, %s7
    %p109 = scmp.lt.s32.totalorder %s7, 3
    %p110 = pnand %p108, %p109
    %p111 = pneg %p110
    // Predicated region
    $region21: #{down_conv_forward.3} parent=5 // pred_check
      _
    $region22: #{down_conv_forward.3} parent=5 // pred_check_branch
      %113 = sbr.rel (%p110) target = $region24
    $region23: #{down_conv_forward.3} parent=5 // pred_region
      %s114 = ssub.s32 %s7, 1
      %s115 = smul.u32 8, %s17
      %p116 = scmp.lt.s32.totalorder %s16, 1
      %s117 = scalar_select %p116, %s16, 1
      %p118 = scmp.lt.s32.totalorder %s115, 7
      %s119 = scalar_select %p118, %s115, 7
      %s120 = smul.addr %s119, 2
      %s121 = smul.addr %s117, 16
      %s122 = sadd.s32 %s120, %s121
      %s123 = smul.addr %s122, 8
      %s124 = scalar_lea.vmem %s0, %s123
      %p125 = pneg %p47
      %p126 = pneg %p44
      %p127 = pneg %p75
      %p128 = pneg %p72
      %s129 = smul.u32 8, %s17
      %p130 = scmp.lt.s32.totalorder %s16, 1
      %s131 = scalar_select %p130, %s16, 1
      %p132 = scmp.lt.s32.totalorder %s129, 7
      %s133 = scalar_select %p132, %s129, 7
      %s134 = smul.addr %s131, 8
      %s135 = sadd.s32 %s133, %s134
      %s136 = smul.addr %s135, 8
      %s137 = scalar_lea.vmem %s1, %s136
      %s138 = smul.u32 8, %s17
      %p139 = scmp.lt.s32.totalorder %s16, 1
      %s140 = scalar_select %p139, %s16, 1
      %p141 = scmp.lt.s32.totalorder %s138, 7
      %s142 = scalar_select %p141, %s138, 7
      %s143 = smul.addr %s142, 2
      %s144 = smul.addr %s140, 16
      %s145 = sadd.s32 %s143, %s144
      %s146 = smul.addr %s145, 8
      %s147 = scalar_lea.vmem %s0, %s146
      %s148 = smul.u32 8, %s17
      %s149 = smul.u32 8, %s17
      %p150 = scmp.lt.s32.totalorder %s16, 1
      %s151 = scalar_select %p150, %s16, 1
      %p152 = scmp.lt.s32.totalorder %s149, 7
      %s153 = scalar_select %p152, %s149, 7
      %s154 = smul.addr %s151, 8
      %s155 = sadd.s32 %s153, %s154
      %s156 = smul.addr %s155, 8
      %s157 = scalar_lea.vmem %s1, %s156
      %s158 = smul.u32 8, %s17
      %v159 = vld [vmem:[%s147] sm:$0xff]
      %v160 = vld [vmem:[%s147 + $0x10] sm:$0xff]
      %v161 = vld [vmem:[%s147 + $0x20] sm:$0xff]
      %v162 = vld [vmem:[%s147 + $0x30] sm:$0xff]
      %v163 = vld [vmem:[%s147 + $0x40] sm:$0xff]
      %v164 = vld [vmem:[%s147 + $0x50] sm:$0xff]
      %v165 = vld [vmem:[%s147 + $0x60] sm:$0xff]
      %v166 = vld [vmem:[%s147 + $0x70] sm:$0xff]
      %s167 = scalar_lea.vmem %s147, 8
      %v168 = vld [vmem:[%s167] sm:$0xff]
      %v169 = vld [vmem:[%s167 + $0x10] sm:$0xff]
      %v170 = vld [vmem:[%s167 + $0x20] sm:$0xff]
      %v171 = vld [vmem:[%s167 + $0x30] sm:$0xff]
      %v172 = vld [vmem:[%s167 + $0x40] sm:$0xff]
      %v173 = vld [vmem:[%s167 + $0x50] sm:$0xff]
      %v174 = vld [vmem:[%s167 + $0x60] sm:$0xff]
      %v175 = vld [vmem:[%s167 + $0x70] sm:$0xff]
      %v176 = vmax.f32 %v159, %v168
      %v177 = vmax.f32 %v160, %v169
      %v178 = vmax.f32 %v161, %v170
      %v179 = vmax.f32 %v162, %v171
      %v180 = vmax.f32 %v163, %v172
      %v181 = vmax.f32 %v164, %v173
      %v182 = vmax.f32 %v165, %v174
      %v183 = vmax.f32 %v166, %v175
      %192 = vrot.lane.b32.xlu0 %v176, 120
      %v193 = vpop.permute.xlu0 %192
      %194 = vrot.lane.b32.xlu0 %v177, 120
      %v195 = vpop.permute.xlu0 %194
      %196 = vrot.lane.b32.xlu0 %v178, 120
      %v197 = vpop.permute.xlu0 %196
      %198 = vrot.lane.b32.xlu0 %v179, 120
      %v199 = vpop.permute.xlu0 %198
      %200 = vrot.lane.b32.xlu0 %v180, 120
      %v201 = vpop.permute.xlu0 %200
      %202 = vrot.lane.b32.xlu0 %v181, 120
      %v203 = vpop.permute.xlu0 %202
      %204 = vrot.lane.b32.xlu0 %v182, 120
      %v205 = vpop.permute.xlu0 %204
      %206 = vrot.lane.b32.xlu0 %v183, 120
      %v207 = vpop.permute.xlu0 %206
      %v216 = vmax.f32 %v176, %v193
      %v217 = vmax.f32 %v177, %v195
      %v218 = vmax.f32 %v178, %v197
      %v219 = vmax.f32 %v179, %v199
      %v220 = vmax.f32 %v180, %v201
      %v221 = vmax.f32 %v181, %v203
      %v222 = vmax.f32 %v182, %v205
      %v223 = vmax.f32 %v183, %v207
      %vm224 = vcmask 64512
      %225 = vst.msk [vmem:[%s157] sm:$0xff] %vm224, %v216
      %226 = vst.msk [vmem:[%s157 + $0x8] sm:$0xff] %vm224, %v217
      %227 = vst.msk [vmem:[%s157 + $0x10] sm:$0xff] %vm224, %v218
      %228 = vst.msk [vmem:[%s157 + $0x18] sm:$0xff] %vm224, %v219
      %229 = vst.msk [vmem:[%s157 + $0x20] sm:$0xff] %vm224, %v220
      %230 = vst.msk [vmem:[%s157 + $0x28] sm:$0xff] %vm224, %v221
      %231 = vst.msk [vmem:[%s157 + $0x30] sm:$0xff] %vm224, %v222
      %232 = vst.msk [vmem:[%s157 + $0x38] sm:$0xff] %vm224, %v223
      %s233 = smul.u32 8, %s17
      %p234 = scmp.lt.s32.totalorder %s16, 1
      %s235 = scalar_select %p234, %s16, 1
      %p236 = scmp.lt.s32.totalorder %s233, 7
      %s237 = scalar_select %p236, %s233, 7
      %s238 = smul.addr %s235, 8
      %s239 = sadd.s32 %s237, %s238
      %s240 = smul.addr %s239, 8
      %s241 = scalar_lea.vmem %s1, %s240
      // Predicated region
      $region25: #{down_conv_forward.3} parent=23 // pred_check
        %p242 = pneg %p72
      $region26: #{down_conv_forward.3} parent=23 // pred_check_branch
        %244 = sbr.rel (%p242) target = $region28
      $region27: #{down_conv_forward.3} parent=23 // pred_region
        %s245 = smul.u32 8, %s17
      $region28: #{down_conv_forward.3} parent=23 // pred_fallthru
        _
    $region24: #{down_conv_forward.3} parent=5 // pred_fallthru
      _
    %p246 = scmp.le.s32.totalorder 2, %s7
    // Predicated region
    $region29: #{down_conv_forward.3} parent=5 // pred_check
      %p247 = pneg %p246
    $region30: #{down_conv_forward.3} parent=5 // pred_check_branch
      %249 = sbr.rel (%p247) target = $region32
    $region31: #{down_conv_forward.3} parent=5 // pred_region
      %s250 = ssub.s32 %s7, 2
      // Predicated region
      $region33: #{down_conv_forward.3} parent=31 // pred_check
        %p251 = pneg %p78
      $region34: #{down_conv_forward.3} parent=31 // pred_check_branch
        %253 = sbr.rel (%p251) target = $region36
      $region35: #{down_conv_forward.3} parent=31 // pred_region
        %s254 = smul.u32 8, %s19
        %p255 = scmp.lt.s32.totalorder %s18, 1
        %s256 = scalar_select %p255, %s18, 1
        %p257 = scmp.lt.s32.totalorder %s254, 7
        %s258 = scalar_select %p257, %s254, 7
        %s259 = smul.addr %s256, 8
        %s260 = sadd.s32 %s258, %s259
        %s261 = smul.addr %s260, 8
        %s262 = scalar_lea.vmem %s1, %s261
      $region36: #{down_conv_forward.3} parent=31 // pred_fallthru
        _
    $region32: #{down_conv_forward.3} parent=5 // pred_fallthru
      _
  $region6: #{down_conv_forward.3} parent=0 // loop_footer
    %s11 = sadd.s32 1, %s7
  $region7: #{down_conv_forward.3} parent=0 // loop_footer_branch
    %6 = sbr.rel target = $region3
  $region8: #{down_conv_forward.3} parent=0 // loop_exit
    _

// kernel: down_conv_forward.2
$region0: #{down_conv_forward.2}
  #allocation0 [shape = 'u32[]', space=smem, size = 0x4, offset = 0x4, fixed_abs, tag = 'smem constant byte address 0x4 - core index']
  #allocation1 [shape = 'u32[72,128]{1,0:T(1,128)}', space=vmem, size = 0x9000, scoped, tag = 'internal scratch']
  #allocation2 [shape = 'f32[10,18,8]{2,1,0:T(8,128)}', space=vmem, size = 0x1e000, scoped, tag = 'scratch operand']
  %s0 = inlined_call_operand.vmem [shape: f32[2,20,18,4], index: 0, kind: input, shape index: {}]
  %s1 = inlined_call_operand.vmem [shape: f32[9,4,8], index: 1, kind: input, shape index: {}]
  %s2 = inlined_call_operand.vmem [shape: f32[1,8], index: 2, kind: input, shape index: {}]
  %s3 = inlined_call_operand.vmem [shape: f32[9,8,8], index: 3, kind: input, shape index: {}]
  %s4 = inlined_call_operand.vmem [shape: f32[1,8], index: 4, kind: input, shape index: {}]
  %s5 = inlined_call_operand.vmem [shape: f32[2,16,16,8], index: 5, kind: output, shape index: {}]
  %s6 = sld [smem:[#allocation0]]
  $region53: #{down_conv_forward.2} parent=0
    _
  %s8 = ssub.s32 1, %s6
  %s9 = scalar_select 0, %s8, %s6
  loop: start=0, step=1, limit=6
  $region2: #{down_conv_forward.2} parent=0 // loop_pre_header
    _
  $region3: #{down_conv_forward.2} parent=0 // loop_header
    %s11 = sphi 0, %s15
    %p12 = scmp.ge.s32.totalorder %s11, 6
    %s18 = sphi 0, %s30
    %s19 = sphi 0, %s26
    %s20 = sphi 0, %s18
    %s21 = sphi 0, %s19
    %s22 = sphi 0, %s20
    %s23 = sphi 0, %s21
    %s33 = sphi 0, %s35
    %s36 = sphi 0, %s33
    %s37 = sphi 0, %s36
    %s53 = sphi 0, %s37
    %s57 = sphi 0, %s57
    %s59 = sphi 0, %s57
    %s60 = sphi 0, %s59
    %s74 = sphi 0, %s60
    %s78 = sphi 0, %s78
    %s80 = sphi 0, %s78
    %s81 = sphi 0, %s80
    %s95 = sphi 0, %s81
    %s99 = sphi 0, %s99
    %s101 = sphi 0, %s99
    %s102 = sphi 0, %s101
    %s116 = sphi 0, %s102
    %s120 = sphi 0, %s120
    %s122 = sphi 0, %s120
    %s123 = sphi 0, %s122
    %s137 = sphi 0, %s123
    %s145 = sphi 0, %s147
    %s148 = sphi 0, %s145
    %s149 = sphi 0, %s148
    %s165 = sphi 0, %s149
  $region4: #{down_conv_forward.2} parent=0 // loop_header_branch
    %14 = sbr.rel (%p12) target = $region8
  $region5: #{down_conv_forward.2} parent=0 // loop_body
    %s16 = ssub.s32 %s11, 1
    %s17 = ssub.s32 %s11, 2
    %s24 = sadd.s32 1, %s19
    %p25 = scmp.ge.s32.totalorder %s24, 2
    %s26 = scalar_select %p25, 0, %s24
    %s27 = sadd.s32 1, %s18
    %s28 = scalar_select %p25, %s27, %s18
    %p29 = scmp.ge.s32.totalorder %s28, 2
    %s30 = scalar_select %p29, 0, %s28
    %s31 = ssub.s32 %s18, %s30
    %p32 = scmp.eq.s32.totalorder %s31, 0
    %s34 = sadd.s32 %s33, 1
    %s35 = scalar_select %p32, %s33, %s34
    %p38 = pneg %p32
    %p39 = scmp.eq.s32.totalorder %s11, 3
    %p40 = por %p38, %p39
    %p41 = scmp.ne.s32.totalorder %s33, %s36
    %p42 = scmp.eq.s32.totalorder %s11, 0
    %p43 = por %p41, %p42
    %p44 = scmp.ne.s32.totalorder %s33, %s36
    %p45 = scmp.eq.s32.totalorder %s16, 3
    %p46 = por %p44, %p45
    %p47 = scmp.ne.s32.totalorder %s36, %s37
    %p48 = scmp.eq.s32.totalorder %s16, 0
    %p49 = por %p47, %p48
    %p50 = scmp.ne.s32.totalorder %s36, %s37
    %p51 = scmp.eq.s32.totalorder %s17, 3
    %p52 = por %p50, %p51
    %p54 = scmp.ne.s32.totalorder %s37, %s53
    %p55 = scmp.eq.s32.totalorder %s17, 0
    %p56 = por %p54, %p55
    %s58 = sadd.s32 %s57, 1
    %p61 = scmp.eq.s32.totalorder %s11, 3
    %p62 = scmp.ne.s32.totalorder %s57, %s59
    %p63 = scmp.eq.s32.totalorder %s11, 0
    %p64 = por %p62, %p63
    %p65 = scmp.ne.s32.totalorder %s57, %s59
    %p66 = scmp.eq.s32.totalorder %s16, 3
    %p67 = por %p65, %p66
    %p68 = scmp.ne.s32.totalorder %s59, %s60
    %p69 = scmp.eq.s32.totalorder %s16, 0
    %p70 = por %p68, %p69
    %p71 = scmp.ne.s32.totalorder %s59, %s60
    %p72 = scmp.eq.s32.totalorder %s17, 3
    %p73 = por %p71, %p72
    %p75 = scmp.ne.s32.totalorder %s60, %s74
    %p76 = scmp.eq.s32.totalorder %s17, 0
    %p77 = por %p75, %p76
    %s79 = sadd.s32 %s78, 1
    %p82 = scmp.eq.s32.totalorder %s11, 3
    %p83 = scmp.ne.s32.totalorder %s78, %s80
    %p84 = scmp.eq.s32.totalorder %s11, 0
    %p85 = por %p83, %p84
    %p86 = scmp.ne.s32.totalorder %s78, %s80
    %p87 = scmp.eq.s32.totalorder %s16, 3
    %p88 = por %p86, %p87
    %p89 = scmp.ne.s32.totalorder %s80, %s81
    %p90 = scmp.eq.s32.totalorder %s16, 0
    %p91 = por %p89, %p90
    %p92 = scmp.ne.s32.totalorder %s80, %s81
    %p93 = scmp.eq.s32.totalorder %s17, 3
    %p94 = por %p92, %p93
    %p96 = scmp.ne.s32.totalorder %s81, %s95
    %p97 = scmp.eq.s32.totalorder %s17, 0
    %p98 = por %p96, %p97
    %s100 = sadd.s32 %s99, 1
    %p103 = scmp.eq.s32.totalorder %s11, 3
    %p104 = scmp.ne.s32.totalorder %s99, %s101
    %p105 = scmp.eq.s32.totalorder %s11, 0
    %p106 = por %p104, %p105
    %p107 = scmp.ne.s32.totalorder %s99, %s101
    %p108 = scmp.eq.s32.totalorder %s16, 3
    %p109 = por %p107, %p108
    %p110 = scmp.ne.s32.totalorder %s101, %s102
    %p111 = scmp.eq.s32.totalorder %s16, 0
    %p112 = por %p110, %p111
    %p113 = scmp.ne.s32.totalorder %s101, %s102
    %p114 = scmp.eq.s32.totalorder %s17, 3
    %p115 = por %p113, %p114
    %p117 = scmp.ne.s32.totalorder %s102, %s116
    %p118 = scmp.eq.s32.totalorder %s17, 0
    %p119 = por %p117, %p118
    %s121 = sadd.s32 %s120, 1
    %p124 = scmp.eq.s32.totalorder %s11, 3
    %p125 = scmp.ne.s32.totalorder %s120, %s122
    %p126 = scmp.eq.s32.totalorder %s11, 0
    %p127 = por %p125, %p126
    %p128 = scmp.ne.s32.totalorder %s120, %s122
    %p129 = scmp.eq.s32.totalorder %s16, 3
    %p130 = por %p128, %p129
    %p131 = scmp.ne.s32.totalorder %s122, %s123
    %p132 = scmp.eq.s32.totalorder %s16, 0
    %p133 = por %p131, %p132
    %p134 = scmp.ne.s32.totalorder %s122, %s123
    %p135 = scmp.eq.s32.totalorder %s17, 3
    %p136 = por %p134, %p135
    %p138 = scmp.ne.s32.totalorder %s123, %s137
    %p139 = scmp.eq.s32.totalorder %s17, 0
    %p140 = por %p138, %p139
    %s141 = ssub.s32 %s18, %s30
    %s142 = ssub.s32 %s19, %s26
    %s143 = sor.u32 %s141, %s142
    %p144 = scmp.eq.s32.totalorder %s143, 0
    %s146 = sadd.s32 %s145, 1
    %s147 = scalar_select %p144, %s145, %s146
    %p150 = pneg %p144
    %p151 = scmp.eq.s32.totalorder %s11, 3
    %p152 = por %p150, %p151
    %p153 = scmp.ne.s32.totalorder %s145, %s148
    %p154 = scmp.eq.s32.totalorder %s11, 0
    %p155 = por %p153, %p154
    %p156 = scmp.ne.s32.totalorder %s145, %s148
    %p157 = scmp.eq.s32.totalorder %s16, 3
    %p158 = por %p156, %p157
    %p159 = scmp.ne.s32.totalorder %s148, %s149
    %p160 = scmp.eq.s32.totalorder %s16, 0
    %p161 = por %p159, %p160
    %p162 = scmp.ne.s32.totalorder %s148, %s149
    %p163 = scmp.eq.s32.totalorder %s17, 3
    %p164 = por %p162, %p163
    %p166 = scmp.ne.s32.totalorder %s149, %s165
    %p167 = scmp.eq.s32.totalorder %s17, 0
    %p168 = por %p166, %p167
    %p169 = scmp.le.s32.totalorder 1, %s11
    %p170 = scmp.lt.s32.totalorder %s11, 5
    %p171 = pnand %p169, %p170
    %p172 = pneg %p171
    // Predicated region
    $region9: #{down_conv_forward.2} parent=5 // pred_check
      _
    $region10: #{down_conv_forward.2} parent=5 // pred_check_branch
      %174 = sbr.rel (%p171) target = $region12
    $region11: #{down_conv_forward.2} parent=5 // pred_region
      %s175 = ssub.s32 %s11, 1
      // Predicated region
      $region13: #{down_conv_forward.2} parent=11 // pred_check
        %p176 = pneg %p70
      $region14: #{down_conv_forward.2} parent=11 // pred_check_branch
        %178 = sbr.rel (%p176) target = $region16
      $region15: #{down_conv_forward.2} parent=11 // pred_region
        _
      $region16: #{down_conv_forward.2} parent=11 // pred_fallthru
        _
      // Predicated region
      $region17: #{down_conv_forward.2} parent=11 // pred_check
        %p179 = pneg %p91
      $region18: #{down_conv_forward.2} parent=11 // pred_check_branch
        %181 = sbr.rel (%p179) target = $region20
      $region19: #{down_conv_forward.2} parent=11 // pred_region
        _
      $region20: #{down_conv_forward.2} parent=11 // pred_fallthru
        _
      // Predicated region
      $region21: #{down_conv_forward.2} parent=11 // pred_check
        %p182 = pneg %p112
      $region22: #{down_conv_forward.2} parent=11 // pred_check_branch
        %184 = sbr.rel (%p182) target = $region24
      $region23: #{down_conv_forward.2} parent=11 // pred_region
        _
      $region24: #{down_conv_forward.2} parent=11 // pred_fallthru
        _
      // Predicated region
      $region25: #{down_conv_forward.2} parent=11 // pred_check
        %p185 = pneg %p133
      $region26: #{down_conv_forward.2} parent=11 // pred_check_branch
        %187 = sbr.rel (%p185) target = $region28
      $region27: #{down_conv_forward.2} parent=11 // pred_region
        _
      $region28: #{down_conv_forward.2} parent=11 // pred_fallthru
        _
    $region12: #{down_conv_forward.2} parent=5 // pred_fallthru
      _
    %p188 = scmp.lt.s32.totalorder %s11, 4
    // Predicated region
    $region29: #{down_conv_forward.2} parent=5 // pred_check
      %p189 = pneg %p188
    $region30: #{down_conv_forward.2} parent=5 // pred_check_branch
      %191 = sbr.rel (%p189) target = $region32
    $region31: #{down_conv_forward.2} parent=5 // pred_region
      // Predicated region
      $region33: #{down_conv_forward.2} parent=31 // pred_check
        %p192 = pneg %p43
      $region34: #{down_conv_forward.2} parent=31 // pred_check_branch
        %194 = sbr.rel (%p192) target = $region36
      $region35: #{down_conv_forward.2} parent=31 // pred_region
        %p195 = scmp.lt.s32.totalorder %s18, 1
        %s196 = scalar_select %p195, %s18, 1
        %s197 = smul.addr %s196, 60
        %s198 = smul.addr %s197, 8
        %s199 = scalar_lea.vmem %s0, %s198
      $region36: #{down_conv_forward.2} parent=31 // pred_fallthru
        _
    $region32: #{down_conv_forward.2} parent=5 // pred_fallthru
      _
    %p200 = scmp.le.s32.totalorder 1, %s11
    %p201 = scmp.lt.s32.totalorder %s11, 5
    %p202 = pnand %p200, %p201
    %p203 = pneg %p202
    // Predicated region
    $region37: #{down_conv_forward.2} parent=5 // pred_check
      _
    $region38: #{down_conv_forward.2} parent=5 // pred_check_branch
      %205 = sbr.rel (%p202) target = $region40
    $region39: #{down_conv_forward.2} parent=5 // pred_region
      %s206 = ssub.s32 %s11, 1
      %p207 = scmp.lt.s32.totalorder %s20, 1
      %s208 = scalar_select %p207, %s20, 1
      %s209 = smul.addr %s208, 60
      %s210 = smul.addr %s209, 8
      %s211 = scalar_lea.vmem %s0, %s210
      %p212 = pneg %p49
      %p213 = pneg %p46
      %p214 = pneg %p70
      %p215 = pneg %p67
      %p216 = pneg %p91
      %p217 = pneg %p88
      %p218 = pneg %p112
      %p219 = pneg %p109
      %p220 = pneg %p133
      %p221 = pneg %p130
      %p222 = pneg %p161
      %p223 = pneg %p158
      %s224 = smul.u32 8, %s21
      %p225 = scmp.lt.s32.totalorder %s20, 1
      %s226 = scalar_select %p225, %s20, 1
      %p227 = scmp.lt.s32.totalorder %s224, 15
      %s228 = scalar_select %p227, %s224, 15
      %s229 = smul.addr %s228, 2
      %s230 = smul.addr %s226, 32
      %s231 = sadd.s32 %s229, %s230
      %s232 = smul.addr %s231, 8
      %s233 = scalar_lea.vmem %s5, %s232
      %p234 = scmp.lt.s32.totalorder %s20, 1
      %s235 = scalar_select %p234, %s20, 1
      %s236 = smul.addr %s235, 60
      %s237 = smul.addr %s236, 8
      %s238 = scalar_lea.vmem %s0, %s237
      %s239 = smul.u32 8, %s21
      %p240 = scmp.lt.s32.totalorder %s20, 1
      %s241 = scalar_select %p240, %s20, 1
      %p242 = scmp.lt.s32.totalorder %s239, 15
      %s243 = scalar_select %p242, %s239, 15
      %s244 = smul.addr %s243, 2
      %s245 = smul.addr %s241, 32
      %s246 = sadd.s32 %s244, %s245
      %s247 = smul.addr %s246, 8
      %s248 = scalar_lea.vmem %s5, %s247
      %s249 = smul.u32 8, %s21
      %s250 = smul.u32 %s21, 8
      %s251 = smul.u32 %s250, 24
      %s252 = scalar_lea.vmem %s238, %s251
      %v253 = vld [vmem:[%s252] sm:$0xff]
      %v254 = vld [vmem:[%s252 + $0x8] sm:$0xff]
      %v255 = vld [vmem:[%s252 + $0x18] sm:$0xff]
      %v256 = vld [vmem:[%s252 + $0x20] sm:$0xff]
      %v257 = vld [vmem:[%s252 + $0x30] sm:$0xff]
      %v258 = vld [vmem:[%s252 + $0x38] sm:$0xff]
      %v259 = vld [vmem:[%s252 + $0x48] sm:$0xff]
      %v260 = vld [vmem:[%s252 + $0x50] sm:$0xff]
      %v261 = vld [vmem:[%s252 + $0x60] sm:$0xff]
      %v262 = vld [vmem:[%s252 + $0x68] sm:$0xff]
      %v263 = vld [vmem:[%s252 + $0x78] sm:$0xff]
      %v264 = vld [vmem:[%s252 + $0x80] sm:$0xff]
      %v265 = vld [vmem:[%s252 + $0x90] sm:$0xff]
      %v266 = vld [vmem:[%s252 + $0x98] sm:$0xff]
      %v267 = vld [vmem:[%s252 + $0xa8] sm:$0xff]
      %v268 = vld [vmem:[%s252 + $0xb0] sm:$0xff]
      %v269 = vld [vmem:[%s252 + $0xc0] sm:$0xff]
      %v270 = vld [vmem:[%s252 + $0xc8] sm:$0xff]
      %v271 = vld [vmem:[%s252 + $0xd8] sm:$0xff]
      %v272 = vld [vmem:[%s252 + $0xe0] sm:$0xff]
      %v273 = vld [vmem:[%s1] sm:$0xf]
      %v274 = vld [vmem:[%s252 + $0x1] sm:$0xff]
      %v275 = vld [vmem:[%s252 + $0x9] sm:$0xff]
      %v276 = vld [vmem:[%s252 + $0x19] sm:$0xff]
      %v277 = vld [vmem:[%s252 + $0x21] sm:$0xff]
      %v278 = vld [vmem:[%s252 + $0x31] sm:$0xff]
      %v279 = vld [vmem:[%s252 + $0x39] sm:$0xff]
      %v280 = vld [vmem:[%s252 + $0x49] sm:$0xff]
      %v281 = vld [vmem:[%s252 + $0x51] sm:$0xff]
      %v282 = vld [vmem:[%s252 + $0x61] sm:$0xff]
      %v283 = vld [vmem:[%s252 + $0x69] sm:$0xff]
      %v284 = vld [vmem:[%s252 + $0x79] sm:$0xff]
      %v285 = vld [vmem:[%s252 + $0x81] sm:$0xff]
      %v286 = vld [vmem:[%s252 + $0x91] sm:$0xff]
      %v287 = vld [vmem:[%s252 + $0x99] sm:$0xff]
      %v288 = vld [vmem:[%s252 + $0xa9] sm:$0xff]
      %v289 = vld [vmem:[%s252 + $0xb1] sm:$0xff]
      %v290 = vld [vmem:[%s252 + $0xc1] sm:$0xff]
      %v291 = vld [vmem:[%s252 + $0xc9] sm:$0xff]
      %v292 = vld [vmem:[%s252 + $0xd9] sm:$0xff]
      %v293 = vld [vmem:[%s252 + $0xe1] sm:$0xff]
      %s294 = scalar_lea.vmem %s1, 4
      %v295 = vld [vmem:[%s294] sm:$0xf]
      %vm296 = vcmask 31744
      %v298 = vsel %vm296, %v274, 0
      %v301 = vsel %vm296, %v275, 0
      %v304 = vsel %vm296, %v276, 0
      %v307 = vsel %vm296, %v277, 0
      %v310 = vsel %vm296, %v278, 0
      %v313 = vsel %vm296, %v279, 0
      %v316 = vsel %vm296, %v280, 0
      %v319 = vsel %vm296, %v281, 0
      %v322 = vsel %vm296, %v282, 0
      %v325 = vsel %vm296, %v283, 0
      %v328 = vsel %vm296, %v284, 0
      %v331 = vsel %vm296, %v285, 0
      %v334 = vsel %vm296, %v286, 0
      %v337 = vsel %vm296, %v287, 0
      %v340 = vsel %vm296, %v288, 0
      %v343 = vsel %vm296, %v289, 0
      %v346 = vsel %vm296, %v290, 0
      %v349 = vsel %vm296, %v291, 0
      %v352 = vsel %vm296, %v292, 0
      %v355 = vsel %vm296, %v293, 0
      %vm357 = vcmask 1043456
      %v359 = vsel %vm357, %v295, 0
      %361 = vmatpush.msra.mxu0 0.0
      %362 = vmatpush.msra.mxu0 0.0
      %363 = vmatpush.msra.mxu0 0.0
      %364 = vmatpush.msra.mxu0 0.0
      %365 = vmatpush.msra.mxu0 0.0
      %366 = vmatpush.msra.mxu0 0.0
      %367 = vmatpush.msra.mxu0 0.0
      %368 = vmatpush.msra.mxu0 0.0
      %369 = vmatpush.msra.mxu0 0.0
      %370 = vmatpush.msra.mxu0 0.0
      %371 = vmatpush.msra.mxu0 0.0
      %372 = vmatpush.msra.mxu0 0.0
      %373 = vmatpush.msra.mxu0 0.0
      %374 = vmatpush.msra.mxu0 0.0
      %375 = vmatpush.msra.mxu0 0.0
      %376 = vmatpush.msra.mxu0 %v359
      %377 = vmatmul.f32.gmra.mxu0 %v298
      %v378 = vpop.f32.mrf.mxu0
      %v379 = vadd.f32 0.0, %v378
      %380 = vmatmul.f32.gmra.mxu0 %v301
      %v381 = vpop.f32.mrf.mxu0
      %v382 = vadd.f32 0.0, %v381
      %383 = vmatmul.f32.gmra.mxu0 %v304
      %v384 = vpop.f32.mrf.mxu0
      %v385 = vadd.f32 0.0, %v384
      %386 = vmatmul.f32.gmra.mxu0 %v307
      %v387 = vpop.f32.mrf.mxu0
      %v388 = vadd.f32 0.0, %v387
      %389 = vmatmul.f32.gmra.mxu0 %v310
      %v390 = vpop.f32.mrf.mxu0
      %v391 = vadd.f32 0.0, %v390
      %392 = vmatmul.f32.gmra.mxu0 %v313
      %v393 = vpop.f32.mrf.mxu0
      %v394 = vadd.f32 0.0, %v393
      %395 = vmatmul.f32.gmra.mxu0 %v316
      %v396 = vpop.f32.mrf.mxu0
      %v397 = vadd.f32 0.0, %v396
      %398 = vmatmul.f32.gmra.mxu0 %v319
      %v399 = vpop.f32.mrf.mxu0
      %v400 = vadd.f32 0.0, %v399
      %401 = vmatmul.f32.gmra.mxu0 %v322
      %v402 = vpop.f32.mrf.mxu0
      %v403 = vadd.f32 0.0, %v402
      %404 = vmatmul.f32.gmra.mxu0 %v325
      %v405 = vpop.f32.mrf.mxu0
      %v406 = vadd.f32 0.0, %v405
      %407 = vmatmul.f32.gmra.mxu0 %v328
      %v408 = vpop.f32.mrf.mxu0
      %v409 = vadd.f32 0.0, %v408
      %410 = vmatmul.f32.gmra.mxu0 %v331
      %v411 = vpop.f32.mrf.mxu0
      %v412 = vadd.f32 0.0, %v411
      %413 = vmatmul.f32.gmra.mxu0 %v334
      %v414 = vpop.f32.mrf.mxu0
      %v415 = vadd.f32 0.0, %v414
      %416 = vmatmul.f32.gmra.mxu0 %v337
      %v417 = vpop.f32.mrf.mxu0
      %v418 = vadd.f32 0.0, %v417
      %419 = vmatmul.f32.gmra.mxu0 %v340
      %v420 = vpop.f32.mrf.mxu0
      %v421 = vadd.f32 0.0, %v420
      %422 = vmatmul.f32.gmra.mxu0 %v343
      %v423 = vpop.f32.mrf.mxu0
      %v424 = vadd.f32 0.0, %v423
      %425 = vmatmul.f32.gmra.mxu0 %v346
      %v426 = vpop.f32.mrf.mxu0
      %v427 = vadd.f32 0.0, %v426
      %428 = vmatmul.f32.gmra.mxu0 %v349
      %v429 = vpop.f32.mrf.mxu0
      %v430 = vadd.f32 0.0, %v429
      %431 = vmatmul.f32.gmra.mxu0 %v352
      %v432 = vpop.f32.mrf.mxu0
      %v433 = vadd.f32 0.0, %v432
      %434 = vmatmul.f32.gmra.mxu0 %v355
      %v435 = vpop.f32.mrf.mxu0
      %v436 = vadd.f32 0.0, %v435
      %437 = vdwg.mxu0
      %v439 = vsel %vm296, %v253, 0
      %v442 = vsel %vm296, %v254, 0
      %v445 = vsel %vm296, %v255, 0
      %v448 = vsel %vm296, %v256, 0
      %v451 = vsel %vm296, %v257, 0
      %v454 = vsel %vm296, %v258, 0
      %v457 = vsel %vm296, %v259, 0
      %v460 = vsel %vm296, %v260, 0
      %v463 = vsel %vm296, %v261, 0
      %v466 = vsel %vm296, %v262, 0
      %v469 = vsel %vm296, %v263, 0
      %v472 = vsel %vm296, %v264, 0
      %v475 = vsel %vm296, %v265, 0
      %v478 = vsel %vm296, %v266, 0
      %v481 = vsel %vm296, %v267, 0
      %v484 = vsel %vm296, %v268, 0
      %v487 = vsel %vm296, %v269, 0
      %v490 = vsel %vm296, %v270, 0
      %v493 = vsel %vm296, %v271, 0
      %v496 = vsel %vm296, %v272, 0
      %v499 = vsel %vm357, %v273, 0
      %501 = vmatpush.msra.mxu0 0.0
      %502 = vmatpush.msra.mxu0 0.0
      %503 = vmatpush.msra.mxu0 0.0
      %504 = vmatpush.msra.mxu0 0.0
      %505 = vmatpush.msra.mxu0 0.0
      %506 = vmatpush.msra.mxu0 0.0
      %507 = vmatpush.msra.mxu0 0.0
      %508 = vmatpush.msra.mxu0 0.0
      %509 = vmatpush.msra.mxu0 0.0
      %510 = vmatpush.msra.mxu0 0.0
      %511 = vmatpush.msra.mxu0 0.0
      %512 = vmatpush.msra.mxu0 0.0
      %513 = vmatpush.msra.mxu0 0.0
      %514 = vmatpush.msra.mxu0 0.0
      %515 = vmatpush.msra.mxu0 0.0
      %516 = vmatpush.msra.mxu0 %v499
      %517 = vmatmul.f32.gmra.mxu0 %v439
      %v518 = vpop.f32.mrf.mxu0
      %v519 = vadd.f32 %v379, %v518
      %520 = vmatmul.f32.gmra.mxu0 %v442
      %v521 = vpop.f32.mrf.mxu0
      %v522 = vadd.f32 %v382, %v521
      %523 = vmatmul.f32.gmra.mxu0 %v445
      %v524 = vpop.f32.mrf.mxu0
      %v525 = vadd.f32 %v385, %v524
      %526 = vmatmul.f32.gmra.mxu0 %v448
      %v527 = vpop.f32.mrf.mxu0
      %v528 = vadd.f32 %v388, %v527
      %529 = vmatmul.f32.gmra.mxu0 %v451
      %v530 = vpop.f32.mrf.mxu0
      %v531 = vadd.f32 %v391, %v530
      %532 = vmatmul.f32.gmra.mxu0 %v454
      %v533 = vpop.f32.mrf.mxu0
      %v534 = vadd.f32 %v394, %v533
      %535 = vmatmul.f32.gmra.mxu0 %v457
      %v536 = vpop.f32.mrf.mxu0
      %v537 = vadd.f32 %v397, %v536
      %538 = vmatmul.f32.gmra.mxu0 %v460
      %v539 = vpop.f32.mrf.mxu0
      %v540 = vadd.f32 %v400, %v539
      %541 = vmatmul.f32.gmra.mxu0 %v463
      %v542 = vpop.f32.mrf.mxu0
      %v543 = vadd.f32 %v403, %v542
      %544 = vmatmul.f32.gmra.mxu0 %v466
      %v545 = vpop.f32.mrf.mxu0
      %v546 = vadd.f32 %v406, %v545
      %547 = vmatmul.f32.gmra.mxu0 %v469
      %v548 = vpop.f32.mrf.mxu0
      %v549 = vadd.f32 %v409, %v548
      %550 = vmatmul.f32.gmra.mxu0 %v472
      %v551 = vpop.f32.mrf.mxu0
      %v552 = vadd.f32 %v412, %v551
      %553 = vmatmul.f32.gmra.mxu0 %v475
      %v554 = vpop.f32.mrf.mxu0
      %v555 = vadd.f32 %v415, %v554
      %556 = vmatmul.f32.gmra.mxu0 %v478
      %v557 = vpop.f32.mrf.mxu0
      %v558 = vadd.f32 %v418, %v557
      %559 = vmatmul.f32.gmra.mxu0 %v481
      %v560 = vpop.f32.mrf.mxu0
      %v561 = vadd.f32 %v421, %v560
      %562 = vmatmul.f32.gmra.mxu0 %v484
      %v563 = vpop.f32.mrf.mxu0
      %v564 = vadd.f32 %v424, %v563
      %565 = vmatmul.f32.gmra.mxu0 %v487
      %v566 = vpop.f32.mrf.mxu0
      %v567 = vadd.f32 %v427, %v566
      %568 = vmatmul.f32.gmra.mxu0 %v490
      %v569 = vpop.f32.mrf.mxu0
      %v570 = vadd.f32 %v430, %v569
      %571 = vmatmul.f32.gmra.mxu0 %v493
      %v572 = vpop.f32.mrf.mxu0
      %v573 = vadd.f32 %v433, %v572
      %574 = vmatmul.f32.gmra.mxu0 %v496
      %v575 = vpop.f32.mrf.mxu0
      %v576 = vadd.f32 %v436, %v575
      %577 = vdwg.mxu0
      %v578 = vld [vmem:[%s252 + $0x2] sm:$0xff]
      %v579 = vld [vmem:[%s252 + $0xa] sm:$0xff]
      %v580 = vld [vmem:[%s252 + $0x1a] sm:$0xff]
      %v581 = vld [vmem:[%s252 + $0x22] sm:$0xff]
      %v582 = vld [vmem:[%s252 + $0x32] sm:$0xff]
      %v583 = vld [vmem:[%s252 + $0x3a] sm:$0xff]
      %v584 = vld [vmem:[%s252 + $0x4a] sm:$0xff]
      %v585 = vld [vmem:[%s252 + $0x52] sm:$0xff]
      %v586 = vld [vmem:[%s252 + $0x62] sm:$0xff]
      %v587 = vld [vmem:[%s252 + $0x6a] sm:$0xff]
      %v588 = vld [vmem:[%s252 + $0x7a] sm:$0xff]
      %v589 = vld [vmem:[%s252 + $0x82] sm:$0xff]
      %v590 = vld [vmem:[%s252 + $0x92] sm:$0xff]
      %v591 = vld [vmem:[%s252 + $0x9a] sm:$0xff]
      %v592 = vld [vmem:[%s252 + $0xaa] sm:$0xff]
      %v593 = vld [vmem:[%s252 + $0xb2] sm:$0xff]
      %v594 = vld [vmem:[%s252 + $0xc2] sm:$0xff]
      %v595 = vld [vmem:[%s252 + $0xca] sm:$0xff]
      %v596 = vld [vmem:[%s252 + $0xda] sm:$0xff]
      %v597 = vld [vmem:[%s252 + $0xe2] sm:$0xff]
      %s598 = scalar_lea.vmem %s1, 8
      %v599 = vld [vmem:[%s598] sm:$0xf]
      %v601 = vsel %vm296, %v578, 0
      %v604 = vsel %vm296, %v579, 0
      %v607 = vsel %vm296, %v580, 0
      %v610 = vsel %vm296, %v581, 0
      %v613 = vsel %vm296, %v582, 0
      %v616 = vsel %vm296, %v583, 0
      %v619 = vsel %vm296, %v584, 0
      %v622 = vsel %vm296, %v585, 0
      %v625 = vsel %vm296, %v586, 0
      %v628 = vsel %vm296, %v587, 0
      %v631 = vsel %vm296, %v588, 0
      %v634 = vsel %vm296, %v589, 0
      %v637 = vsel %vm296, %v590, 0
      %v640 = vsel %vm296, %v591, 0
      %v643 = vsel %vm296, %v592, 0
      %v646 = vsel %vm296, %v593, 0
      %v649 = vsel %vm296, %v594, 0
      %v652 = vsel %vm296, %v595, 0
      %v655 = vsel %vm296, %v596, 0
      %v658 = vsel %vm296, %v597, 0
      %v661 = vsel %vm357, %v599, 0
      %663 = vmatpush.msra.mxu0 0.0
      %664 = vmatpush.msra.mxu0 0.0
      %665 = vmatpush.msra.mxu0 0.0
      %666 = vmatpush.msra.mxu0 0.0
      %667 = vmatpush.msra.mxu0 0.0
      %668 = vmatpush.msra.mxu0 0.0
      %669 = vmatpush.msra.mxu0 0.0
      %670 = vmatpush.msra.mxu0 0.0
      %671 = vmatpush.msra.mxu0 0.0
      %672 = vmatpush.msra.mxu0 0.0
      %673 = vmatpush.msra.mxu0 0.0
      %674 = vmatpush.msra.mxu0 0.0
      %675 = vmatpush.msra.mxu0 0.0
      %676 = vmatpush.msra.mxu0 0.0
      %677 = vmatpush.msra.mxu0 0.0
      %678 = vmatpush.msra.mxu0 %v661
      %679 = vmatmul.f32.gmra.mxu0 %v601
      %v680 = vpop.f32.mrf.mxu0
      %v681 = vadd.f32 0.0, %v680
      %682 = vmatmul.f32.gmra.mxu0 %v604
      %v683 = vpop.f32.mrf.mxu0
      %v684 = vadd.f32 0.0, %v683
      %685 = vmatmul.f32.gmra.mxu0 %v607
      %v686 = vpop.f32.mrf.mxu0
      %v687 = vadd.f32 0.0, %v686
      %688 = vmatmul.f32.gmra.mxu0 %v610
      %v689 = vpop.f32.mrf.mxu0
      %v690 = vadd.f32 0.0, %v689
      %691 = vmatmul.f32.gmra.mxu0 %v613
      %v692 = vpop.f32.mrf.mxu0
      %v693 = vadd.f32 0.0, %v692
      %694 = vmatmul.f32.gmra.mxu0 %v616
      %v695 = vpop.f32.mrf.mxu0
      %v696 = vadd.f32 0.0, %v695
      %697 = vmatmul.f32.gmra.mxu0 %v619
      %v698 = vpop.f32.mrf.mxu0
      %v699 = vadd.f32 0.0, %v698
      %700 = vmatmul.f32.gmra.mxu0 %v622
      %v701 = vpop.f32.mrf.mxu0
      %v702 = vadd.f32 0.0, %v701
      %703 = vmatmul.f32.gmra.mxu0 %v625
      %v704 = vpop.f32.mrf.mxu0
      %v705 = vadd.f32 0.0, %v704
      %706 = vmatmul.f32.gmra.mxu0 %v628
      %v707 = vpop.f32.mrf.mxu0
      %v708 = vadd.f32 0.0, %v707
      %709 = vmatmul.f32.gmra.mxu0 %v631
      %v710 = vpop.f32.mrf.mxu0
      %v711 = vadd.f32 0.0, %v710
      %712 = vmatmul.f32.gmra.mxu0 %v634
      %v713 = vpop.f32.mrf.mxu0
      %v714 = vadd.f32 0.0, %v713
      %715 = vmatmul.f32.gmra.mxu0 %v637
      %v716 = vpop.f32.mrf.mxu0
      %v717 = vadd.f32 0.0, %v716
      %718 = vmatmul.f32.gmra.mxu0 %v640
      %v719 = vpop.f32.mrf.mxu0
      %v720 = vadd.f32 0.0, %v719
      %721 = vmatmul.f32.gmra.mxu0 %v643
      %v722 = vpop.f32.mrf.mxu0
      %v723 = vadd.f32 0.0, %v722
      %724 = vmatmul.f32.gmra.mxu0 %v646
      %v725 = vpop.f32.mrf.mxu0
      %v726 = vadd.f32 0.0, %v725
      %727 = vmatmul.f32.gmra.mxu0 %v649
      %v728 = vpop.f32.mrf.mxu0
      %v729 = vadd.f32 0.0, %v728
      %730 = vmatmul.f32.gmra.mxu0 %v652
      %v731 = vpop.f32.mrf.mxu0
      %v732 = vadd.f32 0.0, %v731
      %733 = vmatmul.f32.gmra.mxu0 %v655
      %v734 = vpop.f32.mrf.mxu0
      %v735 = vadd.f32 0.0, %v734
      %736 = vmatmul.f32.gmra.mxu0 %v658
      %v737 = vpop.f32.mrf.mxu0
      %v738 = vadd.f32 0.0, %v737
      %739 = vdwg.mxu0
      %v740 = vadd.f32 %v519, %v681
      %v741 = vadd.f32 %v522, %v684
      %v742 = vadd.f32 %v525, %v687
      %v743 = vadd.f32 %v528, %v690
      %v744 = vadd.f32 %v531, %v693
      %v745 = vadd.f32 %v534, %v696
      %v746 = vadd.f32 %v537, %v699
      %v747 = vadd.f32 %v540, %v702
      %v748 = vadd.f32 %v543, %v705
      %v749 = vadd.f32 %v546, %v708
      %v750 = vadd.f32 %v549, %v711
      %v751 = vadd.f32 %v552, %v714
      %v752 = vadd.f32 %v555, %v717
      %v753 = vadd.f32 %v558, %v720
      %v754 = vadd.f32 %v561, %v723
      %v755 = vadd.f32 %v564, %v726
      %v756 = vadd.f32 %v567, %v729
      %v757 = vadd.f32 %v570, %v732
      %v758 = vadd.f32 %v573, %v735
      %v759 = vadd.f32 %v576, %v738
      %s760 = sadd.s32 %s250, 1
      %s761 = smul.u32 %s760, 24
      %s762 = scalar_lea.vmem %s238, %s761
      %v763 = vld [vmem:[%s762] sm:$0xff]
      %v764 = vld [vmem:[%s762 + $0x8] sm:$0xff]
      %v765 = vld [vmem:[%s762 + $0x18] sm:$0xff]
      %v766 = vld [vmem:[%s762 + $0x20] sm:$0xff]
      %v767 = vld [vmem:[%s762 + $0x30] sm:$0xff]
      %v768 = vld [vmem:[%s762 + $0x38] sm:$0xff]
      %v769 = vld [vmem:[%s762 + $0x48] sm:$0xff]
      %v770 = vld [vmem:[%s762 + $0x50] sm:$0xff]
      %v771 = vld [vmem:[%s762 + $0x60] sm:$0xff]
      %v772 = vld [vmem:[%s762 + $0x68] sm:$0xff]
      %v773 = vld [vmem:[%s762 + $0x78] sm:$0xff]
      %v774 = vld [vmem:[%s762 + $0x80] sm:$0xff]
      %v775 = vld [vmem:[%s762 + $0x90] sm:$0xff]
      %v776 = vld [vmem:[%s762 + $0x98] sm:$0xff]
      %v777 = vld [vmem:[%s762 + $0xa8] sm:$0xff]
      %v778 = vld [vmem:[%s762 + $0xb0] sm:$0xff]
      %v779 = vld [vmem:[%s762 + $0xc0] sm:$0xff]
      %v780 = vld [vmem:[%s762 + $0xc8] sm:$0xff]
      %v781 = vld [vmem:[%s762 + $0xd8] sm:$0xff]
      %v782 = vld [vmem:[%s762 + $0xe0] sm:$0xff]
      %s783 = scalar_lea.vmem %s1, 12
      %v784 = vld [vmem:[%s783] sm:$0xf]
      %v786 = vsel %vm296, %v763, 0
      %v789 = vsel %vm296, %v764, 0
      %v792 = vsel %vm296, %v765, 0
      %v795 = vsel %vm296, %v766, 0
      %v798 = vsel %vm296, %v767, 0
      %v801 = vsel %vm296, %v768, 0
      %v804 = vsel %vm296, %v769, 0
      %v807 = vsel %vm296, %v770, 0
      %v810 = vsel %vm296, %v771, 0
      %v813 = vsel %vm296, %v772, 0
      %v816 = vsel %vm296, %v773, 0
      %v819 = vsel %vm296, %v774, 0
      %v822 = vsel %vm296, %v775, 0
      %v825 = vsel %vm296, %v776, 0
      %v828 = vsel %vm296, %v777, 0
      %v831 = vsel %vm296, %v778, 0
      %v834 = vsel %vm296, %v779, 0
      %v837 = vsel %vm296, %v780, 0
      %v840 = vsel %vm296, %v781, 0
      %v843 = vsel %vm296, %v782, 0
      %v846 = vsel %vm357, %v784, 0
      %848 = vmatpush.msra.mxu0 0.0
      %849 = vmatpush.msra.mxu0 0.0
      %850 = vmatpush.msra.mxu0 0.0
      %851 = vmatpush.msra.mxu0 0.0
      %852 = vmatpush.msra.mxu0 0.0
      %853 = vmatpush.msra.mxu0 0.0
      %854 = vmatpush.msra.mxu0 0.0
      %855 = vmatpush.msra.mxu0 0.0
      %856 = vmatpush.msra.mxu0 0.0
      %857 = vmatpush.msra.mxu0 0.0
      %858 = vmatpush.msra.mxu0 0.0
      %859 = vmatpush.msra.mxu0 0.0
      %860 = vmatpush.msra.mxu0 0.0
      %861 = vmatpush.msra.mxu0 0.0
      %862 = vmatpush.msra.mxu0 0.0
      %863 = vmatpush.msra.mxu0 %v846
      %864 = vmatmul.f32.gmra.mxu0 %v786
      %v865 = vpop.f32.mrf.mxu0
      %v866 = vadd.f32 0.0, %v865
      %867 = vmatmul.f32.gmra.mxu0 %v789
      %v868 = vpop.f32.mrf.mxu0
      %v869 = vadd.f32 0.0, %v868
      %870 = vmatmul.f32.gmra.mxu0 %v792
      %v871 = vpop.f32.mrf.mxu0
      %v872 = vadd.f32 0.0, %v871
      %873 = vmatmul.f32.gmra.mxu0 %v795
      %v874 = vpop.f32.mrf.mxu0
      %v875 = vadd.f32 0.0, %v874
      %876 = vmatmul.f32.gmra.mxu0 %v798
      %v877 = vpop.f32.mrf.mxu0
      %v878 = vadd.f32 0.0, %v877
      %879 = vmatmul.f32.gmra.mxu0 %v801
      %v880 = vpop.f32.mrf.mxu0
      %v881 = vadd.f32 0.0, %v880
      %882 = vmatmul.f32.gmra.mxu0 %v804
      %v883 = vpop.f32.mrf.mxu0
      %v884 = vadd.f32 0.0, %v883
      %885 = vmatmul.f32.gmra.mxu0 %v807
      %v886 = vpop.f32.mrf.mxu0
      %v887 = vadd.f32 0.0, %v886
      %888 = vmatmul.f32.gmra.mxu0 %v810
      %v889 = vpop.f32.mrf.mxu0
      %v890 = vadd.f32 0.0, %v889
      %891 = vmatmul.f32.gmra.mxu0 %v813
      %v892 = vpop.f32.mrf.mxu0
      %v893 = vadd.f32 0.0, %v892
      %894 = vmatmul.f32.gmra.mxu0 %v816
      %v895 = vpop.f32.mrf.mxu0
      %v896 = vadd.f32 0.0, %v895
      %897 = vmatmul.f32.gmra.mxu0 %v819
      %v898 = vpop.f32.mrf.mxu0
      %v899 = vadd.f32 0.0, %v898
      %900 = vmatmul.f32.gmra.mxu0 %v822
      %v901 = vpop.f32.mrf.mxu0
      %v902 = vadd.f32 0.0, %v901
      %903 = vmatmul.f32.gmra.mxu0 %v825
      %v904 = vpop.f32.mrf.mxu0
      %v905 = vadd.f32 0.0, %v904
      %906 = vmatmul.f32.gmra.mxu0 %v828
      %v907 = vpop.f32.mrf.mxu0
      %v908 = vadd.f32 0.0, %v907
      %909 = vmatmul.f32.gmra.mxu0 %v831
      %v910 = vpop.f32.mrf.mxu0
      %v911 = vadd.f32 0.0, %v910
      %912 = vmatmul.f32.gmra.mxu0 %v834
      %v913 = vpop.f32.mrf.mxu0
      %v914 = vadd.f32 0.0, %v913
      %915 = vmatmul.f32.gmra.mxu0 %v837
      %v916 = vpop.f32.mrf.mxu0
      %v917 = vadd.f32 0.0, %v916
      %918 = vmatmul.f32.gmra.mxu0 %v840
      %v919 = vpop.f32.mrf.mxu0
      %v920 = vadd.f32 0.0, %v919
      %921 = vmatmul.f32.gmra.mxu0 %v843
      %v922 = vpop.f32.mrf.mxu0
      %v923 = vadd.f32 0.0, %v922
      %924 = vdwg.mxu0
      %v925 = vadd.f32 %v740, %v866
      %v926 = vadd.f32 %v741, %v869
      %v927 = vadd.f32 %v742, %v872
      %v928 = vadd.f32 %v743, %v875
      %v929 = vadd.f32 %v744, %v878
      %v930 = vadd.f32 %v745, %v881
      %v931 = vadd.f32 %v746, %v884
      %v932 = vadd.f32 %v747, %v887
      %v933 = vadd.f32 %v748, %v890
      %v934 = vadd.f32 %v749, %v893
      %v935 = vadd.f32 %v750, %v896
      %v936 = vadd.f32 %v751, %v899
      %v937 = vadd.f32 %v752, %v902
      %v938 = vadd.f32 %v753, %v905
      %v939 = vadd.f32 %v754, %v908
      %v940 = vadd.f32 %v755, %v911
      %v941 = vadd.f32 %v756, %v914
      %v942 = vadd.f32 %v757, %v917
      %v943 = vadd.f32 %v758, %v920
      %v944 = vadd.f32 %v759, %v923
      %v945 = vld [vmem:[%s762 + $0x1] sm:$0xff]
      %v946 = vld [vmem:[%s762 + $0x9] sm:$0xff]
      %v947 = vld [vmem:[%s762 + $0x19] sm:$0xff]
      %v948 = vld [vmem:[%s762 + $0x21] sm:$0xff]
      %v949 = vld [vmem:[%s762 + $0x31] sm:$0xff]
      %v950 = vld [vmem:[%s762 + $0x39] sm:$0xff]
      %v951 = vld [vmem:[%s762 + $0x49] sm:$0xff]
      %v952 = vld [vmem:[%s762 + $0x51] sm:$0xff]
      %v953 = vld [vmem:[%s762 + $0x61] sm:$0xff]
      %v954 = vld [vmem:[%s762 + $0x69] sm:$0xff]
      %v955 = vld [vmem:[%s762 + $0x79] sm:$0xff]
      %v956 = vld [vmem:[%s762 + $0x81] sm:$0xff]
      %v957 = vld [vmem:[%s762 + $0x91] sm:$0xff]
      %v958 = vld [vmem:[%s762 + $0x99] sm:$0xff]
      %v959 = vld [vmem:[%s762 + $0xa9] sm:$0xff]
      %v960 = vld [vmem:[%s762 + $0xb1] sm:$0xff]
      %v961 = vld [vmem:[%s762 + $0xc1] sm:$0xff]
      %v962 = vld [vmem:[%s762 + $0xc9] sm:$0xff]
      %v963 = vld [vmem:[%s762 + $0xd9] sm:$0xff]
      %v964 = vld [vmem:[%s762 + $0xe1] sm:$0xff]
      %s965 = scalar_lea.vmem %s1, 16
      %v966 = vld [vmem:[%s965] sm:$0xf]
      %v968 = vsel %vm296, %v945, 0
      %v971 = vsel %vm296, %v946, 0
      %v974 = vsel %vm296, %v947, 0
      %v977 = vsel %vm296, %v948, 0
      %v980 = vsel %vm296, %v949, 0
      %v983 = vsel %vm296, %v950, 0
      %v986 = vsel %vm296, %v951, 0
      %v989 = vsel %vm296, %v952, 0
      %v992 = vsel %vm296, %v953, 0
      %v995 = vsel %vm296, %v954, 0
      %v998 = vsel %vm296, %v955, 0
      %v1001 = vsel %vm296, %v956, 0
      %v1004 = vsel %vm296, %v957, 0
      %v1007 = vsel %vm296, %v958, 0
      %v1010 = vsel %vm296, %v959, 0
      %v1013 = vsel %vm296, %v960, 0
      %v1016 = vsel %vm296, %v961, 0
      %v1019 = vsel %vm296, %v962, 0
      %v1022 = vsel %vm296, %v963, 0
      %v1025 = vsel %vm296, %v964, 0
      %v1028 = vsel %vm357, %v966, 0
      %1030 = vmatpush.msra.mxu0 0.0
      %1031 = vmatpush.msra.mxu0 0.0
      %1032 = vmatpush.msra.mxu0 0.0
      %1033 = vmatpush.msra.mxu0 0.0
      %1034 = vmatpush.msra.mxu0 0.0
      %1035 = vmatpush.msra.mxu0 0.0
      %1036 = vmatpush.msra.mxu0 0.0
      %1037 = vmatpush.msra.mxu0 0.0
      %1038 = vmatpush.msra.mxu0 0.0
      %1039 = vmatpush.msra.mxu0 0.0
      %1040 = vmatpush.msra.mxu0 0.0
      %1041 = vmatpush.msra.mxu0 0.0
      %1042 = vmatpush.msra.mxu0 0.0
      %1043 = vmatpush.msra.mxu0 0.0
      %1044 = vmatpush.msra.mxu0 0.0
      %1045 = vmatpush.msra.mxu0 %v1028
      %1046 = vmatmul.f32.gmra.mxu0 %v968
      %v1047 = vpop.f32.mrf.mxu0
      %v1048 = vadd.f32 0.0, %v1047
      %1049 = vmatmul.f32.gmra.mxu0 %v971
      %v1050 = vpop.f32.mrf.mxu0
      %v1051 = vadd.f32 0.0, %v1050
      %1052 = vmatmul.f32.gmra.mxu0 %v974
      %v1053 = vpop.f32.mrf.mxu0
      %v1054 = vadd.f32 0.0, %v1053
      %1055 = vmatmul.f32.gmra.mxu0 %v977
      %v1056 = vpop.f32.mrf.mxu0
      %v1057 = vadd.f32 0.0, %v1056
      %1058 = vmatmul.f32.gmra.mxu0 %v980
      %v1059 = vpop.f32.mrf.mxu0
      %v1060 = vadd.f32 0.0, %v1059
      %1061 = vmatmul.f32.gmra.mxu0 %v983
      %v1062 = vpop.f32.mrf.mxu0
      %v1063 = vadd.f32 0.0, %v1062
      %1064 = vmatmul.f32.gmra.mxu0 %v986
      %v1065 = vpop.f32.mrf.mxu0
      %v1066 = vadd.f32 0.0, %v1065
      %1067 = vmatmul.f32.gmra.mxu0 %v989
      %v1068 = vpop.f32.mrf.mxu0
      %v1069 = vadd.f32 0.0, %v1068
      %1070 = vmatmul.f32.gmra.mxu0 %v992
      %v1071 = vpop.f32.mrf.mxu0
      %v1072 = vadd.f32 0.0, %v1071
      %1073 = vmatmul.f32.gmra.mxu0 %v995
      %v1074 = vpop.f32.mrf.mxu0
      %v1075 = vadd.f32 0.0, %v1074
      %1076 = vmatmul.f32.gmra.mxu0 %v998
      %v1077 = vpop.f32.mrf.mxu0
      %v1078 = vadd.f32 0.0, %v1077
      %1079 = vmatmul.f32.gmra.mxu0 %v1001
      %v1080 = vpop.f32.mrf.mxu0
      %v1081 = vadd.f32 0.0, %v1080
      %1082 = vmatmul.f32.gmra.mxu0 %v1004
      %v1083 = vpop.f32.mrf.mxu0
      %v1084 = vadd.f32 0.0, %v1083
      %1085 = vmatmul.f32.gmra.mxu0 %v1007
      %v1086 = vpop.f32.mrf.mxu0
      %v1087 = vadd.f32 0.0, %v1086
      %1088 = vmatmul.f32.gmra.mxu0 %v1010
      %v1089 = vpop.f32.mrf.mxu0
      %v1090 = vadd.f32 0.0, %v1089
      %1091 = vmatmul.f32.gmra.mxu0 %v1013
      %v1092 = vpop.f32.mrf.mxu0
      %v1093 = vadd.f32 0.0, %v1092
      %1094 = vmatmul.f32.gmra.mxu0 %v1016
      %v1095 = vpop.f32.mrf.mxu0
      %v1096 = vadd.f32 0.0, %v1095
      %1097 = vmatmul.f32.gmra.mxu0 %v1019
      %v1098 = vpop.f32.mrf.mxu0
      %v1099 = vadd.f32 0.0, %v1098
      %1100 = vmatmul.f32.gmra.mxu0 %v1022
      %v1101 = vpop.f32.mrf.mxu0
      %v1102 = vadd.f32 0.0, %v1101
      %1103 = vmatmul.f32.gmra.mxu0 %v1025
      %v1104 = vpop.f32.mrf.mxu0
      %v1105 = vadd.f32 0.0, %v1104
      %1106 = vdwg.mxu0
      %v1107 = vadd.f32 %v925, %v1048
      %v1108 = vadd.f32 %v926, %v1051
      %v1109 = vadd.f32 %v927, %v1054
      %v1110 = vadd.f32 %v928, %v1057
      %v1111 = vadd.f32 %v929, %v1060
      %v1112 = vadd.f32 %v930, %v1063
      %v1113 = vadd.f32 %v931, %v1066
      %v1114 = vadd.f32 %v932, %v1069
      %v1115 = vadd.f32 %v933, %v1072
      %v1116 = vadd.f32 %v934, %v1075
      %v1117 = vadd.f32 %v935, %v1078
      %v1118 = vadd.f32 %v936, %v1081
      %v1119 = vadd.f32 %v937, %v1084
      %v1120 = vadd.f32 %v938, %v1087
      %v1121 = vadd.f32 %v939, %v1090
      %v1122 = vadd.f32 %v940, %v1093
      %v1123 = vadd.f32 %v941, %v1096
      %v1124 = vadd.f32 %v942, %v1099
      %v1125 = vadd.f32 %v943, %v1102
      %v1126 = vadd.f32 %v944, %v1105
      %v1127 = vld [vmem:[%s762 + $0x2] sm:$0xff]
      %v1128 = vld [vmem:[%s762 + $0xa] sm:$0xff]
      %v1129 = vld [vmem:[%s762 + $0x1a] sm:$0xff]
      %v1130 = vld [vmem:[%s762 + $0x22] sm:$0xff]
      %v1131 = vld [vmem:[%s762 + $0x32] sm:$0xff]
      %v1132 = vld [vmem:[%s762 + $0x3a] sm:$0xff]
      %v1133 = vld [vmem:[%s762 + $0x4a] sm:$0xff]
      %v1134 = vld [vmem:[%s762 + $0x52] sm:$0xff]
      %v1135 = vld [vmem:[%s762 + $0x62] sm:$0xff]
      %v1136 = vld [vmem:[%s762 + $0x6a] sm:$0xff]
      %v1137 = vld [vmem:[%s762 + $0x7a] sm:$0xff]
      %v1138 = vld [vmem:[%s762 + $0x82] sm:$0xff]
      %v1139 = vld [vmem:[%s762 + $0x92] sm:$0xff]
      %v1140 = vld [vmem:[%s762 + $0x9a] sm:$0xff]
      %v1141 = vld [vmem:[%s762 + $0xaa] sm:$0xff]
      %v1142 = vld [vmem:[%s762 + $0xb2] sm:$0xff]
      %v1143 = vld [vmem:[%s762 + $0xc2] sm:$0xff]
      %v1144 = vld [vmem:[%s762 + $0xca] sm:$0xff]
      %v1145 = vld [vmem:[%s762 + $0xda] sm:$0xff]
      %v1146 = vld [vmem:[%s762 + $0xe2] sm:$0xff]
      %s1147 = scalar_lea.vmem %s1, 20
      %v1148 = vld [vmem:[%s1147] sm:$0xf]
      %v1150 = vsel %vm296, %v1127, 0
      %v1153 = vsel %vm296, %v1128, 0
      %v1156 = vsel %vm296, %v1129, 0
      %v1159 = vsel %vm296, %v1130, 0
      %v1162 = vsel %vm296, %v1131, 0
      %v1165 = vsel %vm296, %v1132, 0
      %v1168 = vsel %vm296, %v1133, 0
      %v1171 = vsel %vm296, %v1134, 0
      %v1174 = vsel %vm296, %v1135, 0
      %v1177 = vsel %vm296, %v1136, 0
      %v1180 = vsel %vm296, %v1137, 0
      %v1183 = vsel %vm296, %v1138, 0
      %v1186 = vsel %vm296, %v1139, 0
      %v1189 = vsel %vm296, %v1140, 0
      %v1192 = vsel %vm296, %v1141, 0
      %v1195 = vsel %vm296, %v1142, 0
      %v1198 = vsel %vm296, %v1143, 0
      %v1201 = vsel %vm296, %v1144, 0
      %v1204 = vsel %vm296, %v1145, 0
      %v1207 = vsel %vm296, %v1146, 0
      %v1210 = vsel %vm357, %v1148, 0
      %1212 = vmatpush.msra.mxu0 0.0
      %1213 = vmatpush.msra.mxu0 0.0
      %1214 = vmatpush.msra.mxu0 0.0
      %1215 = vmatpush.msra.mxu0 0.0
      %1216 = vmatpush.msra.mxu0 0.0
      %1217 = vmatpush.msra.mxu0 0.0
      %1218 = vmatpush.msra.mxu0 0.0
      %1219 = vmatpush.msra.mxu0 0.0
      %1220 = vmatpush.msra.mxu0 0.0
      %1221 = vmatpush.msra.mxu0 0.0
      %1222 = vmatpush.msra.mxu0 0.0
      %1223 = vmatpush.msra.mxu0 0.0
      %1224 = vmatpush.msra.mxu0 0.0
      %1225 = vmatpush.msra.mxu0 0.0
      %1226 = vmatpush.msra.mxu0 0.0
      %1227 = vmatpush.msra.mxu0 %v1210
      %1228 = vmatmul.f32.gmra.mxu0 %v1150
      %v1229 = vpop.f32.mrf.mxu0
      %v1230 = vadd.f32 0.0, %v1229
      %1231 = vmatmul.f32.gmra.mxu0 %v1153
      %v1232 = vpop.f32.mrf.mxu0
      %v1233 = vadd.f32 0.0, %v1232
      %1234 = vmatmul.f32.gmra.mxu0 %v1156
      %v1235 = vpop.f32.mrf.mxu0
      %v1236 = vadd.f32 0.0, %v1235
      %1237 = vmatmul.f32.gmra.mxu0 %v1159
      %v1238 = vpop.f32.mrf.mxu0
      %v1239 = vadd.f32 0.0, %v1238
      %1240 = vmatmul.f32.gmra.mxu0 %v1162
      %v1241 = vpop.f32.mrf.mxu0
      %v1242 = vadd.f32 0.0, %v1241
      %1243 = vmatmul.f32.gmra.mxu0 %v1165
      %v1244 = vpop.f32.mrf.mxu0
      %v1245 = vadd.f32 0.0, %v1244
      %1246 = vmatmul.f32.gmra.mxu0 %v1168
      %v1247 = vpop.f32.mrf.mxu0
      %v1248 = vadd.f32 0.0, %v1247
      %1249 = vmatmul.f32.gmra.mxu0 %v1171
      %v1250 = vpop.f32.mrf.mxu0
      %v1251 = vadd.f32 0.0, %v1250
      %1252 = vmatmul.f32.gmra.mxu0 %v1174
      %v1253 = vpop.f32.mrf.mxu0
      %v1254 = vadd.f32 0.0, %v1253
      %1255 = vmatmul.f32.gmra.mxu0 %v1177
      %v1256 = vpop.f32.mrf.mxu0
      %v1257 = vadd.f32 0.0, %v1256
      %1258 = vmatmul.f32.gmra.mxu0 %v1180
      %v1259 = vpop.f32.mrf.mxu0
      %v1260 = vadd.f32 0.0, %v1259
      %1261 = vmatmul.f32.gmra.mxu0 %v1183
      %v1262 = vpop.f32.mrf.mxu0
      %v1263 = vadd.f32 0.0, %v1262
      %1264 = vmatmul.f32.gmra.mxu0 %v1186
      %v1265 = vpop.f32.mrf.mxu0
      %v1266 = vadd.f32 0.0, %v1265
      %1267 = vmatmul.f32.gmra.mxu0 %v1189
      %v1268 = vpop.f32.mrf.mxu0
      %v1269 = vadd.f32 0.0, %v1268
      %1270 = vmatmul.f32.gmra.mxu0 %v1192
      %v1271 = vpop.f32.mrf.mxu0
      %v1272 = vadd.f32 0.0, %v1271
      %1273 = vmatmul.f32.gmra.mxu0 %v1195
      %v1274 = vpop.f32.mrf.mxu0
      %v1275 = vadd.f32 0.0, %v1274
      %1276 = vmatmul.f32.gmra.mxu0 %v1198
      %v1277 = vpop.f32.mrf.mxu0
      %v1278 = vadd.f32 0.0, %v1277
      %1279 = vmatmul.f32.gmra.mxu0 %v1201
      %v1280 = vpop.f32.mrf.mxu0
      %v1281 = vadd.f32 0.0, %v1280
      %1282 = vmatmul.f32.gmra.mxu0 %v1204
      %v1283 = vpop.f32.mrf.mxu0
      %v1284 = vadd.f32 0.0, %v1283
      %1285 = vmatmul.f32.gmra.mxu0 %v1207
      %v1286 = vpop.f32.mrf.mxu0
      %v1287 = vadd.f32 0.0, %v1286
      %1288 = vdwg.mxu0
      %v1289 = vadd.f32 %v1107, %v1230
      %v1290 = vadd.f32 %v1108, %v1233
      %v1291 = vadd.f32 %v1109, %v1236
      %v1292 = vadd.f32 %v1110, %v1239
      %v1293 = vadd.f32 %v1111, %v1242
      %v1294 = vadd.f32 %v1112, %v1245
      %v1295 = vadd.f32 %v1113, %v1248
      %v1296 = vadd.f32 %v1114, %v1251
      %v1297 = vadd.f32 %v1115, %v1254
      %v1298 = vadd.f32 %v1116, %v1257
      %v1299 = vadd.f32 %v1117, %v1260
      %v1300 = vadd.f32 %v1118, %v1263
      %v1301 = vadd.f32 %v1119, %v1266
      %v1302 = vadd.f32 %v1120, %v1269
      %v1303 = vadd.f32 %v1121, %v1272
      %v1304 = vadd.f32 %v1122, %v1275
      %v1305 = vadd.f32 %v1123, %v1278
      %v1306 = vadd.f32 %v1124, %v1281
      %v1307 = vadd.f32 %v1125, %v1284
      %v1308 = vadd.f32 %v1126, %v1287
      %s1309 = sadd.s32 %s250, 2
      %s1310 = smul.u32 %s1309, 24
      %s1311 = scalar_lea.vmem %s238, %s1310
      %v1312 = vld [vmem:[%s1311] sm:$0xff]
      %v1313 = vld [vmem:[%s1311 + $0x8] sm:$0xff]
      %v1314 = vld [vmem:[%s1311 + $0x18] sm:$0xff]
      %v1315 = vld [vmem:[%s1311 + $0x20] sm:$0xff]
      %v1316 = vld [vmem:[%s1311 + $0x30] sm:$0xff]
      %v1317 = vld [vmem:[%s1311 + $0x38] sm:$0xff]
      %v1318 = vld [vmem:[%s1311 + $0x48] sm:$0xff]
      %v1319 = vld [vmem:[%s1311 + $0x50] sm:$0xff]
      %v1320 = vld [vmem:[%s1311 + $0x60] sm:$0xff]
      %v1321 = vld [vmem:[%s1311 + $0x68] sm:$0xff]
      %v1322 = vld [vmem:[%s1311 + $0x78] sm:$0xff]
      %v1323 = vld [vmem:[%s1311 + $0x80] sm:$0xff]
      %v1324 = vld [vmem:[%s1311 + $0x90] sm:$0xff]
      %v1325 = vld [vmem:[%s1311 + $0x98] sm:$0xff]
      %v1326 = vld [vmem:[%s1311 + $0xa8] sm:$0xff]
      %v1327 = vld [vmem:[%s1311 + $0xb0] sm:$0xff]
      %v1328 = vld [vmem:[%s1311 + $0xc0] sm:$0xff]
      %v1329 = vld [vmem:[%s1311 + $0xc8] sm:$0xff]
      %v1330 = vld [vmem:[%s1311 + $0xd8] sm:$0xff]
      %v1331 = vld [vmem:[%s1311 + $0xe0] sm:$0xff]
      %s1332 = scalar_lea.vmem %s1, 24
      %v1333 = vld [vmem:[%s1332] sm:$0xf]
      %v1335 = vsel %vm296, %v1312, 0
      %v1338 = vsel %vm296, %v1313, 0
      %v1341 = vsel %vm296, %v1314, 0
      %v1344 = vsel %vm296, %v1315, 0
      %v1347 = vsel %vm296, %v1316, 0
      %v1350 = vsel %vm296, %v1317, 0
      %v1353 = vsel %vm296, %v1318, 0
      %v1356 = vsel %vm296, %v1319, 0
      %v1359 = vsel %vm296, %v1320, 0
      %v1362 = vsel %vm296, %v1321, 0
      %v1365 = vsel %vm296, %v1322, 0
      %v1368 = vsel %vm296, %v1323, 0
      %v1371 = vsel %vm296, %v1324, 0
      %v1374 = vsel %vm296, %v1325, 0
      %v1377 = vsel %vm296, %v1326, 0
      %v1380 = vsel %vm296, %v1327, 0
      %v1383 = vsel %vm296, %v1328, 0
      %v1386 = vsel %vm296, %v1329, 0
      %v1389 = vsel %vm296, %v1330, 0
      %v1392 = vsel %vm296, %v1331, 0
      %v1395 = vsel %vm357, %v1333, 0
      %1397 = vmatpush.msra.mxu0 0.0
      %1398 = vmatpush.msra.mxu0 0.0
      %1399 = vmatpush.msra.mxu0 0.0
      %1400 = vmatpush.msra.mxu0 0.0
      %1401 = vmatpush.msra.mxu0 0.0
      %1402 = vmatpush.msra.mxu0 0.0
      %1403 = vmatpush.msra.mxu0 0.0
      %1404 = vmatpush.msra.mxu0 0.0
      %1405 = vmatpush.msra.mxu0 0.0
      %1406 = vmatpush.msra.mxu0 0.0
      %1407 = vmatpush.msra.mxu0 0.0
      %1408 = vmatpush.msra.mxu0 0.0
      %1409 = vmatpush.msra.mxu0 0.0
      %1410 = vmatpush.msra.mxu0 0.0
      %1411 = vmatpush.msra.mxu0 0.0
      %1412 = vmatpush.msra.mxu0 %v1395
      %1413 = vmatmul.f32.gmra.mxu0 %v1335
      %v1414 = vpop.f32.mrf.mxu0
      %v1415 = vadd.f32 0.0, %v1414
      %1416 = vmatmul.f32.gmra.mxu0 %v1338
      %v1417 = vpop.f32.mrf.mxu0
      %v1418 = vadd.f32 0.0, %v1417
      %1419 = vmatmul.f32.gmra.mxu0 %v1341
      %v1420 = vpop.f32.mrf.mxu0
      %v1421 = vadd.f32 0.0, %v1420
      %1422 = vmatmul.f32.gmra.mxu0 %v1344
      %v1423 = vpop.f32.mrf.mxu0
      %v1424 = vadd.f32 0.0, %v1423
      %1425 = vmatmul.f32.gmra.mxu0 %v1347
      %v1426 = vpop.f32.mrf.mxu0
      %v1427 = vadd.f32 0.0, %v1426
      %1428 = vmatmul.f32.gmra.mxu0 %v1350
      %v1429 = vpop.f32.mrf.mxu0
      %v1430 = vadd.f32 0.0, %v1429
      %1431 = vmatmul.f32.gmra.mxu0 %v1353
      %v1432 = vpop.f32.mrf.mxu0
      %v1433 = vadd.f32 0.0, %v1432
      %1434 = vmatmul.f32.gmra.mxu0 %v1356
      %v1435 = vpop.f32.mrf.mxu0
      %v1436 = vadd.f32 0.0, %v1435
      %1437 = vmatmul.f32.gmra.mxu0 %v1359
      %v1438 = vpop.f32.mrf.mxu0
      %v1439 = vadd.f32 0.0, %v1438
      %1440 = vmatmul.f32.gmra.mxu0 %v1362
      %v1441 = vpop.f32.mrf.mxu0
      %v1442 = vadd.f32 0.0, %v1441
      %1443 = vmatmul.f32.gmra.mxu0 %v1365
      %v1444 = vpop.f32.mrf.mxu0
      %v1445 = vadd.f32 0.0, %v1444
      %1446 = vmatmul.f32.gmra.mxu0 %v1368
      %v1447 = vpop.f32.mrf.mxu0
      %v1448 = vadd.f32 0.0, %v1447
      %1449 = vmatmul.f32.gmra.mxu0 %v1371
      %v1450 = vpop.f32.mrf.mxu0
      %v1451 = vadd.f32 0.0, %v1450
      %1452 = vmatmul.f32.gmra.mxu0 %v1374
      %v1453 = vpop.f32.mrf.mxu0
      %v1454 = vadd.f32 0.0, %v1453
      %1455 = vmatmul.f32.gmra.mxu0 %v1377
      %v1456 = vpop.f32.mrf.mxu0
      %v1457 = vadd.f32 0.0, %v1456
      %1458 = vmatmul.f32.gmra.mxu0 %v1380
      %v1459 = vpop.f32.mrf.mxu0
      %v1460 = vadd.f32 0.0, %v1459
      %1461 = vmatmul.f32.gmra.mxu0 %v1383
      %v1462 = vpop.f32.mrf.mxu0
      %v1463 = vadd.f32 0.0, %v1462
      %1464 = vmatmul.f32.gmra.mxu0 %v1386
      %v1465 = vpop.f32.mrf.mxu0
      %v1466 = vadd.f32 0.0, %v1465
      %1467 = vmatmul.f32.gmra.mxu0 %v1389
      %v1468 = vpop.f32.mrf.mxu0
      %v1469 = vadd.f32 0.0, %v1468
      %1470 = vmatmul.f32.gmra.mxu0 %v1392
      %v1471 = vpop.f32.mrf.mxu0
      %v1472 = vadd.f32 0.0, %v1471
      %1473 = vdwg.mxu0
      %v1474 = vadd.f32 %v1289, %v1415
      %v1475 = vadd.f32 %v1290, %v1418
      %v1476 = vadd.f32 %v1291, %v1421
      %v1477 = vadd.f32 %v1292, %v1424
      %v1478 = vadd.f32 %v1293, %v1427
      %v1479 = vadd.f32 %v1294, %v1430
      %v1480 = vadd.f32 %v1295, %v1433
      %v1481 = vadd.f32 %v1296, %v1436
      %v1482 = vadd.f32 %v1297, %v1439
      %v1483 = vadd.f32 %v1298, %v1442
      %v1484 = vadd.f32 %v1299, %v1445
      %v1485 = vadd.f32 %v1300, %v1448
      %v1486 = vadd.f32 %v1301, %v1451
      %v1487 = vadd.f32 %v1302, %v1454
      %v1488 = vadd.f32 %v1303, %v1457
      %v1489 = vadd.f32 %v1304, %v1460
      %v1490 = vadd.f32 %v1305, %v1463
      %v1491 = vadd.f32 %v1306, %v1466
      %v1492 = vadd.f32 %v1307, %v1469
      %v1493 = vadd.f32 %v1308, %v1472
      %v1494 = vld [vmem:[%s1311 + $0x1] sm:$0xff]
      %v1495 = vld [vmem:[%s1311 + $0x9] sm:$0xff]
      %v1496 = vld [vmem:[%s1311 + $0x19] sm:$0xff]
      %v1497 = vld [vmem:[%s1311 + $0x21] sm:$0xff]
      %v1498 = vld [vmem:[%s1311 + $0x31] sm:$0xff]
      %v1499 = vld [vmem:[%s1311 + $0x39] sm:$0xff]
      %v1500 = vld [vmem:[%s1311 + $0x49] sm:$0xff]
      %v1501 = vld [vmem:[%s1311 + $0x51] sm:$0xff]
      %v1502 = vld [vmem:[%s1311 + $0x61] sm:$0xff]
      %v1503 = vld [vmem:[%s1311 + $0x69] sm:$0xff]
      %v1504 = vld [vmem:[%s1311 + $0x79] sm:$0xff]
      %v1505 = vld [vmem:[%s1311 + $0x81] sm:$0xff]
      %v1506 = vld [vmem:[%s1311 + $0x91] sm:$0xff]
      %v1507 = vld [vmem:[%s1311 + $0x99] sm:$0xff]
      %v1508 = vld [vmem:[%s1311 + $0xa9] sm:$0xff]
      %v1509 = vld [vmem:[%s1311 + $0xb1] sm:$0xff]
      %v1510 = vld [vmem:[%s1311 + $0xc1] sm:$0xff]
      %v1511 = vld [vmem:[%s1311 + $0xc9] sm:$0xff]
      %v1512 = vld [vmem:[%s1311 + $0xd9] sm:$0xff]
      %v1513 = vld [vmem:[%s1311 + $0xe1] sm:$0xff]
      %s1514 = scalar_lea.vmem %s1, 28
      %v1515 = vld [vmem:[%s1514] sm:$0xf]
      %v1517 = vsel %vm296, %v1494, 0
      %v1520 = vsel %vm296, %v1495, 0
      %v1523 = vsel %vm296, %v1496, 0
      %v1526 = vsel %vm296, %v1497, 0
      %v1529 = vsel %vm296, %v1498, 0
      %v1532 = vsel %vm296, %v1499, 0
      %v1535 = vsel %vm296, %v1500, 0
      %v1538 = vsel %vm296, %v1501, 0
      %v1541 = vsel %vm296, %v1502, 0
      %v1544 = vsel %vm296, %v1503, 0
      %v1547 = vsel %vm296, %v1504, 0
      %v1550 = vsel %vm296, %v1505, 0
      %v1553 = vsel %vm296, %v1506, 0
      %v1556 = vsel %vm296, %v1507, 0
      %v1559 = vsel %vm296, %v1508, 0
      %v1562 = vsel %vm296, %v1509, 0
      %v1565 = vsel %vm296, %v1510, 0
      %v1568 = vsel %vm296, %v1511, 0
      %v1571 = vsel %vm296, %v1512, 0
      %v1574 = vsel %vm296, %v1513, 0
      %v1577 = vsel %vm357, %v1515, 0
      %1579 = vmatpush.msra.mxu0 0.0
      %1580 = vmatpush.msra.mxu0 0.0
      %1581 = vmatpush.msra.mxu0 0.0
      %1582 = vmatpush.msra.mxu0 0.0
      %1583 = vmatpush.msra.mxu0 0.0
      %1584 = vmatpush.msra.mxu0 0.0
      %1585 = vmatpush.msra.mxu0 0.0
      %1586 = vmatpush.msra.mxu0 0.0
      %1587 = vmatpush.msra.mxu0 0.0
      %1588 = vmatpush.msra.mxu0 0.0
      %1589 = vmatpush.msra.mxu0 0.0
      %1590 = vmatpush.msra.mxu0 0.0
      %1591 = vmatpush.msra.mxu0 0.0
      %1592 = vmatpush.msra.mxu0 0.0
      %1593 = vmatpush.msra.mxu0 0.0
      %1594 = vmatpush.msra.mxu0 %v1577
      %1595 = vmatmul.f32.gmra.mxu0 %v1517
      %v1596 = vpop.f32.mrf.mxu0
      %v1597 = vadd.f32 0.0, %v1596
      %1598 = vmatmul.f32.gmra.mxu0 %v1520
      %v1599 = vpop.f32.mrf.mxu0
      %v1600 = vadd.f32 0.0, %v1599
      %1601 = vmatmul.f32.gmra.mxu0 %v1523
      %v1602 = vpop.f32.mrf.mxu0
      %v1603 = vadd.f32 0.0, %v1602
      %1604 = vmatmul.f32.gmra.mxu0 %v1526
      %v1605 = vpop.f32.mrf.mxu0
      %v1606 = vadd.f32 0.0, %v1605
      %1607 = vmatmul.f32.gmra.mxu0 %v1529
      %v1608 = vpop.f32.mrf.mxu0
      %v1609 = vadd.f32 0.0, %v1608
      %1610 = vmatmul.f32.gmra.mxu0 %v1532
      %v1611 = vpop.f32.mrf.mxu0
      %v1612 = vadd.f32 0.0, %v1611
      %1613 = vmatmul.f32.gmra.mxu0 %v1535
      %v1614 = vpop.f32.mrf.mxu0
      %v1615 = vadd.f32 0.0, %v1614
      %1616 = vmatmul.f32.gmra.mxu0 %v1538
      %v1617 = vpop.f32.mrf.mxu0
      %v1618 = vadd.f32 0.0, %v1617
      %1619 = vmatmul.f32.gmra.mxu0 %v1541
      %v1620 = vpop.f32.mrf.mxu0
      %v1621 = vadd.f32 0.0, %v1620
      %1622 = vmatmul.f32.gmra.mxu0 %v1544
      %v1623 = vpop.f32.mrf.mxu0
      %v1624 = vadd.f32 0.0, %v1623
      %1625 = vmatmul.f32.gmra.mxu0 %v1547
      %v1626 = vpop.f32.mrf.mxu0
      %v1627 = vadd.f32 0.0, %v1626
      %1628 = vmatmul.f32.gmra.mxu0 %v1550
      %v1629 = vpop.f32.mrf.mxu0
      %v1630 = vadd.f32 0.0, %v1629
      %1631 = vmatmul.f32.gmra.mxu0 %v1553
      %v1632 = vpop.f32.mrf.mxu0
      %v1633 = vadd.f32 0.0, %v1632
      %1634 = vmatmul.f32.gmra.mxu0 %v1556
      %v1635 = vpop.f32.mrf.mxu0
      %v1636 = vadd.f32 0.0, %v1635
      %1637 = vmatmul.f32.gmra.mxu0 %v1559
      %v1638 = vpop.f32.mrf.mxu0
      %v1639 = vadd.f32 0.0, %v1638
      %1640 = vmatmul.f32.gmra.mxu0 %v1562
      %v1641 = vpop.f32.mrf.mxu0
      %v1642 = vadd.f32 0.0, %v1641
      %1643 = vmatmul.f32.gmra.mxu0 %v1565
      %v1644 = vpop.f32.mrf.mxu0
      %v1645 = vadd.f32 0.0, %v1644
      %1646 = vmatmul.f32.gmra.mxu0 %v1568
      %v1647 = vpop.f32.mrf.mxu0
      %v1648 = vadd.f32 0.0, %v1647
      %1649 = vmatmul.f32.gmra.mxu0 %v1571
      %v1650 = vpop.f32.mrf.mxu0
      %v1651 = vadd.f32 0.0, %v1650
      %1652 = vmatmul.f32.gmra.mxu0 %v1574
      %v1653 = vpop.f32.mrf.mxu0
      %v1654 = vadd.f32 0.0, %v1653
      %1655 = vdwg.mxu0
      %v1656 = vadd.f32 %v1474, %v1597
      %v1657 = vadd.f32 %v1475, %v1600
      %v1658 = vadd.f32 %v1476, %v1603
      %v1659 = vadd.f32 %v1477, %v1606
      %v1660 = vadd.f32 %v1478, %v1609
      %v1661 = vadd.f32 %v1479, %v1612
      %v1662 = vadd.f32 %v1480, %v1615
      %v1663 = vadd.f32 %v1481, %v1618
      %v1664 = vadd.f32 %v1482, %v1621
      %v1665 = vadd.f32 %v1483, %v1624
      %v1666 = vadd.f32 %v1484, %v1627
      %v1667 = vadd.f32 %v1485, %v1630
      %v1668 = vadd.f32 %v1486, %v1633
      %v1669 = vadd.f32 %v1487, %v1636
      %v1670 = vadd.f32 %v1488, %v1639
      %v1671 = vadd.f32 %v1489, %v1642
      %v1672 = vadd.f32 %v1490, %v1645
      %v1673 = vadd.f32 %v1491, %v1648
      %v1674 = vadd.f32 %v1492, %v1651
      %v1675 = vadd.f32 %v1493, %v1654
      %v1676 = vld [vmem:[%s1311 + $0x2] sm:$0xff]
      %v1677 = vld [vmem:[%s1311 + $0xa] sm:$0xff]
      %v1678 = vld [vmem:[%s1311 + $0x1a] sm:$0xff]
      %v1679 = vld [vmem:[%s1311 + $0x22] sm:$0xff]
      %v1680 = vld [vmem:[%s1311 + $0x32] sm:$0xff]
      %v1681 = vld [vmem:[%s1311 + $0x3a] sm:$0xff]
      %v1682 = vld [vmem:[%s1311 + $0x4a] sm:$0xff]
      %v1683 = vld [vmem:[%s1311 + $0x52] sm:$0xff]
      %v1684 = vld [vmem:[%s1311 + $0x62] sm:$0xff]
      %v1685 = vld [vmem:[%s1311 + $0x6a] sm:$0xff]
      %v1686 = vld [vmem:[%s1311 + $0x7a] sm:$0xff]
      %v1687 = vld [vmem:[%s1311 + $0x82] sm:$0xff]
      %v1688 = vld [vmem:[%s1311 + $0x92] sm:$0xff]
      %v1689 = vld [vmem:[%s1311 + $0x9a] sm:$0xff]
      %v1690 = vld [vmem:[%s1311 + $0xaa] sm:$0xff]
      %v1691 = vld [vmem:[%s1311 + $0xb2] sm:$0xff]
      %v1692 = vld [vmem:[%s1311 + $0xc2] sm:$0xff]
      %v1693 = vld [vmem:[%s1311 + $0xca] sm:$0xff]
      %v1694 = vld [vmem:[%s1311 + $0xda] sm:$0xff]
      %v1695 = vld [vmem:[%s1311 + $0xe2] sm:$0xff]
      %s1696 = scalar_lea.vmem %s1, 32
      %v1697 = vld [vmem:[%s1696] sm:$0xf]
      %v1699 = vsel %vm296, %v1676, 0
      %v1702 = vsel %vm296, %v1677, 0
      %v1705 = vsel %vm296, %v1678, 0
      %v1708 = vsel %vm296, %v1679, 0
      %v1711 = vsel %vm296, %v1680, 0
      %v1714 = vsel %vm296, %v1681, 0
      %v1717 = vsel %vm296, %v1682, 0
      %v1720 = vsel %vm296, %v1683, 0
      %v1723 = vsel %vm296, %v1684, 0
      %v1726 = vsel %vm296, %v1685, 0
      %v1729 = vsel %vm296, %v1686, 0
      %v1732 = vsel %vm296, %v1687, 0
      %v1735 = vsel %vm296, %v1688, 0
      %v1738 = vsel %vm296, %v1689, 0
      %v1741 = vsel %vm296, %v1690, 0
      %v1744 = vsel %vm296, %v1691, 0
      %v1747 = vsel %vm296, %v1692, 0
      %v1750 = vsel %vm296, %v1693, 0
      %v1753 = vsel %vm296, %v1694, 0
      %v1756 = vsel %vm296, %v1695, 0
      %v1759 = vsel %vm357, %v1697, 0
      %1761 = vmatpush.msra.mxu0 0.0
      %1762 = vmatpush.msra.mxu0 0.0
      %1763 = vmatpush.msra.mxu0 0.0
      %1764 = vmatpush.msra.mxu0 0.0
      %1765 = vmatpush.msra.mxu0 0.0
      %1766 = vmatpush.msra.mxu0 0.0
      %1767 = vmatpush.msra.mxu0 0.0
      %1768 = vmatpush.msra.mxu0 0.0
      %1769 = vmatpush.msra.mxu0 0.0
      %1770 = vmatpush.msra.mxu0 0.0
      %1771 = vmatpush.msra.mxu0 0.0
      %1772 = vmatpush.msra.mxu0 0.0
      %1773 = vmatpush.msra.mxu0 0.0
      %1774 = vmatpush.msra.mxu0 0.0
      %1775 = vmatpush.msra.mxu0 0.0
      %1776 = vmatpush.msra.mxu0 %v1759
      %1777 = vmatmul.f32.gmra.mxu0 %v1699
      %v1778 = vpop.f32.mrf.mxu0
      %v1779 = vadd.f32 0.0, %v1778
      %1780 = vmatmul.f32.gmra.mxu0 %v1702
      %v1781 = vpop.f32.mrf.mxu0
      %v1782 = vadd.f32 0.0, %v1781
      %1783 = vmatmul.f32.gmra.mxu0 %v1705
      %v1784 = vpop.f32.mrf.mxu0
      %v1785 = vadd.f32 0.0, %v1784
      %1786 = vmatmul.f32.gmra.mxu0 %v1708
      %v1787 = vpop.f32.mrf.mxu0
      %v1788 = vadd.f32 0.0, %v1787
      %1789 = vmatmul.f32.gmra.mxu0 %v1711
      %v1790 = vpop.f32.mrf.mxu0
      %v1791 = vadd.f32 0.0, %v1790
      %1792 = vmatmul.f32.gmra.mxu0 %v1714
      %v1793 = vpop.f32.mrf.mxu0
      %v1794 = vadd.f32 0.0, %v1793
      %1795 = vmatmul.f32.gmra.mxu0 %v1717
      %v1796 = vpop.f32.mrf.mxu0
      %v1797 = vadd.f32 0.0, %v1796
      %1798 = vmatmul.f32.gmra.mxu0 %v1720
      %v1799 = vpop.f32.mrf.mxu0
      %v1800 = vadd.f32 0.0, %v1799
      %1801 = vmatmul.f32.gmra.mxu0 %v1723
      %v1802 = vpop.f32.mrf.mxu0
      %v1803 = vadd.f32 0.0, %v1802
      %1804 = vmatmul.f32.gmra.mxu0 %v1726
      %v1805 = vpop.f32.mrf.mxu0
      %v1806 = vadd.f32 0.0, %v1805
      %1807 = vmatmul.f32.gmra.mxu0 %v1729
      %v1808 = vpop.f32.mrf.mxu0
      %v1809 = vadd.f32 0.0, %v1808
      %1810 = vmatmul.f32.gmra.mxu0 %v1732
      %v1811 = vpop.f32.mrf.mxu0
      %v1812 = vadd.f32 0.0, %v1811
      %1813 = vmatmul.f32.gmra.mxu0 %v1735
      %v1814 = vpop.f32.mrf.mxu0
      %v1815 = vadd.f32 0.0, %v1814
      %1816 = vmatmul.f32.gmra.mxu0 %v1738
      %v1817 = vpop.f32.mrf.mxu0
      %v1818 = vadd.f32 0.0, %v1817
      %1819 = vmatmul.f32.gmra.mxu0 %v1741
      %v1820 = vpop.f32.mrf.mxu0
      %v1821 = vadd.f32 0.0, %v1820
      %1822 = vmatmul.f32.gmra.mxu0 %v1744
      %v1823 = vpop.f32.mrf.mxu0
      %v1824 = vadd.f32 0.0, %v1823
      %1825 = vmatmul.f32.gmra.mxu0 %v1747
      %v1826 = vpop.f32.mrf.mxu0
      %v1827 = vadd.f32 0.0, %v1826
      %1828 = vmatmul.f32.gmra.mxu0 %v1750
      %v1829 = vpop.f32.mrf.mxu0
      %v1830 = vadd.f32 0.0, %v1829
      %1831 = vmatmul.f32.gmra.mxu0 %v1753
      %v1832 = vpop.f32.mrf.mxu0
      %v1833 = vadd.f32 0.0, %v1832
      %1834 = vmatmul.f32.gmra.mxu0 %v1756
      %v1835 = vpop.f32.mrf.mxu0
      %v1836 = vadd.f32 0.0, %v1835
      %1837 = vdwg.mxu0
      %v1838 = vadd.f32 %v1656, %v1779
      %v1839 = vadd.f32 %v1657, %v1782
      %v1840 = vadd.f32 %v1658, %v1785
      %v1841 = vadd.f32 %v1659, %v1788
      %v1842 = vadd.f32 %v1660, %v1791
      %v1843 = vadd.f32 %v1661, %v1794
      %v1844 = vadd.f32 %v1662, %v1797
      %v1845 = vadd.f32 %v1663, %v1800
      %v1846 = vadd.f32 %v1664, %v1803
      %v1847 = vadd.f32 %v1665, %v1806
      %v1848 = vadd.f32 %v1666, %v1809
      %v1849 = vadd.f32 %v1667, %v1812
      %v1850 = vadd.f32 %v1668, %v1815
      %v1851 = vadd.f32 %v1669, %v1818
      %v1852 = vadd.f32 %v1670, %v1821
      %v1853 = vadd.f32 %v1671, %v1824
      %v1854 = vadd.f32 %v1672, %v1827
      %v1855 = vadd.f32 %v1673, %v1830
      %v1856 = vadd.f32 %v1674, %v1833
      %v1857 = vadd.f32 %v1675, %v1836
      %v1858 = vld [vmem:[%s2] sm:$0x1]
      %v1860 = vperm.slane %v1858, 0
      %v1862 = vadd.f32 %v1838, %v1860
      %v1863 = vadd.f32 %v1839, %v1860
      %v1864 = vadd.f32 %v1840, %v1860
      %v1865 = vadd.f32 %v1841, %v1860
      %v1866 = vadd.f32 %v1842, %v1860
      %v1867 = vadd.f32 %v1843, %v1860
      %v1868 = vadd.f32 %v1844, %v1860
      %v1869 = vadd.f32 %v1845, %v1860
      %v1870 = vadd.f32 %v1846, %v1860
      %v1871 = vadd.f32 %v1847, %v1860
      %v1872 = vadd.f32 %v1848, %v1860
      %v1873 = vadd.f32 %v1849, %v1860
      %v1874 = vadd.f32 %v1850, %v1860
      %v1875 = vadd.f32 %v1851, %v1860
      %v1876 = vadd.f32 %v1852, %v1860
      %v1877 = vadd.f32 %v1853, %v1860
      %v1878 = vadd.f32 %v1854, %v1860
      %v1879 = vadd.f32 %v1855, %v1860
      %v1880 = vadd.f32 %v1856, %v1860
      %v1881 = vadd.f32 %v1857, %v1860
      %v1882 = vmax.f32 %v1862, 0.0
      %v1883 = vmax.f32 %v1863, 0.0
      %v1884 = vmax.f32 %v1864, 0.0
      %v1885 = vmax.f32 %v1865, 0.0
      %v1886 = vmax.f32 %v1866, 0.0
      %v1887 = vmax.f32 %v1867, 0.0
      %v1888 = vmax.f32 %v1868, 0.0
      %v1889 = vmax.f32 %v1869, 0.0
      %v1890 = vmax.f32 %v1870, 0.0
      %v1891 = vmax.f32 %v1871, 0.0
      %v1892 = vmax.f32 %v1872, 0.0
      %v1893 = vmax.f32 %v1873, 0.0
      %v1894 = vmax.f32 %v1874, 0.0
      %v1895 = vmax.f32 %v1875, 0.0
      %v1896 = vmax.f32 %v1876, 0.0
      %v1897 = vmax.f32 %v1877, 0.0
      %v1898 = vmax.f32 %v1878, 0.0
      %v1899 = vmax.f32 %v1879, 0.0
      %v1900 = vmax.f32 %v1880, 0.0
      %v1901 = vmax.f32 %v1881, 0.0
      %s1902 = ssub.s32 %s250, 1
      %v1903 = vstv %s1902
      %v1904 = vadd.s32 %v1903, 1
      %v1905 = vadd.s32 %v1903, 2
      %v1906 = vadd.s32 %v1903, 3
      %v1907 = vadd.s32 %v1903, 4
      %v1908 = vadd.s32 %v1903, 5
      %v1909 = vadd.s32 %v1903, 6
      %v1910 = vadd.s32 %v1903, 7
      %v1911 = vadd.s32 %v1903, 8
      %v1912 = vadd.s32 %v1903, 9
      %v1913 = vlaneseq
      %v1914 = vshrl.u32 %v1913, 7
      %v1915 = vadd.s32 %v1914, 8
      %vm1916 = vcmp.ge.s32.totalorder %v1903, 0
      %vm1917 = vcmp.ge.s32.totalorder %v1904, 0
      %vm1918 = vcmp.ge.s32.totalorder %v1905, 0
      %vm1919 = vcmp.ge.s32.totalorder %v1906, 0
      %vm1920 = vcmp.ge.s32.totalorder %v1907, 0
      %vm1921 = vcmp.ge.s32.totalorder %v1908, 0
      %vm1922 = vcmp.ge.s32.totalorder %v1909, 0
      %vm1923 = vcmp.ge.s32.totalorder %v1910, 0
      %vm1924 = vcmp.ge.s32.totalorder %v1911, 0
      %vm1925 = vcmp.ge.s32.totalorder %v1912, 0
      %vm1926 = vcmp.lt.s32.totalorder %v1903, 16
      %vm1927 = vcmp.lt.s32.totalorder %v1904, 16
      %vm1928 = vcmp.lt.s32.totalorder %v1905, 16
      %vm1929 = vcmp.lt.s32.totalorder %v1906, 16
      %vm1930 = vcmp.lt.s32.totalorder %v1907, 16
      %vm1931 = vcmp.lt.s32.totalorder %v1908, 16
      %vm1932 = vcmp.lt.s32.totalorder %v1909, 16
      %vm1933 = vcmp.lt.s32.totalorder %v1910, 16
      %vm1934 = vcmp.lt.s32.totalorder %v1911, 16
      %vm1935 = vcmp.lt.s32.totalorder %v1912, 16
      %vm1936 = vmand %vm1916, %vm1926
      %vm1937 = vmand %vm1917, %vm1927
      %vm1938 = vmand %vm1918, %vm1928
      %vm1939 = vmand %vm1919, %vm1929
      %vm1940 = vmand %vm1920, %vm1930
      %vm1941 = vmand %vm1921, %vm1931
      %vm1942 = vmand %vm1922, %vm1932
      %vm1943 = vmand %vm1923, %vm1933
      %vm1944 = vmand %vm1924, %vm1934
      %vm1945 = vmand %vm1925, %vm1935
      %vm1946 = vcmp.lt.s32.totalorder %v1914, 16
      %vm1947 = vcmp.lt.s32.totalorder %v1915, 16
      %vm1948 = vmand %vm1936, %vm1946
      %vm1949 = vmand %vm1936, %vm1947
      %vm1950 = vmand %vm1937, %vm1946
      %vm1951 = vmand %vm1937, %vm1947
      %vm1952 = vmand %vm1938, %vm1946
      %vm1953 = vmand %vm1938, %vm1947
      %vm1954 = vmand %vm1939, %vm1946
      %vm1955 = vmand %vm1939, %vm1947
      %vm1956 = vmand %vm1940, %vm1946
      %vm1957 = vmand %vm1940, %vm1947
      %vm1958 = vmand %vm1941, %vm1946
      %vm1959 = vmand %vm1941, %vm1947
      %vm1960 = vmand %vm1942, %vm1946
      %vm1961 = vmand %vm1942, %vm1947
      %vm1962 = vmand %vm1943, %vm1946
      %vm1963 = vmand %vm1943, %vm1947
      %vm1964 = vmand %vm1944, %vm1946
      %vm1965 = vmand %vm1944, %vm1947
      %vm1966 = vmand %vm1945, %vm1946
      %vm1967 = vmand %vm1945, %vm1947
      %v1968 = vsel %vm1948, %v1882, 0.0
      %v1969 = vsel %vm1949, %v1883, 0.0
      %v1970 = vsel %vm1950, %v1884, 0.0
      %v1971 = vsel %vm1951, %v1885, 0.0
      %v1972 = vsel %vm1952, %v1886, 0.0
      %v1973 = vsel %vm1953, %v1887, 0.0
      %v1974 = vsel %vm1954, %v1888, 0.0
      %v1975 = vsel %vm1955, %v1889, 0.0
      %v1976 = vsel %vm1956, %v1890, 0.0
      %v1977 = vsel %vm1957, %v1891, 0.0
      %v1978 = vsel %vm1958, %v1892, 0.0
      %v1979 = vsel %vm1959, %v1893, 0.0
      %v1980 = vsel %vm1960, %v1894, 0.0
      %v1981 = vsel %vm1961, %v1895, 0.0
      %v1982 = vsel %vm1962, %v1896, 0.0
      %v1983 = vsel %vm1963, %v1897, 0.0
      %v1984 = vsel %vm1964, %v1898, 0.0
      %v1985 = vsel %vm1965, %v1899, 0.0
      %v1986 = vsel %vm1966, %v1900, 0.0
      %v1987 = vsel %vm1967, %v1901, 0.0
      %vm1988 = vcmask 64512
      %1989 = vst.msk [vmem:[#allocation2] sm:$0xff] %vm1988, 0.0
      %1990 = vst.msk [vmem:[#allocation2 + $0x8] sm:$0xff] %vm1988, 0.0
      %vm1991 = vcmask 58368
      %1992 = vst.msk [vmem:[#allocation2 + $0x10] sm:$0x3] %vm1991, 0.0
      %1993 = vst.msk [vmem:[#allocation2 + $0x18] sm:$0xff] %vm1988, 0.0
      %1994 = vst.msk [vmem:[#allocation2 + $0x20] sm:$0xff] %vm1988, 0.0
      %1995 = vst.msk [vmem:[#allocation2 + $0x28] sm:$0x3] %vm1991, 0.0
      %1996 = vst.msk [vmem:[#allocation2 + $0x30] sm:$0xff] %vm1988, 0.0
      %1997 = vst.msk [vmem:[#allocation2 + $0x38] sm:$0xff] %vm1988, 0.0
      %1998 = vst.msk [vmem:[#allocation2 + $0x40] sm:$0x3] %vm1991, 0.0
      %1999 = vst.msk [vmem:[#allocation2 + $0x48] sm:$0xff] %vm1988, 0.0
      %2000 = vst.msk [vmem:[#allocation2 + $0x50] sm:$0xff] %vm1988, 0.0
      %2001 = vst.msk [vmem:[#allocation2 + $0x58] sm:$0x3] %vm1991, 0.0
      %2002 = vst.msk [vmem:[#allocation2 + $0x60] sm:$0xff] %vm1988, 0.0
      %2003 = vst.msk [vmem:[#allocation2 + $0x68] sm:$0xff] %vm1988, 0.0
      %2004 = vst.msk [vmem:[#allocation2 + $0x70] sm:$0x3] %vm1991, 0.0
      %2005 = vst.msk [vmem:[#allocation2 + $0x78] sm:$0xff] %vm1988, 0.0
      %2006 = vst.msk [vmem:[#allocation2 + $0x80] sm:$0xff] %vm1988, 0.0
      %2007 = vst.msk [vmem:[#allocation2 + $0x88] sm:$0x3] %vm1991, 0.0
      %2008 = vst.msk [vmem:[#allocation2 + $0x90] sm:$0xff] %vm1988, 0.0
      %2009 = vst.msk [vmem:[#allocation2 + $0x98] sm:$0xff] %vm1988, 0.0
      %2010 = vst.msk [vmem:[#allocation2 + $0xa0] sm:$0x3] %vm1991, 0.0
      %2011 = vst.msk [vmem:[#allocation2 + $0xa8] sm:$0xff] %vm1988, 0.0
      %2012 = vst.msk [vmem:[#allocation2 + $0xb0] sm:$0xff] %vm1988, 0.0
      %2013 = vst.msk [vmem:[#allocation2 + $0xb8] sm:$0x3] %vm1991, 0.0
      %2014 = vst.msk [vmem:[#allocation2 + $0xc0] sm:$0xff] %vm1988, 0.0
      %2015 = vst.msk [vmem:[#allocation2 + $0xc8] sm:$0xff] %vm1988, 0.0
      %2016 = vst.msk [vmem:[#allocation2 + $0xd0] sm:$0x3] %vm1991, 0.0
      %2017 = vst.msk [vmem:[#allocation2 + $0xd8] sm:$0xff] %vm1988, 0.0
      %2018 = vst.msk [vmem:[#allocation2 + $0xe0] sm:$0xff] %vm1988, 0.0
      %2019 = vst.msk [vmem:[#allocation2 + $0xe8] sm:$0x3] %vm1991, 0.0
      %2020 = vst.msk [vmem:[#allocation2 + $0x1] sm:$0xff] %vm1988, %v1968
      %2021 = vst.msk [vmem:[#allocation2 + $0x9] sm:$0xff] %vm1988, %v1969
      %2022 = vst.msk [vmem:[#allocation2 + $0x19] sm:$0xff] %vm1988, %v1970
      %2023 = vst.msk [vmem:[#allocation2 + $0x21] sm:$0xff] %vm1988, %v1971
      %2024 = vst.msk [vmem:[#allocation2 + $0x31] sm:$0xff] %vm1988, %v1972
      %2025 = vst.msk [vmem:[#allocation2 + $0x39] sm:$0xff] %vm1988, %v1973
      %2026 = vst.msk [vmem:[#allocation2 + $0x49] sm:$0xff] %vm1988, %v1974
      %2027 = vst.msk [vmem:[#allocation2 + $0x51] sm:$0xff] %vm1988, %v1975
      %2028 = vst.msk [vmem:[#allocation2 + $0x61] sm:$0xff] %vm1988, %v1976
      %2029 = vst.msk [vmem:[#allocation2 + $0x69] sm:$0xff] %vm1988, %v1977
      %2030 = vst.msk [vmem:[#allocation2 + $0x79] sm:$0xff] %vm1988, %v1978
      %2031 = vst.msk [vmem:[#allocation2 + $0x81] sm:$0xff] %vm1988, %v1979
      %2032 = vst.msk [vmem:[#allocation2 + $0x91] sm:$0xff] %vm1988, %v1980
      %2033 = vst.msk [vmem:[#allocation2 + $0x99] sm:$0xff] %vm1988, %v1981
      %2034 = vst.msk [vmem:[#allocation2 + $0xa9] sm:$0xff] %vm1988, %v1982
      %2035 = vst.msk [vmem:[#allocation2 + $0xb1] sm:$0xff] %vm1988, %v1983
      %2036 = vst.msk [vmem:[#allocation2 + $0xc1] sm:$0xff] %vm1988, %v1984
      %2037 = vst.msk [vmem:[#allocation2 + $0xc9] sm:$0xff] %vm1988, %v1985
      %2038 = vst.msk [vmem:[#allocation2 + $0xd9] sm:$0xff] %vm1988, %v1986
      %2039 = vst.msk [vmem:[#allocation2 + $0xe1] sm:$0xff] %vm1988, %v1987
      %v2040 = vld [vmem:[#allocation2] sm:$0xff]
      %v2041 = vld [vmem:[#allocation2 + $0x8] sm:$0xff]
      %v2042 = vld [vmem:[#allocation2 + $0x18] sm:$0xff]
      %v2043 = vld [vmem:[#allocation2 + $0x20] sm:$0xff]
      %v2044 = vld [vmem:[#allocation2 + $0x30] sm:$0xff]
      %v2045 = vld [vmem:[#allocation2 + $0x38] sm:$0xff]
      %v2046 = vld [vmem:[#allocation2 + $0x48] sm:$0xff]
      %v2047 = vld [vmem:[#allocation2 + $0x50] sm:$0xff]
      %v2048 = vld [vmem:[#allocation2 + $0x60] sm:$0xff]
      %v2049 = vld [vmem:[#allocation2 + $0x68] sm:$0xff]
      %v2050 = vld [vmem:[#allocation2 + $0x78] sm:$0xff]
      %v2051 = vld [vmem:[#allocation2 + $0x80] sm:$0xff]
      %v2052 = vld [vmem:[#allocation2 + $0x90] sm:$0xff]
      %v2053 = vld [vmem:[#allocation2 + $0x98] sm:$0xff]
      %v2054 = vld [vmem:[#allocation2 + $0xa8] sm:$0xff]
      %v2055 = vld [vmem:[#allocation2 + $0xb0] sm:$0xff]
      %v2056 = vld [vmem:[%s3] sm:$0xff]
      %v2057 = vld [vmem:[#allocation2 + $0x1] sm:$0xff]
      %v2058 = vld [vmem:[#allocation2 + $0x9] sm:$0xff]
      %v2059 = vld [vmem:[#allocation2 + $0x19] sm:$0xff]
      %v2060 = vld [vmem:[#allocation2 + $0x21] sm:$0xff]
      %v2061 = vld [vmem:[#allocation2 + $0x31] sm:$0xff]
      %v2062 = vld [vmem:[#allocation2 + $0x39] sm:$0xff]
      %v2063 = vld [vmem:[#allocation2 + $0x49] sm:$0xff]
      %v2064 = vld [vmem:[#allocation2 + $0x51] sm:$0xff]
      %v2065 = vld [vmem:[#allocation2 + $0x61] sm:$0xff]
      %v2066 = vld [vmem:[#allocation2 + $0x69] sm:$0xff]
      %v2067 = vld [vmem:[#allocation2 + $0x79] sm:$0xff]
      %v2068 = vld [vmem:[#allocation2 + $0x81] sm:$0xff]
      %v2069 = vld [vmem:[#allocation2 + $0x91] sm:$0xff]
      %v2070 = vld [vmem:[#allocation2 + $0x99] sm:$0xff]
      %v2071 = vld [vmem:[#allocation2 + $0xa9] sm:$0xff]
      %v2072 = vld [vmem:[#allocation2 + $0xb1] sm:$0xff]
      %s2073 = scalar_lea.vmem %s3, 8
      %v2074 = vld [vmem:[%s2073] sm:$0xff]
      %v2076 = vsel %vm1988, %v2057, 0
      %v2079 = vsel %vm1988, %v2058, 0
      %v2082 = vsel %vm1988, %v2059, 0
      %v2085 = vsel %vm1988, %v2060, 0
      %v2088 = vsel %vm1988, %v2061, 0
      %v2091 = vsel %vm1988, %v2062, 0
      %v2094 = vsel %vm1988, %v2063, 0
      %v2097 = vsel %vm1988, %v2064, 0
      %v2100 = vsel %vm1988, %v2065, 0
      %v2103 = vsel %vm1988, %v2066, 0
      %v2106 = vsel %vm1988, %v2067, 0
      %v2109 = vsel %vm1988, %v2068, 0
      %v2112 = vsel %vm1988, %v2069, 0
      %v2115 = vsel %vm1988, %v2070, 0
      %v2118 = vsel %vm1988, %v2071, 0
      %v2121 = vsel %vm1988, %v2072, 0
      %2123 = vmatpush.msra.mxu0 0.0
      %2124 = vmatpush.msra.mxu0 0.0
      %2125 = vmatpush.msra.mxu0 0.0
      %2126 = vmatpush.msra.mxu0 0.0
      %2127 = vmatpush.msra.mxu0 0.0
      %2128 = vmatpush.msra.mxu0 0.0
      %2129 = vmatpush.msra.mxu0 0.0
      %2130 = vmatpush.msra.mxu0 0.0
      %2131 = vmatpush.msra.mxu0 0.0
      %2132 = vmatpush.msra.mxu0 0.0
      %2133 = vmatpush.msra.mxu0 0.0
      %2134 = vmatpush.msra.mxu0 0.0
      %2135 = vmatpush.msra.mxu0 0.0
      %2136 = vmatpush.msra.mxu0 0.0
      %2137 = vmatpush.msra.mxu0 0.0
      %2138 = vmatpush.msra.mxu0 %v2074
      %2139 = vmatmul.f32.gmra.mxu0 %v2076
      %v2140 = vpop.f32.mrf.mxu0
      %v2141 = vadd.f32 0.0, %v2140
      %2142 = vmatmul.f32.gmra.mxu0 %v2079
      %v2143 = vpop.f32.mrf.mxu0
      %v2144 = vadd.f32 0.0, %v2143
      %2145 = vmatmul.f32.gmra.mxu0 %v2082
      %v2146 = vpop.f32.mrf.mxu0
      %v2147 = vadd.f32 0.0, %v2146
      %2148 = vmatmul.f32.gmra.mxu0 %v2085
      %v2149 = vpop.f32.mrf.mxu0
      %v2150 = vadd.f32 0.0, %v2149
      %2151 = vmatmul.f32.gmra.mxu0 %v2088
      %v2152 = vpop.f32.mrf.mxu0
      %v2153 = vadd.f32 0.0, %v2152
      %2154 = vmatmul.f32.gmra.mxu0 %v2091
      %v2155 = vpop.f32.mrf.mxu0
      %v2156 = vadd.f32 0.0, %v2155
      %2157 = vmatmul.f32.gmra.mxu0 %v2094
      %v2158 = vpop.f32.mrf.mxu0
      %v2159 = vadd.f32 0.0, %v2158
      %2160 = vmatmul.f32.gmra.mxu0 %v2097
      %v2161 = vpop.f32.mrf.mxu0
      %v2162 = vadd.f32 0.0, %v2161
      %2163 = vmatmul.f32.gmra.mxu0 %v2100
      %v2164 = vpop.f32.mrf.mxu0
      %v2165 = vadd.f32 0.0, %v2164
      %2166 = vmatmul.f32.gmra.mxu0 %v2103
      %v2167 = vpop.f32.mrf.mxu0
      %v2168 = vadd.f32 0.0, %v2167
      %2169 = vmatmul.f32.gmra.mxu0 %v2106
      %v2170 = vpop.f32.mrf.mxu0
      %v2171 = vadd.f32 0.0, %v2170
      %2172 = vmatmul.f32.gmra.mxu0 %v2109
      %v2173 = vpop.f32.mrf.mxu0
      %v2174 = vadd.f32 0.0, %v2173
      %2175 = vmatmul.f32.gmra.mxu0 %v2112
      %v2176 = vpop.f32.mrf.mxu0
      %v2177 = vadd.f32 0.0, %v2176
      %2178 = vmatmul.f32.gmra.mxu0 %v2115
      %v2179 = vpop.f32.mrf.mxu0
      %v2180 = vadd.f32 0.0, %v2179
      %2181 = vmatmul.f32.gmra.mxu0 %v2118
      %v2182 = vpop.f32.mrf.mxu0
      %v2183 = vadd.f32 0.0, %v2182
      %2184 = vmatmul.f32.gmra.mxu0 %v2121
      %v2185 = vpop.f32.mrf.mxu0
      %v2186 = vadd.f32 0.0, %v2185
      %2187 = vdwg.mxu0
      %v2189 = vsel %vm1988, %v2040, 0
      %v2192 = vsel %vm1988, %v2041, 0
      %v2195 = vsel %vm1988, %v2042, 0
      %v2198 = vsel %vm1988, %v2043, 0
      %v2201 = vsel %vm1988, %v2044, 0
      %v2204 = vsel %vm1988, %v2045, 0
      %v2207 = vsel %vm1988, %v2046, 0
      %v2210 = vsel %vm1988, %v2047, 0
      %v2213 = vsel %vm1988, %v2048, 0
      %v2216 = vsel %vm1988, %v2049, 0
      %v2219 = vsel %vm1988, %v2050, 0
      %v2222 = vsel %vm1988, %v2051, 0
      %v2225 = vsel %vm1988, %v2052, 0
      %v2228 = vsel %vm1988, %v2053, 0
      %v2231 = vsel %vm1988, %v2054, 0
      %v2234 = vsel %vm1988, %v2055, 0
      %2236 = vmatpush.msra.mxu0 0.0
      %2237 = vmatpush.msra.mxu0 0.0
      %2238 = vmatpush.msra.mxu0 0.0
      %2239 = vmatpush.msra.mxu0 0.0
      %2240 = vmatpush.msra.mxu0 0.0
      %2241 = vmatpush.msra.mxu0 0.0
      %2242 = vmatpush.msra.mxu0 0.0
      %2243 = vmatpush.msra.mxu0 0.0
      %2244 = vmatpush.msra.mxu0 0.0
      %2245 = vmatpush.msra.mxu0 0.0
      %2246 = vmatpush.msra.mxu0 0.0
      %2247 = vmatpush.msra.mxu0 0.0
      %2248 = vmatpush.msra.mxu0 0.0
      %2249 = vmatpush.msra.mxu0 0.0
      %2250 = vmatpush.msra.mxu0 0.0
      %2251 = vmatpush.msra.mxu0 %v2056
      %2252 = vmatmul.f32.gmra.mxu0 %v2189
      %v2253 = vpop.f32.mrf.mxu0
      %v2254 = vadd.f32 %v2141, %v2253
      %2255 = vmatmul.f32.gmra.mxu0 %v2192
      %v2256 = vpop.f32.mrf.mxu0
      %v2257 = vadd.f32 %v2144, %v2256
      %2258 = vmatmul.f32.gmra.mxu0 %v2195
      %v2259 = vpop.f32.mrf.mxu0
      %v2260 = vadd.f32 %v2147, %v2259
      %2261 = vmatmul.f32.gmra.mxu0 %v2198
      %v2262 = vpop.f32.mrf.mxu0
      %v2263 = vadd.f32 %v2150, %v2262
      %2264 = vmatmul.f32.gmra.mxu0 %v2201
      %v2265 = vpop.f32.mrf.mxu0
      %v2266 = vadd.f32 %v2153, %v2265
      %2267 = vmatmul.f32.gmra.mxu0 %v2204
      %v2268 = vpop.f32.mrf.mxu0
      %v2269 = vadd.f32 %v2156, %v2268
      %2270 = vmatmul.f32.gmra.mxu0 %v2207
      %v2271 = vpop.f32.mrf.mxu0
      %v2272 = vadd.f32 %v2159, %v2271
      %2273 = vmatmul.f32.gmra.mxu0 %v2210
      %v2274 = vpop.f32.mrf.mxu0
      %v2275 = vadd.f32 %v2162, %v2274
      %2276 = vmatmul.f32.gmra.mxu0 %v2213
      %v2277 = vpop.f32.mrf.mxu0
      %v2278 = vadd.f32 %v2165, %v2277
      %2279 = vmatmul.f32.gmra.mxu0 %v2216
      %v2280 = vpop.f32.mrf.mxu0
      %v2281 = vadd.f32 %v2168, %v2280
      %2282 = vmatmul.f32.gmra.mxu0 %v2219
      %v2283 = vpop.f32.mrf.mxu0
      %v2284 = vadd.f32 %v2171, %v2283
      %2285 = vmatmul.f32.gmra.mxu0 %v2222
      %v2286 = vpop.f32.mrf.mxu0
      %v2287 = vadd.f32 %v2174, %v2286
      %2288 = vmatmul.f32.gmra.mxu0 %v2225
      %v2289 = vpop.f32.mrf.mxu0
      %v2290 = vadd.f32 %v2177, %v2289
      %2291 = vmatmul.f32.gmra.mxu0 %v2228
      %v2292 = vpop.f32.mrf.mxu0
      %v2293 = vadd.f32 %v2180, %v2292
      %2294 = vmatmul.f32.gmra.mxu0 %v2231
      %v2295 = vpop.f32.mrf.mxu0
      %v2296 = vadd.f32 %v2183, %v2295
      %2297 = vmatmul.f32.gmra.mxu0 %v2234
      %v2298 = vpop.f32.mrf.mxu0
      %v2299 = vadd.f32 %v2186, %v2298
      %2300 = vdwg.mxu0
      %v2301 = vld [vmem:[#allocation2 + $0x2] sm:$0xff]
      %v2302 = vld [vmem:[#allocation2 + $0xa] sm:$0xff]
      %v2303 = vld [vmem:[#allocation2 + $0x1a] sm:$0xff]
      %v2304 = vld [vmem:[#allocation2 + $0x22] sm:$0xff]
      %v2305 = vld [vmem:[#allocation2 + $0x32] sm:$0xff]
      %v2306 = vld [vmem:[#allocation2 + $0x3a] sm:$0xff]
      %v2307 = vld [vmem:[#allocation2 + $0x4a] sm:$0xff]
      %v2308 = vld [vmem:[#allocation2 + $0x52] sm:$0xff]
      %v2309 = vld [vmem:[#allocation2 + $0x62] sm:$0xff]
      %v2310 = vld [vmem:[#allocation2 + $0x6a] sm:$0xff]
      %v2311 = vld [vmem:[#allocation2 + $0x7a] sm:$0xff]
      %v2312 = vld [vmem:[#allocation2 + $0x82] sm:$0xff]
      %v2313 = vld [vmem:[#allocation2 + $0x92] sm:$0xff]
      %v2314 = vld [vmem:[#allocation2 + $0x9a] sm:$0xff]
      %v2315 = vld [vmem:[#allocation2 + $0xaa] sm:$0xff]
      %v2316 = vld [vmem:[#allocation2 + $0xb2] sm:$0xff]
      %s2317 = scalar_lea.vmem %s3, 16
      %v2318 = vld [vmem:[%s2317] sm:$0xff]
      %v2320 = vsel %vm1988, %v2301, 0
      %v2323 = vsel %vm1988, %v2302, 0
      %v2326 = vsel %vm1988, %v2303, 0
      %v2329 = vsel %vm1988, %v2304, 0
      %v2332 = vsel %vm1988, %v2305, 0
      %v2335 = vsel %vm1988, %v2306, 0
      %v2338 = vsel %vm1988, %v2307, 0
      %v2341 = vsel %vm1988, %v2308, 0
      %v2344 = vsel %vm1988, %v2309, 0
      %v2347 = vsel %vm1988, %v2310, 0
      %v2350 = vsel %vm1988, %v2311, 0
      %v2353 = vsel %vm1988, %v2312, 0
      %v2356 = vsel %vm1988, %v2313, 0
      %v2359 = vsel %vm1988, %v2314, 0
      %v2362 = vsel %vm1988, %v2315, 0
      %v2365 = vsel %vm1988, %v2316, 0
      %2367 = vmatpush.msra.mxu0 0.0
      %2368 = vmatpush.msra.mxu0 0.0
      %2369 = vmatpush.msra.mxu0 0.0
      %2370 = vmatpush.msra.mxu0 0.0
      %2371 = vmatpush.msra.mxu0 0.0
      %2372 = vmatpush.msra.mxu0 0.0
      %2373 = vmatpush.msra.mxu0 0.0
      %2374 = vmatpush.msra.mxu0 0.0
      %2375 = vmatpush.msra.mxu0 0.0
      %2376 = vmatpush.msra.mxu0 0.0
      %2377 = vmatpush.msra.mxu0 0.0
      %2378 = vmatpush.msra.mxu0 0.0
      %2379 = vmatpush.msra.mxu0 0.0
      %2380 = vmatpush.msra.mxu0 0.0
      %2381 = vmatpush.msra.mxu0 0.0
      %2382 = vmatpush.msra.mxu0 %v2318
      %2383 = vmatmul.f32.gmra.mxu0 %v2320
      %v2384 = vpop.f32.mrf.mxu0
      %v2385 = vadd.f32 0.0, %v2384
      %2386 = vmatmul.f32.gmra.mxu0 %v2323
      %v2387 = vpop.f32.mrf.mxu0
      %v2388 = vadd.f32 0.0, %v2387
      %2389 = vmatmul.f32.gmra.mxu0 %v2326
      %v2390 = vpop.f32.mrf.mxu0
      %v2391 = vadd.f32 0.0, %v2390
      %2392 = vmatmul.f32.gmra.mxu0 %v2329
      %v2393 = vpop.f32.mrf.mxu0
      %v2394 = vadd.f32 0.0, %v2393
      %2395 = vmatmul.f32.gmra.mxu0 %v2332
      %v2396 = vpop.f32.mrf.mxu0
      %v2397 = vadd.f32 0.0, %v2396
      %2398 = vmatmul.f32.gmra.mxu0 %v2335
      %v2399 = vpop.f32.mrf.mxu0
      %v2400 = vadd.f32 0.0, %v2399
      %2401 = vmatmul.f32.gmra.mxu0 %v2338
      %v2402 = vpop.f32.mrf.mxu0
      %v2403 = vadd.f32 0.0, %v2402
      %2404 = vmatmul.f32.gmra.mxu0 %v2341
      %v2405 = vpop.f32.mrf.mxu0
      %v2406 = vadd.f32 0.0, %v2405
      %2407 = vmatmul.f32.gmra.mxu0 %v2344
      %v2408 = vpop.f32.mrf.mxu0
      %v2409 = vadd.f32 0.0, %v2408
      %2410 = vmatmul.f32.gmra.mxu0 %v2347
      %v2411 = vpop.f32.mrf.mxu0
      %v2412 = vadd.f32 0.0, %v2411
      %2413 = vmatmul.f32.gmra.mxu0 %v2350
      %v2414 = vpop.f32.mrf.mxu0
      %v2415 = vadd.f32 0.0, %v2414
      %2416 = vmatmul.f32.gmra.mxu0 %v2353
      %v2417 = vpop.f32.mrf.mxu0
      %v2418 = vadd.f32 0.0, %v2417
      %2419 = vmatmul.f32.gmra.mxu0 %v2356
      %v2420 = vpop.f32.mrf.mxu0
      %v2421 = vadd.f32 0.0, %v2420
      %2422 = vmatmul.f32.gmra.mxu0 %v2359
      %v2423 = vpop.f32.mrf.mxu0
      %v2424 = vadd.f32 0.0, %v2423
      %2425 = vmatmul.f32.gmra.mxu0 %v2362
      %v2426 = vpop.f32.mrf.mxu0
      %v2427 = vadd.f32 0.0, %v2426
      %2428 = vmatmul.f32.gmra.mxu0 %v2365
      %v2429 = vpop.f32.mrf.mxu0
      %v2430 = vadd.f32 0.0, %v2429
      %2431 = vdwg.mxu0
      %v2432 = vadd.f32 %v2254, %v2385
      %v2433 = vadd.f32 %v2257, %v2388
      %v2434 = vadd.f32 %v2260, %v2391
      %v2435 = vadd.f32 %v2263, %v2394
      %v2436 = vadd.f32 %v2266, %v2397
      %v2437 = vadd.f32 %v2269, %v2400
      %v2438 = vadd.f32 %v2272, %v2403
      %v2439 = vadd.f32 %v2275, %v2406
      %v2440 = vadd.f32 %v2278, %v2409
      %v2441 = vadd.f32 %v2281, %v2412
      %v2442 = vadd.f32 %v2284, %v2415
      %v2443 = vadd.f32 %v2287, %v2418
      %v2444 = vadd.f32 %v2290, %v2421
      %v2445 = vadd.f32 %v2293, %v2424
      %v2446 = vadd.f32 %v2296, %v2427
      %v2447 = vadd.f32 %v2299, %v2430
      %s2448 = scalar_lea.vmem [#allocation2], 24
      %v2449 = vld [vmem:[%s2448] sm:$0xff]
      %v2450 = vld [vmem:[%s2448 + $0x8] sm:$0xff]
      %v2451 = vld [vmem:[%s2448 + $0x18] sm:$0xff]
      %v2452 = vld [vmem:[%s2448 + $0x20] sm:$0xff]
      %v2453 = vld [vmem:[%s2448 + $0x30] sm:$0xff]
      %v2454 = vld [vmem:[%s2448 + $0x38] sm:$0xff]
      %v2455 = vld [vmem:[%s2448 + $0x48] sm:$0xff]
      %v2456 = vld [vmem:[%s2448 + $0x50] sm:$0xff]
      %v2457 = vld [vmem:[%s2448 + $0x60] sm:$0xff]
      %v2458 = vld [vmem:[%s2448 + $0x68] sm:$0xff]
      %v2459 = vld [vmem:[%s2448 + $0x78] sm:$0xff]
      %v2460 = vld [vmem:[%s2448 + $0x80] sm:$0xff]
      %v2461 = vld [vmem:[%s2448 + $0x90] sm:$0xff]
      %v2462 = vld [vmem:[%s2448 + $0x98] sm:$0xff]
      %v2463 = vld [vmem:[%s2448 + $0xa8] sm:$0xff]
      %v2464 = vld [vmem:[%s2448 + $0xb0] sm:$0xff]
      %s2465 = scalar_lea.vmem %s3, 24
      %v2466 = vld [vmem:[%s2465] sm:$0xff]
      %v2468 = vsel %vm1988, %v2449, 0
      %v2471 = vsel %vm1988, %v2450, 0
      %v2474 = vsel %vm1988, %v2451, 0
      %v2477 = vsel %vm1988, %v2452, 0
      %v2480 = vsel %vm1988, %v2453, 0
      %v2483 = vsel %vm1988, %v2454, 0
      %v2486 = vsel %vm1988, %v2455, 0
      %v2489 = vsel %vm1988, %v2456, 0
      %v2492 = vsel %vm1988, %v2457, 0
      %v2495 = vsel %vm1988, %v2458, 0
      %v2498 = vsel %vm1988, %v2459, 0
      %v2501 = vsel %vm1988, %v2460, 0
      %v2504 = vsel %vm1988, %v2461, 0
      %v2507 = vsel %vm1988, %v2462, 0
      %v2510 = vsel %vm1988, %v2463, 0
      %v2513 = vsel %vm1988, %v2464, 0
      %2515 = vmatpush.msra.mxu0 0.0
      %2516 = vmatpush.msra.mxu0 0.0
      %2517 = vmatpush.msra.mxu0 0.0
      %2518 = vmatpush.msra.mxu0 0.0
      %2519 = vmatpush.msra.mxu0 0.0
      %2520 = vmatpush.msra.mxu0 0.0
      %2521 = vmatpush.msra.mxu0 0.0
      %2522 = vmatpush.msra.mxu0 0.0
      %2523 = vmatpush.msra.mxu0 0.0
      %2524 = vmatpush.msra.mxu0 0.0
      %2525 = vmatpush.msra.mxu0 0.0
      %2526 = vmatpush.msra.mxu0 0.0
      %2527 = vmatpush.msra.mxu0 0.0
      %2528 = vmatpush.msra.mxu0 0.0
      %2529 = vmatpush.msra.mxu0 0.0
      %2530 = vmatpush.msra.mxu0 %v2466
      %2531 = vmatmul.f32.gmra.mxu0 %v2468
      %v2532 = vpop.f32.mrf.mxu0
      %v2533 = vadd.f32 0.0, %v2532
      %2534 = vmatmul.f32.gmra.mxu0 %v2471
      %v2535 = vpop.f32.mrf.mxu0
      %v2536 = vadd.f32 0.0, %v2535
      %2537 = vmatmul.f32.gmra.mxu0 %v2474
      %v2538 = vpop.f32.mrf.mxu0
      %v2539 = vadd.f32 0.0, %v2538
      %2540 = vmatmul.f32.gmra.mxu0 %v2477
      %v2541 = vpop.f32.mrf.mxu0
      %v2542 = vadd.f32 0.0, %v2541
      %2543 = vmatmul.f32.gmra.mxu0 %v2480
      %v2544 = vpop.f32.mrf.mxu0
      %v2545 = vadd.f32 0.0, %v2544
      %2546 = vmatmul.f32.gmra.mxu0 %v2483
      %v2547 = vpop.f32.mrf.mxu0
      %v2548 = vadd.f32 0.0, %v2547
      %2549 = vmatmul.f32.gmra.mxu0 %v2486
      %v2550 = vpop.f32.mrf.mxu0
      %v2551 = vadd.f32 0.0, %v2550
      %2552 = vmatmul.f32.gmra.mxu0 %v2489
      %v2553 = vpop.f32.mrf.mxu0
      %v2554 = vadd.f32 0.0, %v2553
      %2555 = vmatmul.f32.gmra.mxu0 %v2492
      %v2556 = vpop.f32.mrf.mxu0
      %v2557 = vadd.f32 0.0, %v2556
      %2558 = vmatmul.f32.gmra.mxu0 %v2495
      %v2559 = vpop.f32.mrf.mxu0
      %v2560 = vadd.f32 0.0, %v2559
      %2561 = vmatmul.f32.gmra.mxu0 %v2498
      %v2562 = vpop.f32.mrf.mxu0
      %v2563 = vadd.f32 0.0, %v2562
      %2564 = vmatmul.f32.gmra.mxu0 %v2501
      %v2565 = vpop.f32.mrf.mxu0
      %v2566 = vadd.f32 0.0, %v2565
      %2567 = vmatmul.f32.gmra.mxu0 %v2504
      %v2568 = vpop.f32.mrf.mxu0
      %v2569 = vadd.f32 0.0, %v2568
      %2570 = vmatmul.f32.gmra.mxu0 %v2507
      %v2571 = vpop.f32.mrf.mxu0
      %v2572 = vadd.f32 0.0, %v2571
      %2573 = vmatmul.f32.gmra.mxu0 %v2510
      %v2574 = vpop.f32.mrf.mxu0
      %v2575 = vadd.f32 0.0, %v2574
      %2576 = vmatmul.f32.gmra.mxu0 %v2513
      %v2577 = vpop.f32.mrf.mxu0
      %v2578 = vadd.f32 0.0, %v2577
      %2579 = vdwg.mxu0
      %v2580 = vadd.f32 %v2432, %v2533
      %v2581 = vadd.f32 %v2433, %v2536
      %v2582 = vadd.f32 %v2434, %v2539
      %v2583 = vadd.f32 %v2435, %v2542
      %v2584 = vadd.f32 %v2436, %v2545
      %v2585 = vadd.f32 %v2437, %v2548
      %v2586 = vadd.f32 %v2438, %v2551
      %v2587 = vadd.f32 %v2439, %v2554
      %v2588 = vadd.f32 %v2440, %v2557
      %v2589 = vadd.f32 %v2441, %v2560
      %v2590 = vadd.f32 %v2442, %v2563
      %v2591 = vadd.f32 %v2443, %v2566
      %v2592 = vadd.f32 %v2444, %v2569
      %v2593 = vadd.f32 %v2445, %v2572
      %v2594 = vadd.f32 %v2446, %v2575
      %v2595 = vadd.f32 %v2447, %v2578
      %v2596 = vld [vmem:[%s2448 + $0x1] sm:$0xff]
      %v2597 = vld [vmem:[%s2448 + $0x9] sm:$0xff]
      %v2598 = vld [vmem:[%s2448 + $0x19] sm:$0xff]
      %v2599 = vld [vmem:[%s2448 + $0x21] sm:$0xff]
      %v2600 = vld [vmem:[%s2448 + $0x31] sm:$0xff]
      %v2601 = vld [vmem:[%s2448 + $0x39] sm:$0xff]
      %v2602 = vld [vmem:[%s2448 + $0x49] sm:$0xff]
      %v2603 = vld [vmem:[%s2448 + $0x51] sm:$0xff]
      %v2604 = vld [vmem:[%s2448 + $0x61] sm:$0xff]
      %v2605 = vld [vmem:[%s2448 + $0x69] sm:$0xff]
      %v2606 = vld [vmem:[%s2448 + $0x79] sm:$0xff]
      %v2607 = vld [vmem:[%s2448 + $0x81] sm:$0xff]
      %v2608 = vld [vmem:[%s2448 + $0x91] sm:$0xff]
      %v2609 = vld [vmem:[%s2448 + $0x99] sm:$0xff]
      %v2610 = vld [vmem:[%s2448 + $0xa9] sm:$0xff]
      %v2611 = vld [vmem:[%s2448 + $0xb1] sm:$0xff]
      %s2612 = scalar_lea.vmem %s3, 32
      %v2613 = vld [vmem:[%s2612] sm:$0xff]
      %v2615 = vsel %vm1988, %v2596, 0
      %v2618 = vsel %vm1988, %v2597, 0
      %v2621 = vsel %vm1988, %v2598, 0
      %v2624 = vsel %vm1988, %v2599, 0
      %v2627 = vsel %vm1988, %v2600, 0
      %v2630 = vsel %vm1988, %v2601, 0
      %v2633 = vsel %vm1988, %v2602, 0
      %v2636 = vsel %vm1988, %v2603, 0
      %v2639 = vsel %vm1988, %v2604, 0
      %v2642 = vsel %vm1988, %v2605, 0
      %v2645 = vsel %vm1988, %v2606, 0
      %v2648 = vsel %vm1988, %v2607, 0
      %v2651 = vsel %vm1988, %v2608, 0
      %v2654 = vsel %vm1988, %v2609, 0
      %v2657 = vsel %vm1988, %v2610, 0
      %v2660 = vsel %vm1988, %v2611, 0
      %2662 = vmatpush.msra.mxu0 0.0
      %2663 = vmatpush.msra.mxu0 0.0
      %2664 = vmatpush.msra.mxu0 0.0
      %2665 = vmatpush.msra.mxu0 0.0
      %2666 = vmatpush.msra.mxu0 0.0
      %2667 = vmatpush.msra.mxu0 0.0
      %2668 = vmatpush.msra.mxu0 0.0
      %2669 = vmatpush.msra.mxu0 0.0
      %2670 = vmatpush.msra.mxu0 0.0
      %2671 = vmatpush.msra.mxu0 0.0
      %2672 = vmatpush.msra.mxu0 0.0
      %2673 = vmatpush.msra.mxu0 0.0
      %2674 = vmatpush.msra.mxu0 0.0
      %2675 = vmatpush.msra.mxu0 0.0
      %2676 = vmatpush.msra.mxu0 0.0
      %2677 = vmatpush.msra.mxu0 %v2613
      %2678 = vmatmul.f32.gmra.mxu0 %v2615
      %v2679 = vpop.f32.mrf.mxu0
      %v2680 = vadd.f32 0.0, %v2679
      %2681 = vmatmul.f32.gmra.mxu0 %v2618
      %v2682 = vpop.f32.mrf.mxu0
      %v2683 = vadd.f32 0.0, %v2682
      %2684 = vmatmul.f32.gmra.mxu0 %v2621
      %v2685 = vpop.f32.mrf.mxu0
      %v2686 = vadd.f32 0.0, %v2685
      %2687 = vmatmul.f32.gmra.mxu0 %v2624
      %v2688 = vpop.f32.mrf.mxu0
      %v2689 = vadd.f32 0.0, %v2688
      %2690 = vmatmul.f32.gmra.mxu0 %v2627
      %v2691 = vpop.f32.mrf.mxu0
      %v2692 = vadd.f32 0.0, %v2691
      %2693 = vmatmul.f32.gmra.mxu0 %v2630
      %v2694 = vpop.f32.mrf.mxu0
      %v2695 = vadd.f32 0.0, %v2694
      %2696 = vmatmul.f32.gmra.mxu0 %v2633
      %v2697 = vpop.f32.mrf.mxu0
      %v2698 = vadd.f32 0.0, %v2697
      %2699 = vmatmul.f32.gmra.mxu0 %v2636
      %v2700 = vpop.f32.mrf.mxu0
      %v2701 = vadd.f32 0.0, %v2700
      %2702 = vmatmul.f32.gmra.mxu0 %v2639
      %v2703 = vpop.f32.mrf.mxu0
      %v2704 = vadd.f32 0.0, %v2703
      %2705 = vmatmul.f32.gmra.mxu0 %v2642
      %v2706 = vpop.f32.mrf.mxu0
      %v2707 = vadd.f32 0.0, %v2706
      %2708 = vmatmul.f32.gmra.mxu0 %v2645
      %v2709 = vpop.f32.mrf.mxu0
      %v2710 = vadd.f32 0.0, %v2709
      %2711 = vmatmul.f32.gmra.mxu0 %v2648
      %v2712 = vpop.f32.mrf.mxu0
      %v2713 = vadd.f32 0.0, %v2712
      %2714 = vmatmul.f32.gmra.mxu0 %v2651
      %v2715 = vpop.f32.mrf.mxu0
      %v2716 = vadd.f32 0.0, %v2715
      %2717 = vmatmul.f32.gmra.mxu0 %v2654
      %v2718 = vpop.f32.mrf.mxu0
      %v2719 = vadd.f32 0.0, %v2718
      %2720 = vmatmul.f32.gmra.mxu0 %v2657
      %v2721 = vpop.f32.mrf.mxu0
      %v2722 = vadd.f32 0.0, %v2721
      %2723 = vmatmul.f32.gmra.mxu0 %v2660
      %v2724 = vpop.f32.mrf.mxu0
      %v2725 = vadd.f32 0.0, %v2724
      %2726 = vdwg.mxu0
      %v2727 = vadd.f32 %v2580, %v2680
      %v2728 = vadd.f32 %v2581, %v2683
      %v2729 = vadd.f32 %v2582, %v2686
      %v2730 = vadd.f32 %v2583, %v2689
      %v2731 = vadd.f32 %v2584, %v2692
      %v2732 = vadd.f32 %v2585, %v2695
      %v2733 = vadd.f32 %v2586, %v2698
      %v2734 = vadd.f32 %v2587, %v2701
      %v2735 = vadd.f32 %v2588, %v2704
      %v2736 = vadd.f32 %v2589, %v2707
      %v2737 = vadd.f32 %v2590, %v2710
      %v2738 = vadd.f32 %v2591, %v2713
      %v2739 = vadd.f32 %v2592, %v2716
      %v2740 = vadd.f32 %v2593, %v2719
      %v2741 = vadd.f32 %v2594, %v2722
      %v2742 = vadd.f32 %v2595, %v2725
      %v2743 = vld [vmem:[%s2448 + $0x2] sm:$0xff]
      %v2744 = vld [vmem:[%s2448 + $0xa] sm:$0xff]
      %v2745 = vld [vmem:[%s2448 + $0x1a] sm:$0xff]
      %v2746 = vld [vmem:[%s2448 + $0x22] sm:$0xff]
      %v2747 = vld [vmem:[%s2448 + $0x32] sm:$0xff]
      %v2748 = vld [vmem:[%s2448 + $0x3a] sm:$0xff]
      %v2749 = vld [vmem:[%s2448 + $0x4a] sm:$0xff]
      %v2750 = vld [vmem:[%s2448 + $0x52] sm:$0xff]
      %v2751 = vld [vmem:[%s2448 + $0x62] sm:$0xff]
      %v2752 = vld [vmem:[%s2448 + $0x6a] sm:$0xff]
      %v2753 = vld [vmem:[%s2448 + $0x7a] sm:$0xff]
      %v2754 = vld [vmem:[%s2448 + $0x82] sm:$0xff]
      %v2755 = vld [vmem:[%s2448 + $0x92] sm:$0xff]
      %v2756 = vld [vmem:[%s2448 + $0x9a] sm:$0xff]
      %v2757 = vld [vmem:[%s2448 + $0xaa] sm:$0xff]
      %v2758 = vld [vmem:[%s2448 + $0xb2] sm:$0xff]
      %s2759 = scalar_lea.vmem %s3, 40
      %v2760 = vld [vmem:[%s2759] sm:$0xff]
      %v2762 = vsel %vm1988, %v2743, 0
      %v2765 = vsel %vm1988, %v2744, 0
      %v2768 = vsel %vm1988, %v2745, 0
      %v2771 = vsel %vm1988, %v2746, 0
      %v2774 = vsel %vm1988, %v2747, 0
      %v2777 = vsel %vm1988, %v2748, 0
      %v2780 = vsel %vm1988, %v2749, 0
      %v2783 = vsel %vm1988, %v2750, 0
      %v2786 = vsel %vm1988, %v2751, 0
      %v2789 = vsel %vm1988, %v2752, 0
      %v2792 = vsel %vm1988, %v2753, 0
      %v2795 = vsel %vm1988, %v2754, 0
      %v2798 = vsel %vm1988, %v2755, 0
      %v2801 = vsel %vm1988, %v2756, 0
      %v2804 = vsel %vm1988, %v2757, 0
      %v2807 = vsel %vm1988, %v2758, 0
      %2809 = vmatpush.msra.mxu0 0.0
      %2810 = vmatpush.msra.mxu0 0.0
      %2811 = vmatpush.msra.mxu0 0.0
      %2812 = vmatpush.msra.mxu0 0.0
      %2813 = vmatpush.msra.mxu0 0.0
      %2814 = vmatpush.msra.mxu0 0.0
      %2815 = vmatpush.msra.mxu0 0.0
      %2816 = vmatpush.msra.mxu0 0.0
      %2817 = vmatpush.msra.mxu0 0.0
      %2818 = vmatpush.msra.mxu0 0.0
      %2819 = vmatpush.msra.mxu0 0.0
      %2820 = vmatpush.msra.mxu0 0.0
      %2821 = vmatpush.msra.mxu0 0.0
      %2822 = vmatpush.msra.mxu0 0.0
      %2823 = vmatpush.msra.mxu0 0.0
      %2824 = vmatpush.msra.mxu0 %v2760
      %2825 = vmatmul.f32.gmra.mxu0 %v2762
      %v2826 = vpop.f32.mrf.mxu0
      %v2827 = vadd.f32 0.0, %v2826
      %2828 = vmatmul.f32.gmra.mxu0 %v2765
      %v2829 = vpop.f32.mrf.mxu0
      %v2830 = vadd.f32 0.0, %v2829
      %2831 = vmatmul.f32.gmra.mxu0 %v2768
      %v2832 = vpop.f32.mrf.mxu0
      %v2833 = vadd.f32 0.0, %v2832
      %2834 = vmatmul.f32.gmra.mxu0 %v2771
      %v2835 = vpop.f32.mrf.mxu0
      %v2836 = vadd.f32 0.0, %v2835
      %2837 = vmatmul.f32.gmra.mxu0 %v2774
      %v2838 = vpop.f32.mrf.mxu0
      %v2839 = vadd.f32 0.0, %v2838
      %2840 = vmatmul.f32.gmra.mxu0 %v2777
      %v2841 = vpop.f32.mrf.mxu0
      %v2842 = vadd.f32 0.0, %v2841
      %2843 = vmatmul.f32.gmra.mxu0 %v2780
      %v2844 = vpop.f32.mrf.mxu0
      %v2845 = vadd.f32 0.0, %v2844
      %2846 = vmatmul.f32.gmra.mxu0 %v2783
      %v2847 = vpop.f32.mrf.mxu0
      %v2848 = vadd.f32 0.0, %v2847
      %2849 = vmatmul.f32.gmra.mxu0 %v2786
      %v2850 = vpop.f32.mrf.mxu0
      %v2851 = vadd.f32 0.0, %v2850
      %2852 = vmatmul.f32.gmra.mxu0 %v2789
      %v2853 = vpop.f32.mrf.mxu0
      %v2854 = vadd.f32 0.0, %v2853
      %2855 = vmatmul.f32.gmra.mxu0 %v2792
      %v2856 = vpop.f32.mrf.mxu0
      %v2857 = vadd.f32 0.0, %v2856
      %2858 = vmatmul.f32.gmra.mxu0 %v2795
      %v2859 = vpop.f32.mrf.mxu0
      %v2860 = vadd.f32 0.0, %v2859
      %2861 = vmatmul.f32.gmra.mxu0 %v2798
      %v2862 = vpop.f32.mrf.mxu0
      %v2863 = vadd.f32 0.0, %v2862
      %2864 = vmatmul.f32.gmra.mxu0 %v2801
      %v2865 = vpop.f32.mrf.mxu0
      %v2866 = vadd.f32 0.0, %v2865
      %2867 = vmatmul.f32.gmra.mxu0 %v2804
      %v2868 = vpop.f32.mrf.mxu0
      %v2869 = vadd.f32 0.0, %v2868
      %2870 = vmatmul.f32.gmra.mxu0 %v2807
      %v2871 = vpop.f32.mrf.mxu0
      %v2872 = vadd.f32 0.0, %v2871
      %2873 = vdwg.mxu0
      %v2874 = vadd.f32 %v2727, %v2827
      %v2875 = vadd.f32 %v2728, %v2830
      %v2876 = vadd.f32 %v2729, %v2833
      %v2877 = vadd.f32 %v2730, %v2836
      %v2878 = vadd.f32 %v2731, %v2839
      %v2879 = vadd.f32 %v2732, %v2842
      %v2880 = vadd.f32 %v2733, %v2845
      %v2881 = vadd.f32 %v2734, %v2848
      %v2882 = vadd.f32 %v2735, %v2851
      %v2883 = vadd.f32 %v2736, %v2854
      %v2884 = vadd.f32 %v2737, %v2857
      %v2885 = vadd.f32 %v2738, %v2860
      %v2886 = vadd.f32 %v2739, %v2863
      %v2887 = vadd.f32 %v2740, %v2866
      %v2888 = vadd.f32 %v2741, %v2869
      %v2889 = vadd.f32 %v2742, %v2872
      %s2890 = scalar_lea.vmem [#allocation2], 48
      %v2891 = vld [vmem:[%s2890] sm:$0xff]
      %v2892 = vld [vmem:[%s2890 + $0x8] sm:$0xff]
      %v2893 = vld [vmem:[%s2890 + $0x18] sm:$0xff]
      %v2894 = vld [vmem:[%s2890 + $0x20] sm:$0xff]
      %v2895 = vld [vmem:[%s2890 + $0x30] sm:$0xff]
      %v2896 = vld [vmem:[%s2890 + $0x38] sm:$0xff]
      %v2897 = vld [vmem:[%s2890 + $0x48] sm:$0xff]
      %v2898 = vld [vmem:[%s2890 + $0x50] sm:$0xff]
      %v2899 = vld [vmem:[%s2890 + $0x60] sm:$0xff]
      %v2900 = vld [vmem:[%s2890 + $0x68] sm:$0xff]
      %v2901 = vld [vmem:[%s2890 + $0x78] sm:$0xff]
      %v2902 = vld [vmem:[%s2890 + $0x80] sm:$0xff]
      %v2903 = vld [vmem:[%s2890 + $0x90] sm:$0xff]
      %v2904 = vld [vmem:[%s2890 + $0x98] sm:$0xff]
      %v2905 = vld [vmem:[%s2890 + $0xa8] sm:$0xff]
      %v2906 = vld [vmem:[%s2890 + $0xb0] sm:$0xff]
      %s2907 = scalar_lea.vmem %s3, 48
      %v2908 = vld [vmem:[%s2907] sm:$0xff]
      %v2910 = vsel %vm1988, %v2891, 0
      %v2913 = vsel %vm1988, %v2892, 0
      %v2916 = vsel %vm1988, %v2893, 0
      %v2919 = vsel %vm1988, %v2894, 0
      %v2922 = vsel %vm1988, %v2895, 0
      %v2925 = vsel %vm1988, %v2896, 0
      %v2928 = vsel %vm1988, %v2897, 0
      %v2931 = vsel %vm1988, %v2898, 0
      %v2934 = vsel %vm1988, %v2899, 0
      %v2937 = vsel %vm1988, %v2900, 0
      %v2940 = vsel %vm1988, %v2901, 0
      %v2943 = vsel %vm1988, %v2902, 0
      %v2946 = vsel %vm1988, %v2903, 0
      %v2949 = vsel %vm1988, %v2904, 0
      %v2952 = vsel %vm1988, %v2905, 0
      %v2955 = vsel %vm1988, %v2906, 0
      %2957 = vmatpush.msra.mxu0 0.0
      %2958 = vmatpush.msra.mxu0 0.0
      %2959 = vmatpush.msra.mxu0 0.0
      %2960 = vmatpush.msra.mxu0 0.0
      %2961 = vmatpush.msra.mxu0 0.0
      %2962 = vmatpush.msra.mxu0 0.0
      %2963 = vmatpush.msra.mxu0 0.0
      %2964 = vmatpush.msra.mxu0 0.0
      %2965 = vmatpush.msra.mxu0 0.0
      %2966 = vmatpush.msra.mxu0 0.0
      %2967 = vmatpush.msra.mxu0 0.0
      %2968 = vmatpush.msra.mxu0 0.0
      %2969 = vmatpush.msra.mxu0 0.0
      %2970 = vmatpush.msra.mxu0 0.0
      %2971 = vmatpush.msra.mxu0 0.0
      %2972 = vmatpush.msra.mxu0 %v2908
      %2973 = vmatmul.f32.gmra.mxu0 %v2910
      %v2974 = vpop.f32.mrf.mxu0
      %v2975 = vadd.f32 0.0, %v2974
      %2976 = vmatmul.f32.gmra.mxu0 %v2913
      %v2977 = vpop.f32.mrf.mxu0
      %v2978 = vadd.f32 0.0, %v2977
      %2979 = vmatmul.f32.gmra.mxu0 %v2916
      %v2980 = vpop.f32.mrf.mxu0
      %v2981 = vadd.f32 0.0, %v2980
      %2982 = vmatmul.f32.gmra.mxu0 %v2919
      %v2983 = vpop.f32.mrf.mxu0
      %v2984 = vadd.f32 0.0, %v2983
      %2985 = vmatmul.f32.gmra.mxu0 %v2922
      %v2986 = vpop.f32.mrf.mxu0
      %v2987 = vadd.f32 0.0, %v2986
      %2988 = vmatmul.f32.gmra.mxu0 %v2925
      %v2989 = vpop.f32.mrf.mxu0
      %v2990 = vadd.f32 0.0, %v2989
      %2991 = vmatmul.f32.gmra.mxu0 %v2928
      %v2992 = vpop.f32.mrf.mxu0
      %v2993 = vadd.f32 0.0, %v2992
      %2994 = vmatmul.f32.gmra.mxu0 %v2931
      %v2995 = vpop.f32.mrf.mxu0
      %v2996 = vadd.f32 0.0, %v2995
      %2997 = vmatmul.f32.gmra.mxu0 %v2934
      %v2998 = vpop.f32.mrf.mxu0
      %v2999 = vadd.f32 0.0, %v2998
      %3000 = vmatmul.f32.gmra.mxu0 %v2937
      %v3001 = vpop.f32.mrf.mxu0
      %v3002 = vadd.f32 0.0, %v3001
      %3003 = vmatmul.f32.gmra.mxu0 %v2940
      %v3004 = vpop.f32.mrf.mxu0
      %v3005 = vadd.f32 0.0, %v3004
      %3006 = vmatmul.f32.gmra.mxu0 %v2943
      %v3007 = vpop.f32.mrf.mxu0
      %v3008 = vadd.f32 0.0, %v3007
      %3009 = vmatmul.f32.gmra.mxu0 %v2946
      %v3010 = vpop.f32.mrf.mxu0
      %v3011 = vadd.f32 0.0, %v3010
      %3012 = vmatmul.f32.gmra.mxu0 %v2949
      %v3013 = vpop.f32.mrf.mxu0
      %v3014 = vadd.f32 0.0, %v3013
      %3015 = vmatmul.f32.gmra.mxu0 %v2952
      %v3016 = vpop.f32.mrf.mxu0
      %v3017 = vadd.f32 0.0, %v3016
      %3018 = vmatmul.f32.gmra.mxu0 %v2955
      %v3019 = vpop.f32.mrf.mxu0
      %v3020 = vadd.f32 0.0, %v3019
      %3021 = vdwg.mxu0
      %v3022 = vadd.f32 %v2874, %v2975
      %v3023 = vadd.f32 %v2875, %v2978
      %v3024 = vadd.f32 %v2876, %v2981
      %v3025 = vadd.f32 %v2877, %v2984
      %v3026 = vadd.f32 %v2878, %v2987
      %v3027 = vadd.f32 %v2879, %v2990
      %v3028 = vadd.f32 %v2880, %v2993
      %v3029 = vadd.f32 %v2881, %v2996
      %v3030 = vadd.f32 %v2882, %v2999
      %v3031 = vadd.f32 %v2883, %v3002
      %v3032 = vadd.f32 %v2884, %v3005
      %v3033 = vadd.f32 %v2885, %v3008
      %v3034 = vadd.f32 %v2886, %v3011
      %v3035 = vadd.f32 %v2887, %v3014
      %v3036 = vadd.f32 %v2888, %v3017
      %v3037 = vadd.f32 %v2889, %v3020
      %v3038 = vld [vmem:[%s2890 + $0x1] sm:$0xff]
      %v3039 = vld [vmem:[%s2890 + $0x9] sm:$0xff]
      %v3040 = vld [vmem:[%s2890 + $0x19] sm:$0xff]
      %v3041 = vld [vmem:[%s2890 + $0x21] sm:$0xff]
      %v3042 = vld [vmem:[%s2890 + $0x31] sm:$0xff]
      %v3043 = vld [vmem:[%s2890 + $0x39] sm:$0xff]
      %v3044 = vld [vmem:[%s2890 + $0x49] sm:$0xff]
      %v3045 = vld [vmem:[%s2890 + $0x51] sm:$0xff]
      %v3046 = vld [vmem:[%s2890 + $0x61] sm:$0xff]
      %v3047 = vld [vmem:[%s2890 + $0x69] sm:$0xff]
      %v3048 = vld [vmem:[%s2890 + $0x79] sm:$0xff]
      %v3049 = vld [vmem:[%s2890 + $0x81] sm:$0xff]
      %v3050 = vld [vmem:[%s2890 + $0x91] sm:$0xff]
      %v3051 = vld [vmem:[%s2890 + $0x99] sm:$0xff]
      %v3052 = vld [vmem:[%s2890 + $0xa9] sm:$0xff]
      %v3053 = vld [vmem:[%s2890 + $0xb1] sm:$0xff]
      %s3054 = scalar_lea.vmem %s3, 56
      %v3055 = vld [vmem:[%s3054] sm:$0xff]
      %v3057 = vsel %vm1988, %v3038, 0
      %v3060 = vsel %vm1988, %v3039, 0
      %v3063 = vsel %vm1988, %v3040, 0
      %v3066 = vsel %vm1988, %v3041, 0
      %v3069 = vsel %vm1988, %v3042, 0
      %v3072 = vsel %vm1988, %v3043, 0
      %v3075 = vsel %vm1988, %v3044, 0
      %v3078 = vsel %vm1988, %v3045, 0
      %v3081 = vsel %vm1988, %v3046, 0
      %v3084 = vsel %vm1988, %v3047, 0
      %v3087 = vsel %vm1988, %v3048, 0
      %v3090 = vsel %vm1988, %v3049, 0
      %v3093 = vsel %vm1988, %v3050, 0
      %v3096 = vsel %vm1988, %v3051, 0
      %v3099 = vsel %vm1988, %v3052, 0
      %v3102 = vsel %vm1988, %v3053, 0
      %3104 = vmatpush.msra.mxu0 0.0
      %3105 = vmatpush.msra.mxu0 0.0
      %3106 = vmatpush.msra.mxu0 0.0
      %3107 = vmatpush.msra.mxu0 0.0
      %3108 = vmatpush.msra.mxu0 0.0
      %3109 = vmatpush.msra.mxu0 0.0
      %3110 = vmatpush.msra.mxu0 0.0
      %3111 = vmatpush.msra.mxu0 0.0
      %3112 = vmatpush.msra.mxu0 0.0
      %3113 = vmatpush.msra.mxu0 0.0
      %3114 = vmatpush.msra.mxu0 0.0
      %3115 = vmatpush.msra.mxu0 0.0
      %3116 = vmatpush.msra.mxu0 0.0
      %3117 = vmatpush.msra.mxu0 0.0
      %3118 = vmatpush.msra.mxu0 0.0
      %3119 = vmatpush.msra.mxu0 %v3055
      %3120 = vmatmul.f32.gmra.mxu0 %v3057
      %v3121 = vpop.f32.mrf.mxu0
      %v3122 = vadd.f32 0.0, %v3121
      %3123 = vmatmul.f32.gmra.mxu0 %v3060
      %v3124 = vpop.f32.mrf.mxu0
      %v3125 = vadd.f32 0.0, %v3124
      %3126 = vmatmul.f32.gmra.mxu0 %v3063
      %v3127 = vpop.f32.mrf.mxu0
      %v3128 = vadd.f32 0.0, %v3127
      %3129 = vmatmul.f32.gmra.mxu0 %v3066
      %v3130 = vpop.f32.mrf.mxu0
      %v3131 = vadd.f32 0.0, %v3130
      %3132 = vmatmul.f32.gmra.mxu0 %v3069
      %v3133 = vpop.f32.mrf.mxu0
      %v3134 = vadd.f32 0.0, %v3133
      %3135 = vmatmul.f32.gmra.mxu0 %v3072
      %v3136 = vpop.f32.mrf.mxu0
      %v3137 = vadd.f32 0.0, %v3136
      %3138 = vmatmul.f32.gmra.mxu0 %v3075
      %v3139 = vpop.f32.mrf.mxu0
      %v3140 = vadd.f32 0.0, %v3139
      %3141 = vmatmul.f32.gmra.mxu0 %v3078
      %v3142 = vpop.f32.mrf.mxu0
      %v3143 = vadd.f32 0.0, %v3142
      %3144 = vmatmul.f32.gmra.mxu0 %v3081
      %v3145 = vpop.f32.mrf.mxu0
      %v3146 = vadd.f32 0.0, %v3145
      %3147 = vmatmul.f32.gmra.mxu0 %v3084
      %v3148 = vpop.f32.mrf.mxu0
      %v3149 = vadd.f32 0.0, %v3148
      %3150 = vmatmul.f32.gmra.mxu0 %v3087
      %v3151 = vpop.f32.mrf.mxu0
      %v3152 = vadd.f32 0.0, %v3151
      %3153 = vmatmul.f32.gmra.mxu0 %v3090
      %v3154 = vpop.f32.mrf.mxu0
      %v3155 = vadd.f32 0.0, %v3154
      %3156 = vmatmul.f32.gmra.mxu0 %v3093
      %v3157 = vpop.f32.mrf.mxu0
      %v3158 = vadd.f32 0.0, %v3157
      %3159 = vmatmul.f32.gmra.mxu0 %v3096
      %v3160 = vpop.f32.mrf.mxu0
      %v3161 = vadd.f32 0.0, %v3160
      %3162 = vmatmul.f32.gmra.mxu0 %v3099
      %v3163 = vpop.f32.mrf.mxu0
      %v3164 = vadd.f32 0.0, %v3163
      %3165 = vmatmul.f32.gmra.mxu0 %v3102
      %v3166 = vpop.f32.mrf.mxu0
      %v3167 = vadd.f32 0.0, %v3166
      %3168 = vdwg.mxu0
      %v3169 = vadd.f32 %v3022, %v3122
      %v3170 = vadd.f32 %v3023, %v3125
      %v3171 = vadd.f32 %v3024, %v3128
      %v3172 = vadd.f32 %v3025, %v3131
      %v3173 = vadd.f32 %v3026, %v3134
      %v3174 = vadd.f32 %v3027, %v3137
      %v3175 = vadd.f32 %v3028, %v3140
      %v3176 = vadd.f32 %v3029, %v3143
      %v3177 = vadd.f32 %v3030, %v3146
      %v3178 = vadd.f32 %v3031, %v3149
      %v3179 = vadd.f32 %v3032, %v3152
      %v3180 = vadd.f32 %v3033, %v3155
      %v3181 = vadd.f32 %v3034, %v3158
      %v3182 = vadd.f32 %v3035, %v3161
      %v3183 = vadd.f32 %v3036, %v3164
      %v3184 = vadd.f32 %v3037, %v3167
      %v3185 = vld [vmem:[%s2890 + $0x2] sm:$0xff]
      %v3186 = vld [vmem:[%s2890 + $0xa] sm:$0xff]
      %v3187 = vld [vmem:[%s2890 + $0x1a] sm:$0xff]
      %v3188 = vld [vmem:[%s2890 + $0x22] sm:$0xff]
      %v3189 = vld [vmem:[%s2890 + $0x32] sm:$0xff]
      %v3190 = vld [vmem:[%s2890 + $0x3a] sm:$0xff]
      %v3191 = vld [vmem:[%s2890 + $0x4a] sm:$0xff]
      %v3192 = vld [vmem:[%s2890 + $0x52] sm:$0xff]
      %v3193 = vld [vmem:[%s2890 + $0x62] sm:$0xff]
      %v3194 = vld [vmem:[%s2890 + $0x6a] sm:$0xff]
      %v3195 = vld [vmem:[%s2890 + $0x7a] sm:$0xff]
      %v3196 = vld [vmem:[%s2890 + $0x82] sm:$0xff]
      %v3197 = vld [vmem:[%s2890 + $0x92] sm:$0xff]
      %v3198 = vld [vmem:[%s2890 + $0x9a] sm:$0xff]
      %v3199 = vld [vmem:[%s2890 + $0xaa] sm:$0xff]
      %v3200 = vld [vmem:[%s2890 + $0xb2] sm:$0xff]
      %s3201 = scalar_lea.vmem %s3, 64
      %v3202 = vld [vmem:[%s3201] sm:$0xff]
      %v3204 = vsel %vm1988, %v3185, 0
      %v3207 = vsel %vm1988, %v3186, 0
      %v3210 = vsel %vm1988, %v3187, 0
      %v3213 = vsel %vm1988, %v3188, 0
      %v3216 = vsel %vm1988, %v3189, 0
      %v3219 = vsel %vm1988, %v3190, 0
      %v3222 = vsel %vm1988, %v3191, 0
      %v3225 = vsel %vm1988, %v3192, 0
      %v3228 = vsel %vm1988, %v3193, 0
      %v3231 = vsel %vm1988, %v3194, 0
      %v3234 = vsel %vm1988, %v3195, 0
      %v3237 = vsel %vm1988, %v3196, 0
      %v3240 = vsel %vm1988, %v3197, 0
      %v3243 = vsel %vm1988, %v3198, 0
      %v3246 = vsel %vm1988, %v3199, 0
      %v3249 = vsel %vm1988, %v3200, 0
      %3251 = vmatpush.msra.mxu0 0.0
      %3252 = vmatpush.msra.mxu0 0.0
      %3253 = vmatpush.msra.mxu0 0.0
      %3254 = vmatpush.msra.mxu0 0.0
      %3255 = vmatpush.msra.mxu0 0.0
      %3256 = vmatpush.msra.mxu0 0.0
      %3257 = vmatpush.msra.mxu0 0.0
      %3258 = vmatpush.msra.mxu0 0.0
      %3259 = vmatpush.msra.mxu0 0.0
      %3260 = vmatpush.msra.mxu0 0.0
      %3261 = vmatpush.msra.mxu0 0.0
      %3262 = vmatpush.msra.mxu0 0.0
      %3263 = vmatpush.msra.mxu0 0.0
      %3264 = vmatpush.msra.mxu0 0.0
      %3265 = vmatpush.msra.mxu0 0.0
      %3266 = vmatpush.msra.mxu0 %v3202
      %3267 = vmatmul.f32.gmra.mxu0 %v3204
      %v3268 = vpop.f32.mrf.mxu0
      %v3269 = vadd.f32 0.0, %v3268
      %3270 = vmatmul.f32.gmra.mxu0 %v3207
      %v3271 = vpop.f32.mrf.mxu0
      %v3272 = vadd.f32 0.0, %v3271
      %3273 = vmatmul.f32.gmra.mxu0 %v3210
      %v3274 = vpop.f32.mrf.mxu0
      %v3275 = vadd.f32 0.0, %v3274
      %3276 = vmatmul.f32.gmra.mxu0 %v3213
      %v3277 = vpop.f32.mrf.mxu0
      %v3278 = vadd.f32 0.0, %v3277
      %3279 = vmatmul.f32.gmra.mxu0 %v3216
      %v3280 = vpop.f32.mrf.mxu0
      %v3281 = vadd.f32 0.0, %v3280
      %3282 = vmatmul.f32.gmra.mxu0 %v3219
      %v3283 = vpop.f32.mrf.mxu0
      %v3284 = vadd.f32 0.0, %v3283
      %3285 = vmatmul.f32.gmra.mxu0 %v3222
      %v3286 = vpop.f32.mrf.mxu0
      %v3287 = vadd.f32 0.0, %v3286
      %3288 = vmatmul.f32.gmra.mxu0 %v3225
      %v3289 = vpop.f32.mrf.mxu0
      %v3290 = vadd.f32 0.0, %v3289
      %3291 = vmatmul.f32.gmra.mxu0 %v3228
      %v3292 = vpop.f32.mrf.mxu0
      %v3293 = vadd.f32 0.0, %v3292
      %3294 = vmatmul.f32.gmra.mxu0 %v3231
      %v3295 = vpop.f32.mrf.mxu0
      %v3296 = vadd.f32 0.0, %v3295
      %3297 = vmatmul.f32.gmra.mxu0 %v3234
      %v3298 = vpop.f32.mrf.mxu0
      %v3299 = vadd.f32 0.0, %v3298
      %3300 = vmatmul.f32.gmra.mxu0 %v3237
      %v3301 = vpop.f32.mrf.mxu0
      %v3302 = vadd.f32 0.0, %v3301
      %3303 = vmatmul.f32.gmra.mxu0 %v3240
      %v3304 = vpop.f32.mrf.mxu0
      %v3305 = vadd.f32 0.0, %v3304
      %3306 = vmatmul.f32.gmra.mxu0 %v3243
      %v3307 = vpop.f32.mrf.mxu0
      %v3308 = vadd.f32 0.0, %v3307
      %3309 = vmatmul.f32.gmra.mxu0 %v3246
      %v3310 = vpop.f32.mrf.mxu0
      %v3311 = vadd.f32 0.0, %v3310
      %3312 = vmatmul.f32.gmra.mxu0 %v3249
      %v3313 = vpop.f32.mrf.mxu0
      %v3314 = vadd.f32 0.0, %v3313
      %3315 = vdwg.mxu0
      %v3316 = vadd.f32 %v3169, %v3269
      %v3317 = vadd.f32 %v3170, %v3272
      %v3318 = vadd.f32 %v3171, %v3275
      %v3319 = vadd.f32 %v3172, %v3278
      %v3320 = vadd.f32 %v3173, %v3281
      %v3321 = vadd.f32 %v3174, %v3284
      %v3322 = vadd.f32 %v3175, %v3287
      %v3323 = vadd.f32 %v3176, %v3290
      %v3324 = vadd.f32 %v3177, %v3293
      %v3325 = vadd.f32 %v3178, %v3296
      %v3326 = vadd.f32 %v3179, %v3299
      %v3327 = vadd.f32 %v3180, %v3302
      %v3328 = vadd.f32 %v3181, %v3305
      %v3329 = vadd.f32 %v3182, %v3308
      %v3330 = vadd.f32 %v3183, %v3311
      %v3331 = vadd.f32 %v3184, %v3314
      %v3332 = vld [vmem:[%s4] sm:$0x1]
      %v3334 = vperm.slane %v3332, 0
      %v3336 = vadd.f32 %v3316, %v3334
      %v3337 = vadd.f32 %v3317, %v3334
      %v3338 = vadd.f32 %v3318, %v3334
      %v3339 = vadd.f32 %v3319, %v3334
      %v3340 = vadd.f32 %v3320, %v3334
      %v3341 = vadd.f32 %v3321, %v3334
      %v3342 = vadd.f32 %v3322, %v3334
      %v3343 = vadd.f32 %v3323, %v3334
      %v3344 = vadd.f32 %v3324, %v3334
      %v3345 = vadd.f32 %v3325, %v3334
      %v3346 = vadd.f32 %v3326, %v3334
      %v3347 = vadd.f32 %v3327, %v3334
      %v3348 = vadd.f32 %v3328, %v3334
      %v3349 = vadd.f32 %v3329, %v3334
      %v3350 = vadd.f32 %v3330, %v3334
      %v3351 = vadd.f32 %v3331, %v3334
      %v3352 = vmax.f32 %v3336, 0.0
      %v3353 = vmax.f32 %v3337, 0.0
      %v3354 = vmax.f32 %v3338, 0.0
      %v3355 = vmax.f32 %v3339, 0.0
      %v3356 = vmax.f32 %v3340, 0.0
      %v3357 = vmax.f32 %v3341, 0.0
      %v3358 = vmax.f32 %v3342, 0.0
      %v3359 = vmax.f32 %v3343, 0.0
      %v3360 = vmax.f32 %v3344, 0.0
      %v3361 = vmax.f32 %v3345, 0.0
      %v3362 = vmax.f32 %v3346, 0.0
      %v3363 = vmax.f32 %v3347, 0.0
      %v3364 = vmax.f32 %v3348, 0.0
      %v3365 = vmax.f32 %v3349, 0.0
      %v3366 = vmax.f32 %v3350, 0.0
      %v3367 = vmax.f32 %v3351, 0.0
      %3368 = vst.msk [vmem:[%s248] sm:$0xff] %vm1988, %v3352
      %3369 = vst.msk [vmem:[%s248 + $0x8] sm:$0xff] %vm1988, %v3353
      %3370 = vst.msk [vmem:[%s248 + $0x10] sm:$0xff] %vm1988, %v3354
      %3371 = vst.msk [vmem:[%s248 + $0x18] sm:$0xff] %vm1988, %v3355
      %3372 = vst.msk [vmem:[%s248 + $0x20] sm:$0xff] %vm1988, %v3356
      %3373 = vst.msk [vmem:[%s248 + $0x28] sm:$0xff] %vm1988, %v3357
      %3374 = vst.msk [vmem:[%s248 + $0x30] sm:$0xff] %vm1988, %v3358
      %3375 = vst.msk [vmem:[%s248 + $0x38] sm:$0xff] %vm1988, %v3359
      %3376 = vst.msk [vmem:[%s248 + $0x40] sm:$0xff] %vm1988, %v3360
      %3377 = vst.msk [vmem:[%s248 + $0x48] sm:$0xff] %vm1988, %v3361
      %3378 = vst.msk [vmem:[%s248 + $0x50] sm:$0xff] %vm1988, %v3362
      %3379 = vst.msk [vmem:[%s248 + $0x58] sm:$0xff] %vm1988, %v3363
      %3380 = vst.msk [vmem:[%s248 + $0x60] sm:$0xff] %vm1988, %v3364
      %3381 = vst.msk [vmem:[%s248 + $0x68] sm:$0xff] %vm1988, %v3365
      %3382 = vst.msk [vmem:[%s248 + $0x70] sm:$0xff] %vm1988, %v3366
      %3383 = vst.msk [vmem:[%s248 + $0x78] sm:$0xff] %vm1988, %v3367
      %s3384 = smul.u32 8, %s21
      %p3385 = scmp.lt.s32.totalorder %s20, 1
      %s3386 = scalar_select %p3385, %s20, 1
      %p3387 = scmp.lt.s32.totalorder %s3384, 15
      %s3388 = scalar_select %p3387, %s3384, 15
      %s3389 = smul.addr %s3388, 2
      %s3390 = smul.addr %s3386, 32
      %s3391 = sadd.s32 %s3389, %s3390
      %s3392 = smul.addr %s3391, 8
      %s3393 = scalar_lea.vmem %s5, %s3392
      // Predicated region
      $region41: #{down_conv_forward.2} parent=39 // pred_check
        %p3394 = pneg %p158
      $region42: #{down_conv_forward.2} parent=39 // pred_check_branch
        %3396 = sbr.rel (%p3394) target = $region44
      $region43: #{down_conv_forward.2} parent=39 // pred_region
        %s3397 = smul.u32 8, %s21
      $region44: #{down_conv_forward.2} parent=39 // pred_fallthru
        _
    $region40: #{down_conv_forward.2} parent=5 // pred_fallthru
      _
    %p3398 = scmp.le.s32.totalorder 2, %s11
    // Predicated region
    $region45: #{down_conv_forward.2} parent=5 // pred_check
      %p3399 = pneg %p3398
    $region46: #{down_conv_forward.2} parent=5 // pred_check_branch
      %3401 = sbr.rel (%p3399) target = $region48
    $region47: #{down_conv_forward.2} parent=5 // pred_region
      %s3402 = ssub.s32 %s11, 2
      // Predicated region
      $region49: #{down_conv_forward.2} parent=47 // pred_check
        %p3403 = pneg %p164
      $region50: #{down_conv_forward.2} parent=47 // pred_check_branch
        %3405 = sbr.rel (%p3403) target = $region52
      $region51: #{down_conv_forward.2} parent=47 // pred_region
        %s3406 = smul.u32 8, %s23
        %p3407 = scmp.lt.s32.totalorder %s22, 1
        %s3408 = scalar_select %p3407, %s22, 1
        %p3409 = scmp.lt.s32.totalorder %s3406, 15
        %s3410 = scalar_select %p3409, %s3406, 15
        %s3411 = smul.addr %s3410, 2
        %s3412 = smul.addr %s3408, 32
        %s3413 = sadd.s32 %s3411, %s3412
        %s3414 = smul.addr %s3413, 8
        %s3415 = scalar_lea.vmem %s5, %s3414
      $region52: #{down_conv_forward.2} parent=47 // pred_fallthru
        _
    $region48: #{down_conv_forward.2} parent=5 // pred_fallthru
      _
  $region6: #{down_conv_forward.2} parent=0 // loop_footer
    %s15 = sadd.s32 1, %s11
  $region7: #{down_conv_forward.2} parent=0 // loop_footer_branch
    %10 = sbr.rel target = $region3
  $region8: #{down_conv_forward.2} parent=0 // loop_exit
    _

</llo_original>
